<compile_context>
chip_gen: v6e
topology: v6e:2x2x1
jax: 0.10.0
libtpu: 0.0.40
codegen_flags: <defaults>
</compile_context>

<pallas_src>
import jax
import jax.numpy as jnp
from jax.experimental import pallas as pl
from jax.experimental.pallas import tpu as pltpu


def make_dwsep_kernel(B, H, W, C, KH, KW, mm_dtype):
    Hp, Wp = H + KH - 1, W + KW - 1
    ph, pw = KH // 2, KW // 2

    def kernel(x_ref, wdw_ref, wpw_ref, bias_ref, out_ref, pad_sc):
        # ---- zero only the halo border of the padded scratch (the interior is
        #      fully overwritten every step, so no full-buffer memset) ---------
        zrow = jnp.zeros((B, ph, Wp, C), pad_sc.dtype)
        pad_sc[:, 0:ph, :, :] = zrow
        pad_sc[:, Hp - ph:Hp, :, :] = zrow
        zcol = jnp.zeros((B, Hp, pw, C), pad_sc.dtype)
        pad_sc[:, :, 0:pw, :] = zcol
        pad_sc[:, :, Wp - pw:Wp, :] = zcol

        # ---- in-kernel 'same' padding: copy the input tile into the interior --
        pad_sc[:, ph:ph + H, pw:pw + W, :] = x_ref[...]

        # ---- depthwise 3x3: 9 shifted views * per-channel weights (VPU),
        #      accumulated in f32 ----------------------------------------------
        wdw = wdw_ref[...].astype(jnp.float32)                  # (KH*KW, C)
        acc = jnp.zeros((B, H, W, C), jnp.float32)
        for dy in range(KH):
            for dx in range(KW):
                tap = dy * KW + dx
                xs = pad_sc[:, dy:dy + H, dx:dx + W, :].astype(jnp.float32)
                acc = acc + xs * wdw[tap].reshape(1, 1, 1, C)
        # (depthwise bias is folded into the pointwise bias in the wrapper)

        # ---- pointwise 1x1: ONE (B*H*W, C) x (C, C) MXU matmul ----------------
        m = acc.reshape(B * H * W, C).astype(mm_dtype)           # free reshape (C stays last)
        y = jnp.dot(m, wpw_ref[...].astype(mm_dtype),
                    preferred_element_type=jnp.float32)
        y = y + bias_ref[...].astype(jnp.float32)

        out_ref[...] = y.reshape(B, H, W, C).astype(out_ref.dtype)

    return kernel


def _pick_batch_block(N, H, W, C, itemsize, Hp, Wp,
                      vmem_budget=24 << 20, max_rows=4096):
    """Largest divisor of N whose per-step footprint fits comfortably in VMEM."""
    best = 1
    for b in range(1, N + 1):
        if N % b:
            continue
        # 2x double-buffered input + 2x output blocks + padded scratch
        # + f32 depthwise accumulator
        foot = b * ((4 * H * W * C + Hp * Wp * C) * itemsize + 4 * H * W * C)
        if foot <= vmem_budget and b * H * W <= max_rows:
            best = b
    return best


def dwconv_forward(x_nchw, params, batch_block=None):
    w_dw, b_dw = params["w_dw"], params["b_dw"]      # (KH,KW,C), (C,)
    w_pw, b_pw = params["w_pw"], params["b_pw"]      # (C,C) [ci,co], (C,)
    KH, KW, C = w_dw.shape

    x = jnp.transpose(x_nchw, (0, 2, 3, 1))          # NHWC, keep caller's dtype
    N, H, W, _ = x.shape
    Hp, Wp = H + KH - 1, W + KW - 1

    if batch_block is None:
        batch_block = _pick_batch_block(N, H, W, C, x.dtype.itemsize, Hp, Wp)
    B = batch_block
    assert N % B == 0, (N, B)

    # Fold the depthwise bias through the (linear) pointwise conv:
    #   (dw(x) + b_dw) @ W_pw + b_pw = dw(x) @ W_pw + (b_dw @ W_pw + b_pw)
    b_eff = (b_dw.astype(jnp.float32) @ w_pw.astype(jnp.float32)
             + b_pw.astype(jnp.float32))

    # bf16 activations -> bf16 MXU path (f32 accumulation); otherwise f32.
    mm_dtype = jnp.bfloat16 if x.dtype == jnp.bfloat16 else jnp.float32

    kernel = make_dwsep_kernel(B, H, W, C, KH, KW, mm_dtype)

    itemsize = x.dtype.itemsize
    block_bytes = B * H * W * C * itemsize
    scratch_bytes = B * Hp * Wp * C * itemsize
    acc_bytes = B * H * W * C * 4
    w_bytes = (KH * KW * C + C + C * C) * 4
    est = 4 * block_bytes + scratch_bytes + acc_bytes + w_bytes
    vmem_limit = int(min(max(4 * est, 16 << 20), 48 << 20))

    grid_spec = pltpu.PrefetchScalarGridSpec(
        num_scalar_prefetch=0,
        grid=(N // B,),
        in_specs=[
            pl.BlockSpec((B, H, W, C), lambda n: (n, 0, 0, 0)),   # input images
            pl.BlockSpec((KH * KW, C), lambda n: (0, 0)),         # depthwise w
            pl.BlockSpec((C, C), lambda n: (0, 0)),               # pointwise w
            pl.BlockSpec((1, C), lambda n: (0, 0)),               # fused bias
        ],
        out_specs=pl.BlockSpec((B, H, W, C), lambda n: (n, 0, 0, 0)),
        scratch_shapes=[pltpu.VMEM((B, Hp, Wp, C), x.dtype)],     # padded input
    )

    out = pl.pallas_call(
        kernel,
        out_shape=jax.ShapeDtypeStruct((N, H, W, C), x.dtype),
        grid_spec=grid_spec,
        compiler_params=pltpu.CompilerParams(
            dimension_semantics=("parallel",),
            vmem_limit_bytes=vmem_limit),
    )(x,
      w_dw.reshape(KH * KW, C).astype(jnp.float32),
      w_pw.astype(jnp.float32),
      b_eff.reshape(1, C))

    return jnp.transpose(out, (0, 3, 1, 2))                       # back to NCHW


def dwconv_reference(x_nchw, params):
    """Pure-JAX reference mirroring the PyTorch forward (depthwise -> pointwise)."""
    w_dw, b_dw = params["w_dw"], params["b_dw"]
    w_pw, b_pw = params["w_pw"], params["b_pw"]
    KH, KW, C = w_dw.shape
    x = jnp.transpose(x_nchw, (0, 2, 3, 1)).astype(jnp.float32)
    dn = ("NHWC", "HWIO", "NHWC")
    y = jax.lax.conv_general_dilated(
        x, w_dw[:, :, None, :].astype(jnp.float32), (1, 1), "SAME",
        dimension_numbers=dn, feature_group_count=C) + b_dw
    y = jax.lax.conv_general_dilated(
        y, w_pw[None, None, :, :].astype(jnp.float32), (1, 1), "SAME",
        dimension_numbers=dn) + b_pw
    return jnp.transpose(y, (0, 3, 1, 2))


if __name__ == "__main__":
    N, C, H, W = 2, 64, 16, 16          # batch, n_feat, spatial
    KH = KW = 3

    key = jax.random.PRNGKey(0)
    kx, k1, k2, k3, k4 = jax.random.split(key, 5)
    params = {
        "w_dw": 0.2 * jax.random.normal(k1, (KH, KW, C), jnp.float32),
        "b_dw": 0.1 * jax.random.normal(k2, (C,), jnp.float32),
        "w_pw": 0.1 * jax.random.normal(k3, (C, C), jnp.float32),
        "b_pw": 0.1 * jax.random.normal(k4, (C,), jnp.float32),
    }
    x = jax.random.normal(kx, (N, C, H, W), jnp.float32)      # NCHW like PyTorch

    out = jax.block_until_ready(dwconv_forward(x, params))
    ref = jax.block_until_ready(dwconv_reference(x, params))

    assert out.shape == x.shape, (out.shape, x.shape)
    err = float(jnp.max(jnp.abs(out - ref)))
    assert jnp.allclose(out, ref, atol=1e-4, rtol=1e-4), err
    print("KERNEL_OK")
</pallas_src>

<mosaic_0001>
module attributes {stable_mosaic.version = 11 : i64} {
  func.func @kernel(%arg0: i32, %arg1: memref<2x16x16x64xf32, #tpu.memory_space<vmem>>, %arg2: memref<9x64xf32, #tpu.memory_space<vmem>>, %arg3: memref<64x64xf32, #tpu.memory_space<vmem>>, %arg4: memref<1x64xf32, #tpu.memory_space<vmem>>, %arg5: memref<2x16x16x64xf32, #tpu.memory_space<vmem>>, %arg6: memref<2x18x18x64xf32, #tpu.memory_space<vmem>>) attributes {dimension_semantics = [#tpu.dimension_semantics<parallel>], iteration_bounds = array<i64: 1>, scalar_prefetch = 0 : i64, scratch_operands = 1 : i64, tpu.core_type = #tpu.core_type<tc>, window_params = [{transform_indices = @transform_0, window_bounds = array<i64: 2, 16, 16, 64>}, {pipeline_mode = #tpu.pipeline_mode<synchronous>, transform_indices = @transform_1, window_bounds = array<i64: 9, 64>}, {pipeline_mode = #tpu.pipeline_mode<synchronous>, transform_indices = @transform_2, window_bounds = array<i64: 64, 64>}, {pipeline_mode = #tpu.pipeline_mode<synchronous>, transform_indices = @transform_3, window_bounds = array<i64: 1, 64>}, {transform_indices = @transform_4, window_bounds = array<i64: 2, 16, 16, 64>}]} {
    %cst = arith.constant 0.000000e+00 : f32
    %0 = vector.broadcast %cst : f32 to vector<2x1x18x64xf32>
    %c0 = arith.constant 0 : index
    %c0_0 = arith.constant 0 : index
    %c0_1 = arith.constant 0 : index
    %c0_2 = arith.constant 0 : index
    %1 = vector.load %arg6[%c0, %c0_0, %c0_1, %c0_2] : memref<2x18x18x64xf32, #tpu.memory_space<vmem>>, vector<2x1x18x64xf32>
    tpu.vector_store %arg6[%c0, %c0_0, %c0_1, %c0_2], %0 {strides = array<i32>} : memref<2x18x18x64xf32, #tpu.memory_space<vmem>>, vector<2x1x18x64xf32>,
    %c0_3 = arith.constant 0 : index
    %c17 = arith.constant 17 : index
    %c0_4 = arith.constant 0 : index
    %c0_5 = arith.constant 0 : index
    %2 = vector.load %arg6[%c0_3, %c17, %c0_4, %c0_5] : memref<2x18x18x64xf32, #tpu.memory_space<vmem>>, vector<2x1x18x64xf32>
    tpu.vector_store %arg6[%c0_3, %c17, %c0_4, %c0_5], %0 {strides = array<i32>} : memref<2x18x18x64xf32, #tpu.memory_space<vmem>>, vector<2x1x18x64xf32>,
    %cst_6 = arith.constant 0.000000e+00 : f32
    %3 = vector.broadcast %cst_6 : f32 to vector<2x18x1x64xf32>
    %c0_7 = arith.constant 0 : index
    %c0_8 = arith.constant 0 : index
    %c0_9 = arith.constant 0 : index
    %c0_10 = arith.constant 0 : index
    %4 = vector.load %arg6[%c0_7, %c0_8, %c0_9, %c0_10] : memref<2x18x18x64xf32, #tpu.memory_space<vmem>>, vector<2x18x1x64xf32>
    tpu.vector_store %arg6[%c0_7, %c0_8, %c0_9, %c0_10], %3 {strides = array<i32>} : memref<2x18x18x64xf32, #tpu.memory_space<vmem>>, vector<2x18x1x64xf32>,
    %c0_11 = arith.constant 0 : index
    %c0_12 = arith.constant 0 : index
    %c17_13 = arith.constant 17 : index
    %c0_14 = arith.constant 0 : index
    %5 = vector.load %arg6[%c0_11, %c0_12, %c17_13, %c0_14] : memref<2x18x18x64xf32, #tpu.memory_space<vmem>>, vector<2x18x1x64xf32>
    tpu.vector_store %arg6[%c0_11, %c0_12, %c17_13, %c0_14], %3 {strides = array<i32>} : memref<2x18x18x64xf32, #tpu.memory_space<vmem>>, vector<2x18x1x64xf32>,
    %c0_15 = arith.constant 0 : index
    %c0_16 = arith.constant 0 : index
    %c0_17 = arith.constant 0 : index
    %c0_18 = arith.constant 0 : index
    %6 = vector.load %arg1[%c0_15, %c0_16, %c0_17, %c0_18] : memref<2x16x16x64xf32, #tpu.memory_space<vmem>>, vector<2x16x16x64xf32>
    %c0_19 = arith.constant 0 : index
    %c1 = arith.constant 1 : index
    %c1_20 = arith.constant 1 : index
    %c0_21 = arith.constant 0 : index
    %7 = vector.load %arg6[%c0_19, %c1, %c1_20, %c0_21] : memref<2x18x18x64xf32, #tpu.memory_space<vmem>>, vector<2x16x16x64xf32>
    tpu.vector_store %arg6[%c0_19, %c1, %c1_20, %c0_21], %6 {strides = array<i32>} : memref<2x18x18x64xf32, #tpu.memory_space<vmem>>, vector<2x16x16x64xf32>,
    %c0_22 = arith.constant 0 : index
    %c0_23 = arith.constant 0 : index
    %8 = vector.load %arg2[%c0_22, %c0_23] : memref<9x64xf32, #tpu.memory_space<vmem>>, vector<9x64xf32>
    %cst_24 = arith.constant 0.000000e+00 : f32
    %9 = vector.broadcast %cst_24 : f32 to vector<2x16x16x64xf32>
    %c0_25 = arith.constant 0 : index
    %c0_26 = arith.constant 0 : index
    %c0_27 = arith.constant 0 : index
    %c0_28 = arith.constant 0 : index
    %10 = vector.load %arg6[%c0_25, %c0_26, %c0_27, %c0_28] : memref<2x18x18x64xf32, #tpu.memory_space<vmem>>, vector<2x16x16x64xf32>
    %11 = vector.extract_strided_slice %8 {offsets = [0, 0], sizes = [1, 64], strides = [1, 1]} : vector<9x64xf32> to vector<1x64xf32>
    %12 = vector.shape_cast %11 : vector<1x64xf32> to vector<64xf32>
    %13 = vector.shape_cast %12 : vector<64xf32> to vector<1x1x1x64xf32>
    %14 = vector.broadcast %13 : vector<1x1x1x64xf32> to vector<2x16x16x64xf32>
    %15 = arith.mulf %10, %14 : vector<2x16x16x64xf32>
    %16 = arith.addf %9, %15 : vector<2x16x16x64xf32>
    %c0_29 = arith.constant 0 : index
    %c0_30 = arith.constant 0 : index
    %c1_31 = arith.constant 1 : index
    %c0_32 = arith.constant 0 : index
    %17 = vector.load %arg6[%c0_29, %c0_30, %c1_31, %c0_32] : memref<2x18x18x64xf32, #tpu.memory_space<vmem>>, vector<2x16x16x64xf32>
    %18 = vector.extract_strided_slice %8 {offsets = [1, 0], sizes = [1, 64], strides = [1, 1]} : vector<9x64xf32> to vector<1x64xf32>
    %19 = vector.shape_cast %18 : vector<1x64xf32> to vector<64xf32>
    %20 = vector.shape_cast %19 : vector<64xf32> to vector<1x1x1x64xf32>
    %21 = vector.broadcast %20 : vector<1x1x1x64xf32> to vector<2x16x16x64xf32>
    %22 = arith.mulf %17, %21 : vector<2x16x16x64xf32>
    %23 = arith.addf %16, %22 : vector<2x16x16x64xf32>
    %c0_33 = arith.constant 0 : index
    %c0_34 = arith.constant 0 : index
    %c2 = arith.constant 2 : index
    %c0_35 = arith.constant 0 : index
    %24 = vector.load %arg6[%c0_33, %c0_34, %c2, %c0_35] : memref<2x18x18x64xf32, #tpu.memory_space<vmem>>, vector<2x16x16x64xf32>
    %25 = vector.extract_strided_slice %8 {offsets = [2, 0], sizes = [1, 64], strides = [1, 1]} : vector<9x64xf32> to vector<1x64xf32>
    %26 = vector.shape_cast %25 : vector<1x64xf32> to vector<64xf32>
    %27 = vector.shape_cast %26 : vector<64xf32> to vector<1x1x1x64xf32>
    %28 = vector.broadcast %27 : vector<1x1x1x64xf32> to vector<2x16x16x64xf32>
    %29 = arith.mulf %24, %28 : vector<2x16x16x64xf32>
    %30 = arith.addf %23, %29 : vector<2x16x16x64xf32>
    %c0_36 = arith.constant 0 : index
    %c1_37 = arith.constant 1 : index
    %c0_38 = arith.constant 0 : index
    %c0_39 = arith.constant 0 : index
    %31 = vector.load %arg6[%c0_36, %c1_37, %c0_38, %c0_39] : memref<2x18x18x64xf32, #tpu.memory_space<vmem>>, vector<2x16x16x64xf32>
    %32 = vector.extract_strided_slice %8 {offsets = [3, 0], sizes = [1, 64], strides = [1, 1]} : vector<9x64xf32> to vector<1x64xf32>
    %33 = vector.shape_cast %32 : vector<1x64xf32> to vector<64xf32>
    %34 = vector.shape_cast %33 : vector<64xf32> to vector<1x1x1x64xf32>
    %35 = vector.broadcast %34 : vector<1x1x1x64xf32> to vector<2x16x16x64xf32>
    %36 = arith.mulf %31, %35 : vector<2x16x16x64xf32>
    %37 = arith.addf %30, %36 : vector<2x16x16x64xf32>
    %c0_40 = arith.constant 0 : index
    %c1_41 = arith.constant 1 : index
    %c1_42 = arith.constant 1 : index
    %c0_43 = arith.constant 0 : index
    %38 = vector.load %arg6[%c0_40, %c1_41, %c1_42, %c0_43] : memref<2x18x18x64xf32, #tpu.memory_space<vmem>>, vector<2x16x16x64xf32>
    %39 = vector.extract_strided_slice %8 {offsets = [4, 0], sizes = [1, 64], strides = [1, 1]} : vector<9x64xf32> to vector<1x64xf32>
    %40 = vector.shape_cast %39 : vector<1x64xf32> to vector<64xf32>
    %41 = vector.shape_cast %40 : vector<64xf32> to vector<1x1x1x64xf32>
    %42 = vector.broadcast %41 : vector<1x1x1x64xf32> to vector<2x16x16x64xf32>
    %43 = arith.mulf %38, %42 : vector<2x16x16x64xf32>
    %44 = arith.addf %37, %43 : vector<2x16x16x64xf32>
    %c0_44 = arith.constant 0 : index
    %c1_45 = arith.constant 1 : index
    %c2_46 = arith.constant 2 : index
    %c0_47 = arith.constant 0 : index
    %45 = vector.load %arg6[%c0_44, %c1_45, %c2_46, %c0_47] : memref<2x18x18x64xf32, #tpu.memory_space<vmem>>, vector<2x16x16x64xf32>
    %46 = vector.extract_strided_slice %8 {offsets = [5, 0], sizes = [1, 64], strides = [1, 1]} : vector<9x64xf32> to vector<1x64xf32>
    %47 = vector.shape_cast %46 : vector<1x64xf32> to vector<64xf32>
    %48 = vector.shape_cast %47 : vector<64xf32> to vector<1x1x1x64xf32>
    %49 = vector.broadcast %48 : vector<1x1x1x64xf32> to vector<2x16x16x64xf32>
    %50 = arith.mulf %45, %49 : vector<2x16x16x64xf32>
    %51 = arith.addf %44, %50 : vector<2x16x16x64xf32>
    %c0_48 = arith.constant 0 : index
    %c2_49 = arith.constant 2 : index
    %c0_50 = arith.constant 0 : index
    %c0_51 = arith.constant 0 : index
    %52 = vector.load %arg6[%c0_48, %c2_49, %c0_50, %c0_51] : memref<2x18x18x64xf32, #tpu.memory_space<vmem>>, vector<2x16x16x64xf32>
    %53 = vector.extract_strided_slice %8 {offsets = [6, 0], sizes = [1, 64], strides = [1, 1]} : vector<9x64xf32> to vector<1x64xf32>
    %54 = vector.shape_cast %53 : vector<1x64xf32> to vector<64xf32>
    %55 = vector.shape_cast %54 : vector<64xf32> to vector<1x1x1x64xf32>
    %56 = vector.broadcast %55 : vector<1x1x1x64xf32> to vector<2x16x16x64xf32>
    %57 = arith.mulf %52, %56 : vector<2x16x16x64xf32>
    %58 = arith.addf %51, %57 : vector<2x16x16x64xf32>
    %c0_52 = arith.constant 0 : index
    %c2_53 = arith.constant 2 : index
    %c1_54 = arith.constant 1 : index
    %c0_55 = arith.constant 0 : index
    %59 = vector.load %arg6[%c0_52, %c2_53, %c1_54, %c0_55] : memref<2x18x18x64xf32, #tpu.memory_space<vmem>>, vector<2x16x16x64xf32>
    %60 = vector.extract_strided_slice %8 {offsets = [7, 0], sizes = [1, 64], strides = [1, 1]} : vector<9x64xf32> to vector<1x64xf32>
    %61 = vector.shape_cast %60 : vector<1x64xf32> to vector<64xf32>
    %62 = vector.shape_cast %61 : vector<64xf32> to vector<1x1x1x64xf32>
    %63 = vector.broadcast %62 : vector<1x1x1x64xf32> to vector<2x16x16x64xf32>
    %64 = arith.mulf %59, %63 : vector<2x16x16x64xf32>
    %65 = arith.addf %58, %64 : vector<2x16x16x64xf32>
    %c0_56 = arith.constant 0 : index
    %c2_57 = arith.constant 2 : index
    %c2_58 = arith.constant 2 : index
    %c0_59 = arith.constant 0 : index
    %66 = vector.load %arg6[%c0_56, %c2_57, %c2_58, %c0_59] : memref<2x18x18x64xf32, #tpu.memory_space<vmem>>, vector<2x16x16x64xf32>
    %67 = vector.extract_strided_slice %8 {offsets = [8, 0], sizes = [1, 64], strides = [1, 1]} : vector<9x64xf32> to vector<1x64xf32>
    %68 = vector.shape_cast %67 : vector<1x64xf32> to vector<64xf32>
    %69 = vector.shape_cast %68 : vector<64xf32> to vector<1x1x1x64xf32>
    %70 = vector.broadcast %69 : vector<1x1x1x64xf32> to vector<2x16x16x64xf32>
    %71 = arith.mulf %66, %70 : vector<2x16x16x64xf32>
    %72 = arith.addf %65, %71 : vector<2x16x16x64xf32>
    %73 = vector.shape_cast %72 : vector<2x16x16x64xf32> to vector<512x64xf32>
    %c0_60 = arith.constant 0 : index
    %c0_61 = arith.constant 0 : index
    %74 = vector.load %arg3[%c0_60, %c0_61] : memref<64x64xf32, #tpu.memory_space<vmem>>, vector<64x64xf32>
    %cst_62 = arith.constant dense<0.000000e+00> : vector<512x64xf32>
    %75 = tpu.matmul %73, %74, %cst_62 {dimension_numbers = #tpu.dot_dimension_numbers<[1], [0], [0], [1], [0, 0, 1, 1], [], []>} : vector<512x64xf32>, vector<64x64xf32>, vector<512x64xf32> -> vector<512x64xf32>
    %c0_63 = arith.constant 0 : index
    %c0_64 = arith.constant 0 : index
    %76 = vector.load %arg4[%c0_63, %c0_64] : memref<1x64xf32, #tpu.memory_space<vmem>>, vector<1x64xf32>
    %77 = vector.broadcast %76 : vector<1x64xf32> to vector<512x64xf32>
    %78 = arith.addf %75, %77 : vector<512x64xf32>
    %79 = vector.shape_cast %78 : vector<512x64xf32> to vector<2x16x16x64xf32>
    %c0_65 = arith.constant 0 : index
    %c0_66 = arith.constant 0 : index
    %c0_67 = arith.constant 0 : index
    %c0_68 = arith.constant 0 : index
    %80 = vector.load %arg5[%c0_65, %c0_66, %c0_67, %c0_68] : memref<2x16x16x64xf32, #tpu.memory_space<vmem>>, vector<2x16x16x64xf32>
    tpu.vector_store %arg5[%c0_65, %c0_66, %c0_67, %c0_68], %79 {strides = array<i32>} : memref<2x16x16x64xf32, #tpu.memory_space<vmem>>, vector<2x16x16x64xf32>,
    return
  }
  func.func @transform_0(%arg0: i32) -> (i32, i32, i32, i32) {
    %c0_i32 = arith.constant 0 : i32
    %c0_i32_0 = arith.constant 0 : i32
    %c0_i32_1 = arith.constant 0 : i32
    %c0_i32_2 = arith.constant 0 : i32
    return %arg0, %c0_i32, %c0_i32_0, %c0_i32_1 : i32, i32, i32, i32
  }
  func.func @transform_1(%arg0: i32) -> (i32, i32) {
    %c0_i32 = arith.constant 0 : i32
    %c0_i32_0 = arith.constant 0 : i32
    %c0_i32_1 = arith.constant 0 : i32
    return %c0_i32, %c0_i32_0 : i32, i32
  }
  func.func @transform_2(%arg0: i32) -> (i32, i32) {
    %c0_i32 = arith.constant 0 : i32
    %c0_i32_0 = arith.constant 0 : i32
    %c0_i32_1 = arith.constant 0 : i32
    return %c0_i32, %c0_i32_0 : i32, i32
  }
  func.func @transform_3(%arg0: i32) -> (i32, i32) {
    %c0_i32 = arith.constant 0 : i32
    %c0_i32_0 = arith.constant 0 : i32
    %c0_i32_1 = arith.constant 0 : i32
    return %c0_i32, %c0_i32_0 : i32, i32
  }
  func.func @transform_4(%arg0: i32) -> (i32, i32, i32, i32) {
    %c0_i32 = arith.constant 0 : i32
    %c0_i32_0 = arith.constant 0 : i32
    %c0_i32_1 = arith.constant 0 : i32
    %c0_i32_2 = arith.constant 0 : i32
    return %arg0, %c0_i32, %c0_i32_0, %c0_i32_1 : i32, i32, i32, i32
  }
}

</mosaic_0001>

<llo_original>
// kernel: tpu_custom_call.1
$region0: #{tpu_custom_call.1}
  #allocation0 [shape = 'u32[]', space=smem, size = 0x4, offset = 0x4, fixed_abs, tag = 'smem constant byte address 0x4 - core index']
  #allocation1 [shape = 'u32[144,128]{1,0:T(1,128)}', space=vmem, size = 0x12000, scoped, tag = 'internal scratch']
  #allocation2 [shape = 'f32[2,18,18,64]{3,2,1,0:T(8,128)}', space=vmem, size = 0x6c000, scoped, tag = 'scratch operand']
  %s0 = inlined_call_operand.hbm [shape: f32[2,16,16,64], index: 0, kind: input, shape index: {}]
  %s1 = inlined_call_operand.hbm [shape: f32[9,64], index: 1, kind: input, shape index: {}]
  %s2 = inlined_call_operand.hbm [shape: f32[64,64], index: 2, kind: input, shape index: {}]
  %s3 = inlined_call_operand.vmem [shape: f32[1,64], index: 3, kind: input, shape index: {}]
  %s4 = inlined_call_operand.hbm [shape: f32[2,16,16,64], index: 4, kind: output, shape index: {}]
  %s5 = sld [smem:[#allocation0]]
  $region38: #{tpu_custom_call.1} parent=0
    _
  %s7 = ssub.s32 1, %s5
  %s8 = scalar_select 0, %s7, %s5
  $region1: #{tpu_custom_call.1} parent=0
    #allocation3 [shape = 'u8[262144]{0}', space=vmem, size = 0x40000, scoped, tag = 'input window, operand 0, single buffered']
    #allocation4 [shape = 's32[1]{0}', space=sflag, size = 0x4, scoped, tag = 'scoped memory for tpu_custom_call.1']
    #allocation5 [shape = 's32[1]{0}', space=sflag, size = 0x4, scoped, tag = 'scoped memory for tpu_custom_call.1']
    #allocation6 [shape = 'u8[8192]{0}', space=vmem, size = 0x2000, scoped, tag = 'input window, operand 1, single buffered']
    #allocation7 [shape = 's32[1]{0}', space=sflag, size = 0x4, scoped, tag = 'scoped memory for tpu_custom_call.1']
    #allocation8 [shape = 'u8[32768]{0}', space=vmem, size = 0x8000, scoped, tag = 'input window, operand 2, single buffered']
    #allocation9 [shape = 'u8[262144]{0}', space=vmem, size = 0x40000, scoped, tag = 'output window, operand 0, single buffered']
    %9 = vsyncpa [#allocation4], 0
    %10 = vsyncpa [#allocation7], 0
    %11 = vsyncpa [#allocation5], 0
    // Predicated region
    $region2: #{tpu_custom_call.1} parent=1 // pred_check
      _
    $region3: #{tpu_custom_call.1} parent=1 // pred_check_branch
      %13 = sbr.rel (0) target = $region5
    $region4: #{tpu_custom_call.1} parent=1 // pred_region
      %s15 = ssub.s32 8192, 8192
      %16 = vsyncadd [#allocation4], %s15
      %s17 = sshll.u32 [#allocation3], 4
      %s18 = int_to_ptr.vmem [resolvable:$true] %s17
      %23 = dma.hbm_to_vmem [thread:$0]  %s0, 8192, %s18, [#allocation4], 128, 128, 8
    $region5: #{tpu_custom_call.1} parent=1 // pred_fallthru
      _
    // Predicated region
    $region6: #{tpu_custom_call.1} parent=1 // pred_check
      _
    $region7: #{tpu_custom_call.1} parent=1 // pred_check_branch
      %25 = sbr.rel (0) target = $region9
    $region8: #{tpu_custom_call.1} parent=1 // pred_region
      %s27 = ssub.s32 256, 256
      %28 = vsyncadd [#allocation7], %s27
      %s29 = sshll.u32 [#allocation6], 4
      %s30 = int_to_ptr.vmem [resolvable:$true] %s29
      %35 = dma.hbm_to_vmem [thread:$0]  %s1, 256, %s30, [#allocation7], 128, 128, 8
    $region9: #{tpu_custom_call.1} parent=1 // pred_fallthru
      _
    // Predicated region
    $region10: #{tpu_custom_call.1} parent=1 // pred_check
      _
    $region11: #{tpu_custom_call.1} parent=1 // pred_check_branch
      %37 = sbr.rel (0) target = $region13
    $region12: #{tpu_custom_call.1} parent=1 // pred_region
      %s39 = ssub.s32 1024, 1024
      %40 = vsyncadd [#allocation7], %s39
      %s41 = sshll.u32 [#allocation8], 4
      %s42 = int_to_ptr.vmem [resolvable:$true] %s41
      %47 = dma.hbm_to_vmem [thread:$0]  %s2, 1024, %s42, [#allocation7], 128, 128, 8
    $region13: #{tpu_custom_call.1} parent=1 // pred_fallthru
      _
    // Predicated region
    $region14: #{tpu_custom_call.1} parent=1 // pred_check
      _
    $region15: #{tpu_custom_call.1} parent=1 // pred_check_branch
      %49 = sbr.rel (0) target = $region17
    $region16: #{tpu_custom_call.1} parent=1 // pred_region
      _
    $region17: #{tpu_custom_call.1} parent=1 // pred_fallthru
      _
    // Predicated region
    $region18: #{tpu_custom_call.1} parent=1 // pred_check
      _
    $region19: #{tpu_custom_call.1} parent=1 // pred_check_branch
      %51 = sbr.rel (0) target = $region21
    $region20: #{tpu_custom_call.1} parent=1 // pred_region
      %52 = dma.done [#allocation4], 8192
    $region21: #{tpu_custom_call.1} parent=1 // pred_fallthru
      _
    // Predicated region
    $region22: #{tpu_custom_call.1} parent=1 // pred_check
      _
    $region23: #{tpu_custom_call.1} parent=1 // pred_check_branch
      %54 = sbr.rel (0) target = $region25
    $region24: #{tpu_custom_call.1} parent=1 // pred_region
      %55 = dma.done [#allocation7], 256
    $region25: #{tpu_custom_call.1} parent=1 // pred_fallthru
      _
    // Predicated region
    $region26: #{tpu_custom_call.1} parent=1 // pred_check
      _
    $region27: #{tpu_custom_call.1} parent=1 // pred_check_branch
      %57 = sbr.rel (0) target = $region29
    $region28: #{tpu_custom_call.1} parent=1 // pred_region
      %58 = dma.done [#allocation7], 1024
    $region29: #{tpu_custom_call.1} parent=1 // pred_fallthru
      _
    %vm59 = vcmask 523264
    %60 = vst.msk [vmem:[#allocation2] sm:$0xff] %vm59, 0.0
    %61 = vst.msk [vmem:[#allocation2 + $0x8] sm:$0xff] %vm59, 0.0
    %vm62 = vcmask 517120
    %63 = vst.msk [vmem:[#allocation2 + $0x10] sm:$0x3] %vm62, 0.0
    %64 = vst.msk [vmem:[#allocation2 + $0x1b0] sm:$0xff] %vm59, 0.0
    %65 = vst.msk [vmem:[#allocation2 + $0x1b8] sm:$0xff] %vm59, 0.0
    %66 = vst.msk [vmem:[#allocation2 + $0x1c0] sm:$0x3] %vm62, 0.0
    %s67 = scalar_lea.vmem [#allocation2], 408
    %68 = vst.msk [vmem:[%s67] sm:$0xff] %vm59, 0.0
    %69 = vst.msk [vmem:[%s67 + $0x8] sm:$0xff] %vm59, 0.0
    %70 = vst.msk [vmem:[%s67 + $0x10] sm:$0x3] %vm62, 0.0
    %71 = vst.msk [vmem:[%s67 + $0x1b0] sm:$0xff] %vm59, 0.0
    %72 = vst.msk [vmem:[%s67 + $0x1b8] sm:$0xff] %vm59, 0.0
    %73 = vst.msk [vmem:[%s67 + $0x1c0] sm:$0x3] %vm62, 0.0
    %vm74 = vcmask 516096
    %75 = vst.msk [vmem:[#allocation2] sm:$0x1] %vm74, 0.0
    %76 = vst.msk [vmem:[#allocation2 + $0x18] sm:$0x1] %vm74, 0.0
    %77 = vst.msk [vmem:[#allocation2 + $0x30] sm:$0x1] %vm74, 0.0
    %78 = vst.msk [vmem:[#allocation2 + $0x48] sm:$0x1] %vm74, 0.0
    %79 = vst.msk [vmem:[#allocation2 + $0x60] sm:$0x1] %vm74, 0.0
    %80 = vst.msk [vmem:[#allocation2 + $0x78] sm:$0x1] %vm74, 0.0
    %81 = vst.msk [vmem:[#allocation2 + $0x90] sm:$0x1] %vm74, 0.0
    %82 = vst.msk [vmem:[#allocation2 + $0xa8] sm:$0x1] %vm74, 0.0
    %83 = vst.msk [vmem:[#allocation2 + $0xc0] sm:$0x1] %vm74, 0.0
    %84 = vst.msk [vmem:[#allocation2 + $0xd8] sm:$0x1] %vm74, 0.0
    %85 = vst.msk [vmem:[#allocation2 + $0xf0] sm:$0x1] %vm74, 0.0
    %86 = vst.msk [vmem:[#allocation2 + $0x108] sm:$0x1] %vm74, 0.0
    %87 = vst.msk [vmem:[#allocation2 + $0x120] sm:$0x1] %vm74, 0.0
    %88 = vst.msk [vmem:[#allocation2 + $0x138] sm:$0x1] %vm74, 0.0
    %89 = vst.msk [vmem:[#allocation2 + $0x150] sm:$0x1] %vm74, 0.0
    %90 = vst.msk [vmem:[#allocation2 + $0x168] sm:$0x1] %vm74, 0.0
    %91 = vst.msk [vmem:[#allocation2 + $0x180] sm:$0x1] %vm74, 0.0
    %92 = vst.msk [vmem:[#allocation2 + $0x198] sm:$0x1] %vm74, 0.0
    %93 = vst.msk [vmem:[#allocation2 + $0x1b0] sm:$0x1] %vm74, 0.0
    %94 = vst.msk [vmem:[#allocation2 + $0x1c8] sm:$0x1] %vm74, 0.0
    %95 = vst.msk [vmem:[#allocation2 + $0x1e0] sm:$0x1] %vm74, 0.0
    %96 = vst.msk [vmem:[#allocation2 + $0x1f8] sm:$0x1] %vm74, 0.0
    %97 = vst.msk [vmem:[#allocation2 + $0x210] sm:$0x1] %vm74, 0.0
    %98 = vst.msk [vmem:[#allocation2 + $0x228] sm:$0x1] %vm74, 0.0
    %99 = vst.msk [vmem:[#allocation2 + $0x240] sm:$0x1] %vm74, 0.0
    %100 = vst.msk [vmem:[#allocation2 + $0x258] sm:$0x1] %vm74, 0.0
    %101 = vst.msk [vmem:[#allocation2 + $0x270] sm:$0x1] %vm74, 0.0
    %102 = vst.msk [vmem:[#allocation2 + $0x288] sm:$0x1] %vm74, 0.0
    %103 = vst.msk [vmem:[#allocation2 + $0x2a0] sm:$0x1] %vm74, 0.0
    %104 = vst.msk [vmem:[#allocation2 + $0x2b8] sm:$0x1] %vm74, 0.0
    %105 = vst.msk [vmem:[#allocation2 + $0x2d0] sm:$0x1] %vm74, 0.0
    %106 = vst.msk [vmem:[#allocation2 + $0x2e8] sm:$0x1] %vm74, 0.0
    %107 = vst.msk [vmem:[#allocation2 + $0x300] sm:$0x1] %vm74, 0.0
    %108 = vst.msk [vmem:[#allocation2 + $0x318] sm:$0x1] %vm74, 0.0
    %109 = vst.msk [vmem:[#allocation2 + $0x330] sm:$0x1] %vm74, 0.0
    %110 = vst.msk [vmem:[#allocation2 + $0x348] sm:$0x1] %vm74, 0.0
    %111 = vst.msk [vmem:[#allocation2 + $0x11] sm:$0x1] %vm74, 0.0
    %112 = vst.msk [vmem:[#allocation2 + $0x29] sm:$0x1] %vm74, 0.0
    %113 = vst.msk [vmem:[#allocation2 + $0x41] sm:$0x1] %vm74, 0.0
    %114 = vst.msk [vmem:[#allocation2 + $0x59] sm:$0x1] %vm74, 0.0
    %115 = vst.msk [vmem:[#allocation2 + $0x71] sm:$0x1] %vm74, 0.0
    %116 = vst.msk [vmem:[#allocation2 + $0x89] sm:$0x1] %vm74, 0.0
    %117 = vst.msk [vmem:[#allocation2 + $0xa1] sm:$0x1] %vm74, 0.0
    %118 = vst.msk [vmem:[#allocation2 + $0xb9] sm:$0x1] %vm74, 0.0
    %119 = vst.msk [vmem:[#allocation2 + $0xd1] sm:$0x1] %vm74, 0.0
    %120 = vst.msk [vmem:[#allocation2 + $0xe9] sm:$0x1] %vm74, 0.0
    %121 = vst.msk [vmem:[#allocation2 + $0x101] sm:$0x1] %vm74, 0.0
    %122 = vst.msk [vmem:[#allocation2 + $0x119] sm:$0x1] %vm74, 0.0
    %123 = vst.msk [vmem:[#allocation2 + $0x131] sm:$0x1] %vm74, 0.0
    %124 = vst.msk [vmem:[#allocation2 + $0x149] sm:$0x1] %vm74, 0.0
    %125 = vst.msk [vmem:[#allocation2 + $0x161] sm:$0x1] %vm74, 0.0
    %126 = vst.msk [vmem:[#allocation2 + $0x179] sm:$0x1] %vm74, 0.0
    %127 = vst.msk [vmem:[#allocation2 + $0x191] sm:$0x1] %vm74, 0.0
    %128 = vst.msk [vmem:[#allocation2 + $0x1a9] sm:$0x1] %vm74, 0.0
    %129 = vst.msk [vmem:[#allocation2 + $0x1c1] sm:$0x1] %vm74, 0.0
    %130 = vst.msk [vmem:[#allocation2 + $0x1d9] sm:$0x1] %vm74, 0.0
    %131 = vst.msk [vmem:[#allocation2 + $0x1f1] sm:$0x1] %vm74, 0.0
    %132 = vst.msk [vmem:[#allocation2 + $0x209] sm:$0x1] %vm74, 0.0
    %133 = vst.msk [vmem:[#allocation2 + $0x221] sm:$0x1] %vm74, 0.0
    %134 = vst.msk [vmem:[#allocation2 + $0x239] sm:$0x1] %vm74, 0.0
    %135 = vst.msk [vmem:[#allocation2 + $0x251] sm:$0x1] %vm74, 0.0
    %136 = vst.msk [vmem:[#allocation2 + $0x269] sm:$0x1] %vm74, 0.0
    %137 = vst.msk [vmem:[#allocation2 + $0x281] sm:$0x1] %vm74, 0.0
    %138 = vst.msk [vmem:[#allocation2 + $0x299] sm:$0x1] %vm74, 0.0
    %139 = vst.msk [vmem:[#allocation2 + $0x2b1] sm:$0x1] %vm74, 0.0
    %140 = vst.msk [vmem:[#allocation2 + $0x2c9] sm:$0x1] %vm74, 0.0
    %141 = vst.msk [vmem:[#allocation2 + $0x2e1] sm:$0x1] %vm74, 0.0
    %142 = vst.msk [vmem:[#allocation2 + $0x2f9] sm:$0x1] %vm74, 0.0
    %143 = vst.msk [vmem:[#allocation2 + $0x311] sm:$0x1] %vm74, 0.0
    %144 = vst.msk [vmem:[#allocation2 + $0x329] sm:$0x1] %vm74, 0.0
    %145 = vst.msk [vmem:[#allocation2 + $0x341] sm:$0x1] %vm74, 0.0
    %146 = vst.msk [vmem:[#allocation2 + $0x359] sm:$0x1] %vm74, 0.0
    %v147 = vld [vmem:[#allocation3] sm:$0xff]
    %v148 = vld [vmem:[#allocation3 + $0x8] sm:$0xff]
    %v149 = vld [vmem:[#allocation3 + $0x10] sm:$0xff]
    %v150 = vld [vmem:[#allocation3 + $0x18] sm:$0xff]
    %v151 = vld [vmem:[#allocation3 + $0x20] sm:$0xff]
    %v152 = vld [vmem:[#allocation3 + $0x28] sm:$0xff]
    %v153 = vld [vmem:[#allocation3 + $0x30] sm:$0xff]
    %v154 = vld [vmem:[#allocation3 + $0x38] sm:$0xff]
    %v155 = vld [vmem:[#allocation3 + $0x40] sm:$0xff]
    %v156 = vld [vmem:[#allocation3 + $0x48] sm:$0xff]
    %v157 = vld [vmem:[#allocation3 + $0x50] sm:$0xff]
    %v158 = vld [vmem:[#allocation3 + $0x58] sm:$0xff]
    %v159 = vld [vmem:[#allocation3 + $0x60] sm:$0xff]
    %v160 = vld [vmem:[#allocation3 + $0x68] sm:$0xff]
    %v161 = vld [vmem:[#allocation3 + $0x70] sm:$0xff]
    %v162 = vld [vmem:[#allocation3 + $0x78] sm:$0xff]
    %v163 = vld [vmem:[#allocation3 + $0x80] sm:$0xff]
    %v164 = vld [vmem:[#allocation3 + $0x88] sm:$0xff]
    %v165 = vld [vmem:[#allocation3 + $0x90] sm:$0xff]
    %v166 = vld [vmem:[#allocation3 + $0x98] sm:$0xff]
    %v167 = vld [vmem:[#allocation3 + $0xa0] sm:$0xff]
    %v168 = vld [vmem:[#allocation3 + $0xa8] sm:$0xff]
    %v169 = vld [vmem:[#allocation3 + $0xb0] sm:$0xff]
    %v170 = vld [vmem:[#allocation3 + $0xb8] sm:$0xff]
    %v171 = vld [vmem:[#allocation3 + $0xc0] sm:$0xff]
    %v172 = vld [vmem:[#allocation3 + $0xc8] sm:$0xff]
    %v173 = vld [vmem:[#allocation3 + $0xd0] sm:$0xff]
    %v174 = vld [vmem:[#allocation3 + $0xd8] sm:$0xff]
    %v175 = vld [vmem:[#allocation3 + $0xe0] sm:$0xff]
    %v176 = vld [vmem:[#allocation3 + $0xe8] sm:$0xff]
    %v177 = vld [vmem:[#allocation3 + $0xf0] sm:$0xff]
    %v178 = vld [vmem:[#allocation3 + $0xf8] sm:$0xff]
    %v179 = vld [vmem:[#allocation3 + $0x100] sm:$0xff]
    %v180 = vld [vmem:[#allocation3 + $0x108] sm:$0xff]
    %v181 = vld [vmem:[#allocation3 + $0x110] sm:$0xff]
    %v182 = vld [vmem:[#allocation3 + $0x118] sm:$0xff]
    %v183 = vld [vmem:[#allocation3 + $0x120] sm:$0xff]
    %v184 = vld [vmem:[#allocation3 + $0x128] sm:$0xff]
    %v185 = vld [vmem:[#allocation3 + $0x130] sm:$0xff]
    %v186 = vld [vmem:[#allocation3 + $0x138] sm:$0xff]
    %v187 = vld [vmem:[#allocation3 + $0x140] sm:$0xff]
    %v188 = vld [vmem:[#allocation3 + $0x148] sm:$0xff]
    %v189 = vld [vmem:[#allocation3 + $0x150] sm:$0xff]
    %v190 = vld [vmem:[#allocation3 + $0x158] sm:$0xff]
    %v191 = vld [vmem:[#allocation3 + $0x160] sm:$0xff]
    %v192 = vld [vmem:[#allocation3 + $0x168] sm:$0xff]
    %v193 = vld [vmem:[#allocation3 + $0x170] sm:$0xff]
    %v194 = vld [vmem:[#allocation3 + $0x178] sm:$0xff]
    %v195 = vld [vmem:[#allocation3 + $0x180] sm:$0xff]
    %v196 = vld [vmem:[#allocation3 + $0x188] sm:$0xff]
    %v197 = vld [vmem:[#allocation3 + $0x190] sm:$0xff]
    %v198 = vld [vmem:[#allocation3 + $0x198] sm:$0xff]
    %v199 = vld [vmem:[#allocation3 + $0x1a0] sm:$0xff]
    %v200 = vld [vmem:[#allocation3 + $0x1a8] sm:$0xff]
    %v201 = vld [vmem:[#allocation3 + $0x1b0] sm:$0xff]
    %v202 = vld [vmem:[#allocation3 + $0x1b8] sm:$0xff]
    %v203 = vld [vmem:[#allocation3 + $0x1c0] sm:$0xff]
    %v204 = vld [vmem:[#allocation3 + $0x1c8] sm:$0xff]
    %v205 = vld [vmem:[#allocation3 + $0x1d0] sm:$0xff]
    %v206 = vld [vmem:[#allocation3 + $0x1d8] sm:$0xff]
    %v207 = vld [vmem:[#allocation3 + $0x1e0] sm:$0xff]
    %v208 = vld [vmem:[#allocation3 + $0x1e8] sm:$0xff]
    %v209 = vld [vmem:[#allocation3 + $0x1f0] sm:$0xff]
    %v210 = vld [vmem:[#allocation3 + $0x1f8] sm:$0xff]
    %s211 = scalar_lea.vmem [#allocation2], 24
    %212 = vst.msk [vmem:[%s211 + $0x1] sm:$0xff] %vm59, %v147
    %213 = vst.msk [vmem:[%s211 + $0x9] sm:$0xff] %vm59, %v148
    %214 = vst.msk [vmem:[%s211 + $0x19] sm:$0xff] %vm59, %v149
    %215 = vst.msk [vmem:[%s211 + $0x21] sm:$0xff] %vm59, %v150
    %216 = vst.msk [vmem:[%s211 + $0x31] sm:$0xff] %vm59, %v151
    %217 = vst.msk [vmem:[%s211 + $0x39] sm:$0xff] %vm59, %v152
    %218 = vst.msk [vmem:[%s211 + $0x49] sm:$0xff] %vm59, %v153
    %219 = vst.msk [vmem:[%s211 + $0x51] sm:$0xff] %vm59, %v154
    %220 = vst.msk [vmem:[%s211 + $0x61] sm:$0xff] %vm59, %v155
    %221 = vst.msk [vmem:[%s211 + $0x69] sm:$0xff] %vm59, %v156
    %222 = vst.msk [vmem:[%s211 + $0x79] sm:$0xff] %vm59, %v157
    %223 = vst.msk [vmem:[%s211 + $0x81] sm:$0xff] %vm59, %v158
    %224 = vst.msk [vmem:[%s211 + $0x91] sm:$0xff] %vm59, %v159
    %225 = vst.msk [vmem:[%s211 + $0x99] sm:$0xff] %vm59, %v160
    %226 = vst.msk [vmem:[%s211 + $0xa9] sm:$0xff] %vm59, %v161
    %227 = vst.msk [vmem:[%s211 + $0xb1] sm:$0xff] %vm59, %v162
    %228 = vst.msk [vmem:[%s211 + $0xc1] sm:$0xff] %vm59, %v163
    %229 = vst.msk [vmem:[%s211 + $0xc9] sm:$0xff] %vm59, %v164
    %230 = vst.msk [vmem:[%s211 + $0xd9] sm:$0xff] %vm59, %v165
    %231 = vst.msk [vmem:[%s211 + $0xe1] sm:$0xff] %vm59, %v166
    %232 = vst.msk [vmem:[%s211 + $0xf1] sm:$0xff] %vm59, %v167
    %233 = vst.msk [vmem:[%s211 + $0xf9] sm:$0xff] %vm59, %v168
    %234 = vst.msk [vmem:[%s211 + $0x109] sm:$0xff] %vm59, %v169
    %235 = vst.msk [vmem:[%s211 + $0x111] sm:$0xff] %vm59, %v170
    %236 = vst.msk [vmem:[%s211 + $0x121] sm:$0xff] %vm59, %v171
    %237 = vst.msk [vmem:[%s211 + $0x129] sm:$0xff] %vm59, %v172
    %238 = vst.msk [vmem:[%s211 + $0x139] sm:$0xff] %vm59, %v173
    %239 = vst.msk [vmem:[%s211 + $0x141] sm:$0xff] %vm59, %v174
    %240 = vst.msk [vmem:[%s211 + $0x151] sm:$0xff] %vm59, %v175
    %241 = vst.msk [vmem:[%s211 + $0x159] sm:$0xff] %vm59, %v176
    %242 = vst.msk [vmem:[%s211 + $0x169] sm:$0xff] %vm59, %v177
    %243 = vst.msk [vmem:[%s211 + $0x171] sm:$0xff] %vm59, %v178
    %244 = vst.msk [vmem:[%s211 + $0x1b1] sm:$0xff] %vm59, %v179
    %245 = vst.msk [vmem:[%s211 + $0x1b9] sm:$0xff] %vm59, %v180
    %246 = vst.msk [vmem:[%s211 + $0x1c9] sm:$0xff] %vm59, %v181
    %247 = vst.msk [vmem:[%s211 + $0x1d1] sm:$0xff] %vm59, %v182
    %248 = vst.msk [vmem:[%s211 + $0x1e1] sm:$0xff] %vm59, %v183
    %249 = vst.msk [vmem:[%s211 + $0x1e9] sm:$0xff] %vm59, %v184
    %250 = vst.msk [vmem:[%s211 + $0x1f9] sm:$0xff] %vm59, %v185
    %251 = vst.msk [vmem:[%s211 + $0x201] sm:$0xff] %vm59, %v186
    %252 = vst.msk [vmem:[%s211 + $0x211] sm:$0xff] %vm59, %v187
    %253 = vst.msk [vmem:[%s211 + $0x219] sm:$0xff] %vm59, %v188
    %254 = vst.msk [vmem:[%s211 + $0x229] sm:$0xff] %vm59, %v189
    %255 = vst.msk [vmem:[%s211 + $0x231] sm:$0xff] %vm59, %v190
    %256 = vst.msk [vmem:[%s211 + $0x241] sm:$0xff] %vm59, %v191
    %257 = vst.msk [vmem:[%s211 + $0x249] sm:$0xff] %vm59, %v192
    %258 = vst.msk [vmem:[%s211 + $0x259] sm:$0xff] %vm59, %v193
    %259 = vst.msk [vmem:[%s211 + $0x261] sm:$0xff] %vm59, %v194
    %260 = vst.msk [vmem:[%s211 + $0x271] sm:$0xff] %vm59, %v195
    %261 = vst.msk [vmem:[%s211 + $0x279] sm:$0xff] %vm59, %v196
    %262 = vst.msk [vmem:[%s211 + $0x289] sm:$0xff] %vm59, %v197
    %263 = vst.msk [vmem:[%s211 + $0x291] sm:$0xff] %vm59, %v198
    %264 = vst.msk [vmem:[%s211 + $0x2a1] sm:$0xff] %vm59, %v199
    %265 = vst.msk [vmem:[%s211 + $0x2a9] sm:$0xff] %vm59, %v200
    %266 = vst.msk [vmem:[%s211 + $0x2b9] sm:$0xff] %vm59, %v201
    %267 = vst.msk [vmem:[%s211 + $0x2c1] sm:$0xff] %vm59, %v202
    %268 = vst.msk [vmem:[%s211 + $0x2d1] sm:$0xff] %vm59, %v203
    %269 = vst.msk [vmem:[%s211 + $0x2d9] sm:$0xff] %vm59, %v204
    %270 = vst.msk [vmem:[%s211 + $0x2e9] sm:$0xff] %vm59, %v205
    %271 = vst.msk [vmem:[%s211 + $0x2f1] sm:$0xff] %vm59, %v206
    %272 = vst.msk [vmem:[%s211 + $0x301] sm:$0xff] %vm59, %v207
    %273 = vst.msk [vmem:[%s211 + $0x309] sm:$0xff] %vm59, %v208
    %274 = vst.msk [vmem:[%s211 + $0x319] sm:$0xff] %vm59, %v209
    %275 = vst.msk [vmem:[%s211 + $0x321] sm:$0xff] %vm59, %v210
    %v276 = vld [vmem:[#allocation6] sm:$0xff]
    %v277 = vld [vmem:[#allocation6 + $0x8] sm:$0x1]
    %v278 = vld [vmem:[#allocation2] sm:$0xff]
    %v279 = vld [vmem:[#allocation2 + $0x8] sm:$0xff]
    %v280 = vld [vmem:[#allocation2 + $0x18] sm:$0xff]
    %v281 = vld [vmem:[#allocation2 + $0x20] sm:$0xff]
    %v282 = vld [vmem:[#allocation2 + $0x30] sm:$0xff]
    %v283 = vld [vmem:[#allocation2 + $0x38] sm:$0xff]
    %v284 = vld [vmem:[#allocation2 + $0x48] sm:$0xff]
    %v285 = vld [vmem:[#allocation2 + $0x50] sm:$0xff]
    %v286 = vld [vmem:[#allocation2 + $0x60] sm:$0xff]
    %v287 = vld [vmem:[#allocation2 + $0x68] sm:$0xff]
    %v288 = vld [vmem:[#allocation2 + $0x78] sm:$0xff]
    %v289 = vld [vmem:[#allocation2 + $0x80] sm:$0xff]
    %v290 = vld [vmem:[#allocation2 + $0x90] sm:$0xff]
    %v291 = vld [vmem:[#allocation2 + $0x98] sm:$0xff]
    %v292 = vld [vmem:[#allocation2 + $0xa8] sm:$0xff]
    %v293 = vld [vmem:[#allocation2 + $0xb0] sm:$0xff]
    %v294 = vld [vmem:[#allocation2 + $0xc0] sm:$0xff]
    %v295 = vld [vmem:[#allocation2 + $0xc8] sm:$0xff]
    %v296 = vld [vmem:[#allocation2 + $0xd8] sm:$0xff]
    %v297 = vld [vmem:[#allocation2 + $0xe0] sm:$0xff]
    %v298 = vld [vmem:[#allocation2 + $0xf0] sm:$0xff]
    %v299 = vld [vmem:[#allocation2 + $0xf8] sm:$0xff]
    %v300 = vld [vmem:[#allocation2 + $0x108] sm:$0xff]
    %v301 = vld [vmem:[#allocation2 + $0x110] sm:$0xff]
    %v302 = vld [vmem:[#allocation2 + $0x120] sm:$0xff]
    %v303 = vld [vmem:[#allocation2 + $0x128] sm:$0xff]
    %v304 = vld [vmem:[#allocation2 + $0x138] sm:$0xff]
    %v305 = vld [vmem:[#allocation2 + $0x140] sm:$0xff]
    %v306 = vld [vmem:[#allocation2 + $0x150] sm:$0xff]
    %v307 = vld [vmem:[#allocation2 + $0x158] sm:$0xff]
    %v308 = vld [vmem:[#allocation2 + $0x168] sm:$0xff]
    %v309 = vld [vmem:[#allocation2 + $0x170] sm:$0xff]
    %v310 = vld [vmem:[#allocation2 + $0x1b0] sm:$0xff]
    %v311 = vld [vmem:[#allocation2 + $0x1b8] sm:$0xff]
    %v312 = vld [vmem:[#allocation2 + $0x1c8] sm:$0xff]
    %v313 = vld [vmem:[#allocation2 + $0x1d0] sm:$0xff]
    %v314 = vld [vmem:[#allocation2 + $0x1e0] sm:$0xff]
    %v315 = vld [vmem:[#allocation2 + $0x1e8] sm:$0xff]
    %v316 = vld [vmem:[#allocation2 + $0x1f8] sm:$0xff]
    %v317 = vld [vmem:[#allocation2 + $0x200] sm:$0xff]
    %v318 = vld [vmem:[#allocation2 + $0x210] sm:$0xff]
    %v319 = vld [vmem:[#allocation2 + $0x218] sm:$0xff]
    %v320 = vld [vmem:[#allocation2 + $0x228] sm:$0xff]
    %v321 = vld [vmem:[#allocation2 + $0x230] sm:$0xff]
    %v322 = vld [vmem:[#allocation2 + $0x240] sm:$0xff]
    %v323 = vld [vmem:[#allocation2 + $0x248] sm:$0xff]
    %v324 = vld [vmem:[#allocation2 + $0x258] sm:$0xff]
    %v325 = vld [vmem:[#allocation2 + $0x260] sm:$0xff]
    %v326 = vld [vmem:[#allocation2 + $0x270] sm:$0xff]
    %v327 = vld [vmem:[#allocation2 + $0x278] sm:$0xff]
    %v328 = vld [vmem:[#allocation2 + $0x288] sm:$0xff]
    %v329 = vld [vmem:[#allocation2 + $0x290] sm:$0xff]
    %v330 = vld [vmem:[#allocation2 + $0x2a0] sm:$0xff]
    %v331 = vld [vmem:[#allocation2 + $0x2a8] sm:$0xff]
    %v332 = vld [vmem:[#allocation2 + $0x2b8] sm:$0xff]
    %v333 = vld [vmem:[#allocation2 + $0x2c0] sm:$0xff]
    %v334 = vld [vmem:[#allocation2 + $0x2d0] sm:$0xff]
    %v335 = vld [vmem:[#allocation2 + $0x2d8] sm:$0xff]
    %v336 = vld [vmem:[#allocation2 + $0x2e8] sm:$0xff]
    %v337 = vld [vmem:[#allocation2 + $0x2f0] sm:$0xff]
    %v338 = vld [vmem:[#allocation2 + $0x300] sm:$0xff]
    %v339 = vld [vmem:[#allocation2 + $0x308] sm:$0xff]
    %v340 = vld [vmem:[#allocation2 + $0x318] sm:$0xff]
    %v341 = vld [vmem:[#allocation2 + $0x320] sm:$0xff]
    %v342 = vlaneseq
    %v343 = vshrl.u32 %v342, 7
    %v344 = vsub.s32 0, %v343
    %v345 = vrot.slane %v276, %v344
    %v346 = vmul.f32 %v278, %v345
    %v347 = vmul.f32 %v279, %v345
    %v348 = vmul.f32 %v280, %v345
    %v349 = vmul.f32 %v281, %v345
    %v350 = vmul.f32 %v282, %v345
    %v351 = vmul.f32 %v283, %v345
    %v352 = vmul.f32 %v284, %v345
    %v353 = vmul.f32 %v285, %v345
    %v354 = vmul.f32 %v286, %v345
    %v355 = vmul.f32 %v287, %v345
    %v356 = vmul.f32 %v288, %v345
    %v357 = vmul.f32 %v289, %v345
    %v358 = vmul.f32 %v290, %v345
    %v359 = vmul.f32 %v291, %v345
    %v360 = vmul.f32 %v292, %v345
    %v361 = vmul.f32 %v293, %v345
    %v362 = vmul.f32 %v294, %v345
    %v363 = vmul.f32 %v295, %v345
    %v364 = vmul.f32 %v296, %v345
    %v365 = vmul.f32 %v297, %v345
    %v366 = vmul.f32 %v298, %v345
    %v367 = vmul.f32 %v299, %v345
    %v368 = vmul.f32 %v300, %v345
    %v369 = vmul.f32 %v301, %v345
    %v370 = vmul.f32 %v302, %v345
    %v371 = vmul.f32 %v303, %v345
    %v372 = vmul.f32 %v304, %v345
    %v373 = vmul.f32 %v305, %v345
    %v374 = vmul.f32 %v306, %v345
    %v375 = vmul.f32 %v307, %v345
    %v376 = vmul.f32 %v308, %v345
    %v377 = vmul.f32 %v309, %v345
    %v378 = vmul.f32 %v310, %v345
    %v379 = vmul.f32 %v311, %v345
    %v380 = vmul.f32 %v312, %v345
    %v381 = vmul.f32 %v313, %v345
    %v382 = vmul.f32 %v314, %v345
    %v383 = vmul.f32 %v315, %v345
    %v384 = vmul.f32 %v316, %v345
    %v385 = vmul.f32 %v317, %v345
    %v386 = vmul.f32 %v318, %v345
    %v387 = vmul.f32 %v319, %v345
    %v388 = vmul.f32 %v320, %v345
    %v389 = vmul.f32 %v321, %v345
    %v390 = vmul.f32 %v322, %v345
    %v391 = vmul.f32 %v323, %v345
    %v392 = vmul.f32 %v324, %v345
    %v393 = vmul.f32 %v325, %v345
    %v394 = vmul.f32 %v326, %v345
    %v395 = vmul.f32 %v327, %v345
    %v396 = vmul.f32 %v328, %v345
    %v397 = vmul.f32 %v329, %v345
    %v398 = vmul.f32 %v330, %v345
    %v399 = vmul.f32 %v331, %v345
    %v400 = vmul.f32 %v332, %v345
    %v401 = vmul.f32 %v333, %v345
    %v402 = vmul.f32 %v334, %v345
    %v403 = vmul.f32 %v335, %v345
    %v404 = vmul.f32 %v336, %v345
    %v405 = vmul.f32 %v337, %v345
    %v406 = vmul.f32 %v338, %v345
    %v407 = vmul.f32 %v339, %v345
    %v408 = vmul.f32 %v340, %v345
    %v409 = vmul.f32 %v341, %v345
    %v410 = vadd.f32 %v346, 0.0
    %v411 = vadd.f32 %v347, 0.0
    %v412 = vadd.f32 %v348, 0.0
    %v413 = vadd.f32 %v349, 0.0
    %v414 = vadd.f32 %v350, 0.0
    %v415 = vadd.f32 %v351, 0.0
    %v416 = vadd.f32 %v352, 0.0
    %v417 = vadd.f32 %v353, 0.0
    %v418 = vadd.f32 %v354, 0.0
    %v419 = vadd.f32 %v355, 0.0
    %v420 = vadd.f32 %v356, 0.0
    %v421 = vadd.f32 %v357, 0.0
    %v422 = vadd.f32 %v358, 0.0
    %v423 = vadd.f32 %v359, 0.0
    %v424 = vadd.f32 %v360, 0.0
    %v425 = vadd.f32 %v361, 0.0
    %v426 = vadd.f32 %v362, 0.0
    %v427 = vadd.f32 %v363, 0.0
    %v428 = vadd.f32 %v364, 0.0
    %v429 = vadd.f32 %v365, 0.0
    %v430 = vadd.f32 %v366, 0.0
    %v431 = vadd.f32 %v367, 0.0
    %v432 = vadd.f32 %v368, 0.0
    %v433 = vadd.f32 %v369, 0.0
    %v434 = vadd.f32 %v370, 0.0
    %v435 = vadd.f32 %v371, 0.0
    %v436 = vadd.f32 %v372, 0.0
    %v437 = vadd.f32 %v373, 0.0
    %v438 = vadd.f32 %v374, 0.0
    %v439 = vadd.f32 %v375, 0.0
    %v440 = vadd.f32 %v376, 0.0
    %v441 = vadd.f32 %v377, 0.0
    %v442 = vadd.f32 %v378, 0.0
    %v443 = vadd.f32 %v379, 0.0
    %v444 = vadd.f32 %v380, 0.0
    %v445 = vadd.f32 %v381, 0.0
    %v446 = vadd.f32 %v382, 0.0
    %v447 = vadd.f32 %v383, 0.0
    %v448 = vadd.f32 %v384, 0.0
    %v449 = vadd.f32 %v385, 0.0
    %v450 = vadd.f32 %v386, 0.0
    %v451 = vadd.f32 %v387, 0.0
    %v452 = vadd.f32 %v388, 0.0
    %v453 = vadd.f32 %v389, 0.0
    %v454 = vadd.f32 %v390, 0.0
    %v455 = vadd.f32 %v391, 0.0
    %v456 = vadd.f32 %v392, 0.0
    %v457 = vadd.f32 %v393, 0.0
    %v458 = vadd.f32 %v394, 0.0
    %v459 = vadd.f32 %v395, 0.0
    %v460 = vadd.f32 %v396, 0.0
    %v461 = vadd.f32 %v397, 0.0
    %v462 = vadd.f32 %v398, 0.0
    %v463 = vadd.f32 %v399, 0.0
    %v464 = vadd.f32 %v400, 0.0
    %v465 = vadd.f32 %v401, 0.0
    %v466 = vadd.f32 %v402, 0.0
    %v467 = vadd.f32 %v403, 0.0
    %v468 = vadd.f32 %v404, 0.0
    %v469 = vadd.f32 %v405, 0.0
    %v470 = vadd.f32 %v406, 0.0
    %v471 = vadd.f32 %v407, 0.0
    %v472 = vadd.f32 %v408, 0.0
    %v473 = vadd.f32 %v409, 0.0
    %v474 = vld [vmem:[#allocation2 + $0x1] sm:$0xff]
    %v475 = vld [vmem:[#allocation2 + $0x9] sm:$0xff]
    %v476 = vld [vmem:[#allocation2 + $0x19] sm:$0xff]
    %v477 = vld [vmem:[#allocation2 + $0x21] sm:$0xff]
    %v478 = vld [vmem:[#allocation2 + $0x31] sm:$0xff]
    %v479 = vld [vmem:[#allocation2 + $0x39] sm:$0xff]
    %v480 = vld [vmem:[#allocation2 + $0x49] sm:$0xff]
    %v481 = vld [vmem:[#allocation2 + $0x51] sm:$0xff]
    %v482 = vld [vmem:[#allocation2 + $0x61] sm:$0xff]
    %v483 = vld [vmem:[#allocation2 + $0x69] sm:$0xff]
    %v484 = vld [vmem:[#allocation2 + $0x79] sm:$0xff]
    %v485 = vld [vmem:[#allocation2 + $0x81] sm:$0xff]
    %v486 = vld [vmem:[#allocation2 + $0x91] sm:$0xff]
    %v487 = vld [vmem:[#allocation2 + $0x99] sm:$0xff]
    %v488 = vld [vmem:[#allocation2 + $0xa9] sm:$0xff]
    %v489 = vld [vmem:[#allocation2 + $0xb1] sm:$0xff]
    %v490 = vld [vmem:[#allocation2 + $0xc1] sm:$0xff]
    %v491 = vld [vmem:[#allocation2 + $0xc9] sm:$0xff]
    %v492 = vld [vmem:[#allocation2 + $0xd9] sm:$0xff]
    %v493 = vld [vmem:[#allocation2 + $0xe1] sm:$0xff]
    %v494 = vld [vmem:[#allocation2 + $0xf1] sm:$0xff]
    %v495 = vld [vmem:[#allocation2 + $0xf9] sm:$0xff]
    %v496 = vld [vmem:[#allocation2 + $0x109] sm:$0xff]
    %v497 = vld [vmem:[#allocation2 + $0x111] sm:$0xff]
    %v498 = vld [vmem:[#allocation2 + $0x121] sm:$0xff]
    %v499 = vld [vmem:[#allocation2 + $0x129] sm:$0xff]
    %v500 = vld [vmem:[#allocation2 + $0x139] sm:$0xff]
    %v501 = vld [vmem:[#allocation2 + $0x141] sm:$0xff]
    %v502 = vld [vmem:[#allocation2 + $0x151] sm:$0xff]
    %v503 = vld [vmem:[#allocation2 + $0x159] sm:$0xff]
    %v504 = vld [vmem:[#allocation2 + $0x169] sm:$0xff]
    %v505 = vld [vmem:[#allocation2 + $0x171] sm:$0xff]
    %v506 = vld [vmem:[#allocation2 + $0x1b1] sm:$0xff]
    %v507 = vld [vmem:[#allocation2 + $0x1b9] sm:$0xff]
    %v508 = vld [vmem:[#allocation2 + $0x1c9] sm:$0xff]
    %v509 = vld [vmem:[#allocation2 + $0x1d1] sm:$0xff]
    %v510 = vld [vmem:[#allocation2 + $0x1e1] sm:$0xff]
    %v511 = vld [vmem:[#allocation2 + $0x1e9] sm:$0xff]
    %v512 = vld [vmem:[#allocation2 + $0x1f9] sm:$0xff]
    %v513 = vld [vmem:[#allocation2 + $0x201] sm:$0xff]
    %v514 = vld [vmem:[#allocation2 + $0x211] sm:$0xff]
    %v515 = vld [vmem:[#allocation2 + $0x219] sm:$0xff]
    %v516 = vld [vmem:[#allocation2 + $0x229] sm:$0xff]
    %v517 = vld [vmem:[#allocation2 + $0x231] sm:$0xff]
    %v518 = vld [vmem:[#allocation2 + $0x241] sm:$0xff]
    %v519 = vld [vmem:[#allocation2 + $0x249] sm:$0xff]
    %v520 = vld [vmem:[#allocation2 + $0x259] sm:$0xff]
    %v521 = vld [vmem:[#allocation2 + $0x261] sm:$0xff]
    %v522 = vld [vmem:[#allocation2 + $0x271] sm:$0xff]
    %v523 = vld [vmem:[#allocation2 + $0x279] sm:$0xff]
    %v524 = vld [vmem:[#allocation2 + $0x289] sm:$0xff]
    %v525 = vld [vmem:[#allocation2 + $0x291] sm:$0xff]
    %v526 = vld [vmem:[#allocation2 + $0x2a1] sm:$0xff]
    %v527 = vld [vmem:[#allocation2 + $0x2a9] sm:$0xff]
    %v528 = vld [vmem:[#allocation2 + $0x2b9] sm:$0xff]
    %v529 = vld [vmem:[#allocation2 + $0x2c1] sm:$0xff]
    %v530 = vld [vmem:[#allocation2 + $0x2d1] sm:$0xff]
    %v531 = vld [vmem:[#allocation2 + $0x2d9] sm:$0xff]
    %v532 = vld [vmem:[#allocation2 + $0x2e9] sm:$0xff]
    %v533 = vld [vmem:[#allocation2 + $0x2f1] sm:$0xff]
    %v534 = vld [vmem:[#allocation2 + $0x301] sm:$0xff]
    %v535 = vld [vmem:[#allocation2 + $0x309] sm:$0xff]
    %v536 = vld [vmem:[#allocation2 + $0x319] sm:$0xff]
    %v537 = vld [vmem:[#allocation2 + $0x321] sm:$0xff]
    %v538 = vlaneseq
    %v539 = vshrl.u32 %v538, 7
    %v540 = vsub.s32 1, %v539
    %v541 = vrot.slane %v276, %v540
    %v542 = vmul.f32 %v474, %v541
    %v543 = vmul.f32 %v475, %v541
    %v544 = vmul.f32 %v476, %v541
    %v545 = vmul.f32 %v477, %v541
    %v546 = vmul.f32 %v478, %v541
    %v547 = vmul.f32 %v479, %v541
    %v548 = vmul.f32 %v480, %v541
    %v549 = vmul.f32 %v481, %v541
    %v550 = vmul.f32 %v482, %v541
    %v551 = vmul.f32 %v483, %v541
    %v552 = vmul.f32 %v484, %v541
    %v553 = vmul.f32 %v485, %v541
    %v554 = vmul.f32 %v486, %v541
    %v555 = vmul.f32 %v487, %v541
    %v556 = vmul.f32 %v488, %v541
    %v557 = vmul.f32 %v489, %v541
    %v558 = vmul.f32 %v490, %v541
    %v559 = vmul.f32 %v491, %v541
    %v560 = vmul.f32 %v492, %v541
    %v561 = vmul.f32 %v493, %v541
    %v562 = vmul.f32 %v494, %v541
    %v563 = vmul.f32 %v495, %v541
    %v564 = vmul.f32 %v496, %v541
    %v565 = vmul.f32 %v497, %v541
    %v566 = vmul.f32 %v498, %v541
    %v567 = vmul.f32 %v499, %v541
    %v568 = vmul.f32 %v500, %v541
    %v569 = vmul.f32 %v501, %v541
    %v570 = vmul.f32 %v502, %v541
    %v571 = vmul.f32 %v503, %v541
    %v572 = vmul.f32 %v504, %v541
    %v573 = vmul.f32 %v505, %v541
    %v574 = vmul.f32 %v506, %v541
    %v575 = vmul.f32 %v507, %v541
    %v576 = vmul.f32 %v508, %v541
    %v577 = vmul.f32 %v509, %v541
    %v578 = vmul.f32 %v510, %v541
    %v579 = vmul.f32 %v511, %v541
    %v580 = vmul.f32 %v512, %v541
    %v581 = vmul.f32 %v513, %v541
    %v582 = vmul.f32 %v514, %v541
    %v583 = vmul.f32 %v515, %v541
    %v584 = vmul.f32 %v516, %v541
    %v585 = vmul.f32 %v517, %v541
    %v586 = vmul.f32 %v518, %v541
    %v587 = vmul.f32 %v519, %v541
    %v588 = vmul.f32 %v520, %v541
    %v589 = vmul.f32 %v521, %v541
    %v590 = vmul.f32 %v522, %v541
    %v591 = vmul.f32 %v523, %v541
    %v592 = vmul.f32 %v524, %v541
    %v593 = vmul.f32 %v525, %v541
    %v594 = vmul.f32 %v526, %v541
    %v595 = vmul.f32 %v527, %v541
    %v596 = vmul.f32 %v528, %v541
    %v597 = vmul.f32 %v529, %v541
    %v598 = vmul.f32 %v530, %v541
    %v599 = vmul.f32 %v531, %v541
    %v600 = vmul.f32 %v532, %v541
    %v601 = vmul.f32 %v533, %v541
    %v602 = vmul.f32 %v534, %v541
    %v603 = vmul.f32 %v535, %v541
    %v604 = vmul.f32 %v536, %v541
    %v605 = vmul.f32 %v537, %v541
    %v606 = vadd.f32 %v410, %v542
    %v607 = vadd.f32 %v411, %v543
    %v608 = vadd.f32 %v412, %v544
    %v609 = vadd.f32 %v413, %v545
    %v610 = vadd.f32 %v414, %v546
    %v611 = vadd.f32 %v415, %v547
    %v612 = vadd.f32 %v416, %v548
    %v613 = vadd.f32 %v417, %v549
    %v614 = vadd.f32 %v418, %v550
    %v615 = vadd.f32 %v419, %v551
    %v616 = vadd.f32 %v420, %v552
    %v617 = vadd.f32 %v421, %v553
    %v618 = vadd.f32 %v422, %v554
    %v619 = vadd.f32 %v423, %v555
    %v620 = vadd.f32 %v424, %v556
    %v621 = vadd.f32 %v425, %v557
    %v622 = vadd.f32 %v426, %v558
    %v623 = vadd.f32 %v427, %v559
    %v624 = vadd.f32 %v428, %v560
    %v625 = vadd.f32 %v429, %v561
    %v626 = vadd.f32 %v430, %v562
    %v627 = vadd.f32 %v431, %v563
    %v628 = vadd.f32 %v432, %v564
    %v629 = vadd.f32 %v433, %v565
    %v630 = vadd.f32 %v434, %v566
    %v631 = vadd.f32 %v435, %v567
    %v632 = vadd.f32 %v436, %v568
    %v633 = vadd.f32 %v437, %v569
    %v634 = vadd.f32 %v438, %v570
    %v635 = vadd.f32 %v439, %v571
    %v636 = vadd.f32 %v440, %v572
    %v637 = vadd.f32 %v441, %v573
    %v638 = vadd.f32 %v442, %v574
    %v639 = vadd.f32 %v443, %v575
    %v640 = vadd.f32 %v444, %v576
    %v641 = vadd.f32 %v445, %v577
    %v642 = vadd.f32 %v446, %v578
    %v643 = vadd.f32 %v447, %v579
    %v644 = vadd.f32 %v448, %v580
    %v645 = vadd.f32 %v449, %v581
    %v646 = vadd.f32 %v450, %v582
    %v647 = vadd.f32 %v451, %v583
    %v648 = vadd.f32 %v452, %v584
    %v649 = vadd.f32 %v453, %v585
    %v650 = vadd.f32 %v454, %v586
    %v651 = vadd.f32 %v455, %v587
    %v652 = vadd.f32 %v456, %v588
    %v653 = vadd.f32 %v457, %v589
    %v654 = vadd.f32 %v458, %v590
    %v655 = vadd.f32 %v459, %v591
    %v656 = vadd.f32 %v460, %v592
    %v657 = vadd.f32 %v461, %v593
    %v658 = vadd.f32 %v462, %v594
    %v659 = vadd.f32 %v463, %v595
    %v660 = vadd.f32 %v464, %v596
    %v661 = vadd.f32 %v465, %v597
    %v662 = vadd.f32 %v466, %v598
    %v663 = vadd.f32 %v467, %v599
    %v664 = vadd.f32 %v468, %v600
    %v665 = vadd.f32 %v469, %v601
    %v666 = vadd.f32 %v470, %v602
    %v667 = vadd.f32 %v471, %v603
    %v668 = vadd.f32 %v472, %v604
    %v669 = vadd.f32 %v473, %v605
    %v670 = vld [vmem:[#allocation2 + $0x2] sm:$0xff]
    %v671 = vld [vmem:[#allocation2 + $0xa] sm:$0xff]
    %v672 = vld [vmem:[#allocation2 + $0x1a] sm:$0xff]
    %v673 = vld [vmem:[#allocation2 + $0x22] sm:$0xff]
    %v674 = vld [vmem:[#allocation2 + $0x32] sm:$0xff]
    %v675 = vld [vmem:[#allocation2 + $0x3a] sm:$0xff]
    %v676 = vld [vmem:[#allocation2 + $0x4a] sm:$0xff]
    %v677 = vld [vmem:[#allocation2 + $0x52] sm:$0xff]
    %v678 = vld [vmem:[#allocation2 + $0x62] sm:$0xff]
    %v679 = vld [vmem:[#allocation2 + $0x6a] sm:$0xff]
    %v680 = vld [vmem:[#allocation2 + $0x7a] sm:$0xff]
    %v681 = vld [vmem:[#allocation2 + $0x82] sm:$0xff]
    %v682 = vld [vmem:[#allocation2 + $0x92] sm:$0xff]
    %v683 = vld [vmem:[#allocation2 + $0x9a] sm:$0xff]
    %v684 = vld [vmem:[#allocation2 + $0xaa] sm:$0xff]
    %v685 = vld [vmem:[#allocation2 + $0xb2] sm:$0xff]
    %v686 = vld [vmem:[#allocation2 + $0xc2] sm:$0xff]
    %v687 = vld [vmem:[#allocation2 + $0xca] sm:$0xff]
    %v688 = vld [vmem:[#allocation2 + $0xda] sm:$0xff]
    %v689 = vld [vmem:[#allocation2 + $0xe2] sm:$0xff]
    %v690 = vld [vmem:[#allocation2 + $0xf2] sm:$0xff]
    %v691 = vld [vmem:[#allocation2 + $0xfa] sm:$0xff]
    %v692 = vld [vmem:[#allocation2 + $0x10a] sm:$0xff]
    %v693 = vld [vmem:[#allocation2 + $0x112] sm:$0xff]
    %v694 = vld [vmem:[#allocation2 + $0x122] sm:$0xff]
    %v695 = vld [vmem:[#allocation2 + $0x12a] sm:$0xff]
    %v696 = vld [vmem:[#allocation2 + $0x13a] sm:$0xff]
    %v697 = vld [vmem:[#allocation2 + $0x142] sm:$0xff]
    %v698 = vld [vmem:[#allocation2 + $0x152] sm:$0xff]
    %v699 = vld [vmem:[#allocation2 + $0x15a] sm:$0xff]
    %v700 = vld [vmem:[#allocation2 + $0x16a] sm:$0xff]
    %v701 = vld [vmem:[#allocation2 + $0x172] sm:$0xff]
    %v702 = vld [vmem:[#allocation2 + $0x1b2] sm:$0xff]
    %v703 = vld [vmem:[#allocation2 + $0x1ba] sm:$0xff]
    %v704 = vld [vmem:[#allocation2 + $0x1ca] sm:$0xff]
    %v705 = vld [vmem:[#allocation2 + $0x1d2] sm:$0xff]
    %v706 = vld [vmem:[#allocation2 + $0x1e2] sm:$0xff]
    %v707 = vld [vmem:[#allocation2 + $0x1ea] sm:$0xff]
    %v708 = vld [vmem:[#allocation2 + $0x1fa] sm:$0xff]
    %v709 = vld [vmem:[#allocation2 + $0x202] sm:$0xff]
    %v710 = vld [vmem:[#allocation2 + $0x212] sm:$0xff]
    %v711 = vld [vmem:[#allocation2 + $0x21a] sm:$0xff]
    %v712 = vld [vmem:[#allocation2 + $0x22a] sm:$0xff]
    %v713 = vld [vmem:[#allocation2 + $0x232] sm:$0xff]
    %v714 = vld [vmem:[#allocation2 + $0x242] sm:$0xff]
    %v715 = vld [vmem:[#allocation2 + $0x24a] sm:$0xff]
    %v716 = vld [vmem:[#allocation2 + $0x25a] sm:$0xff]
    %v717 = vld [vmem:[#allocation2 + $0x262] sm:$0xff]
    %v718 = vld [vmem:[#allocation2 + $0x272] sm:$0xff]
    %v719 = vld [vmem:[#allocation2 + $0x27a] sm:$0xff]
    %v720 = vld [vmem:[#allocation2 + $0x28a] sm:$0xff]
    %v721 = vld [vmem:[#allocation2 + $0x292] sm:$0xff]
    %v722 = vld [vmem:[#allocation2 + $0x2a2] sm:$0xff]
    %v723 = vld [vmem:[#allocation2 + $0x2aa] sm:$0xff]
    %v724 = vld [vmem:[#allocation2 + $0x2ba] sm:$0xff]
    %v725 = vld [vmem:[#allocation2 + $0x2c2] sm:$0xff]
    %v726 = vld [vmem:[#allocation2 + $0x2d2] sm:$0xff]
    %v727 = vld [vmem:[#allocation2 + $0x2da] sm:$0xff]
    %v728 = vld [vmem:[#allocation2 + $0x2ea] sm:$0xff]
    %v729 = vld [vmem:[#allocation2 + $0x2f2] sm:$0xff]
    %v730 = vld [vmem:[#allocation2 + $0x302] sm:$0xff]
    %v731 = vld [vmem:[#allocation2 + $0x30a] sm:$0xff]
    %v732 = vld [vmem:[#allocation2 + $0x31a] sm:$0xff]
    %v733 = vld [vmem:[#allocation2 + $0x322] sm:$0xff]
    %v734 = vlaneseq
    %v735 = vshrl.u32 %v734, 7
    %v736 = vsub.s32 2, %v735
    %v737 = vrot.slane %v276, %v736
    %v738 = vmul.f32 %v670, %v737
    %v739 = vmul.f32 %v671, %v737
    %v740 = vmul.f32 %v672, %v737
    %v741 = vmul.f32 %v673, %v737
    %v742 = vmul.f32 %v674, %v737
    %v743 = vmul.f32 %v675, %v737
    %v744 = vmul.f32 %v676, %v737
    %v745 = vmul.f32 %v677, %v737
    %v746 = vmul.f32 %v678, %v737
    %v747 = vmul.f32 %v679, %v737
    %v748 = vmul.f32 %v680, %v737
    %v749 = vmul.f32 %v681, %v737
    %v750 = vmul.f32 %v682, %v737
    %v751 = vmul.f32 %v683, %v737
    %v752 = vmul.f32 %v684, %v737
    %v753 = vmul.f32 %v685, %v737
    %v754 = vmul.f32 %v686, %v737
    %v755 = vmul.f32 %v687, %v737
    %v756 = vmul.f32 %v688, %v737
    %v757 = vmul.f32 %v689, %v737
    %v758 = vmul.f32 %v690, %v737
    %v759 = vmul.f32 %v691, %v737
    %v760 = vmul.f32 %v692, %v737
    %v761 = vmul.f32 %v693, %v737
    %v762 = vmul.f32 %v694, %v737
    %v763 = vmul.f32 %v695, %v737
    %v764 = vmul.f32 %v696, %v737
    %v765 = vmul.f32 %v697, %v737
    %v766 = vmul.f32 %v698, %v737
    %v767 = vmul.f32 %v699, %v737
    %v768 = vmul.f32 %v700, %v737
    %v769 = vmul.f32 %v701, %v737
    %v770 = vmul.f32 %v702, %v737
    %v771 = vmul.f32 %v703, %v737
    %v772 = vmul.f32 %v704, %v737
    %v773 = vmul.f32 %v705, %v737
    %v774 = vmul.f32 %v706, %v737
    %v775 = vmul.f32 %v707, %v737
    %v776 = vmul.f32 %v708, %v737
    %v777 = vmul.f32 %v709, %v737
    %v778 = vmul.f32 %v710, %v737
    %v779 = vmul.f32 %v711, %v737
    %v780 = vmul.f32 %v712, %v737
    %v781 = vmul.f32 %v713, %v737
    %v782 = vmul.f32 %v714, %v737
    %v783 = vmul.f32 %v715, %v737
    %v784 = vmul.f32 %v716, %v737
    %v785 = vmul.f32 %v717, %v737
    %v786 = vmul.f32 %v718, %v737
    %v787 = vmul.f32 %v719, %v737
    %v788 = vmul.f32 %v720, %v737
    %v789 = vmul.f32 %v721, %v737
    %v790 = vmul.f32 %v722, %v737
    %v791 = vmul.f32 %v723, %v737
    %v792 = vmul.f32 %v724, %v737
    %v793 = vmul.f32 %v725, %v737
    %v794 = vmul.f32 %v726, %v737
    %v795 = vmul.f32 %v727, %v737
    %v796 = vmul.f32 %v728, %v737
    %v797 = vmul.f32 %v729, %v737
    %v798 = vmul.f32 %v730, %v737
    %v799 = vmul.f32 %v731, %v737
    %v800 = vmul.f32 %v732, %v737
    %v801 = vmul.f32 %v733, %v737
    %v802 = vadd.f32 %v606, %v738
    %v803 = vadd.f32 %v607, %v739
    %v804 = vadd.f32 %v608, %v740
    %v805 = vadd.f32 %v609, %v741
    %v806 = vadd.f32 %v610, %v742
    %v807 = vadd.f32 %v611, %v743
    %v808 = vadd.f32 %v612, %v744
    %v809 = vadd.f32 %v613, %v745
    %v810 = vadd.f32 %v614, %v746
    %v811 = vadd.f32 %v615, %v747
    %v812 = vadd.f32 %v616, %v748
    %v813 = vadd.f32 %v617, %v749
    %v814 = vadd.f32 %v618, %v750
    %v815 = vadd.f32 %v619, %v751
    %v816 = vadd.f32 %v620, %v752
    %v817 = vadd.f32 %v621, %v753
    %v818 = vadd.f32 %v622, %v754
    %v819 = vadd.f32 %v623, %v755
    %v820 = vadd.f32 %v624, %v756
    %v821 = vadd.f32 %v625, %v757
    %v822 = vadd.f32 %v626, %v758
    %v823 = vadd.f32 %v627, %v759
    %v824 = vadd.f32 %v628, %v760
    %v825 = vadd.f32 %v629, %v761
    %v826 = vadd.f32 %v630, %v762
    %v827 = vadd.f32 %v631, %v763
    %v828 = vadd.f32 %v632, %v764
    %v829 = vadd.f32 %v633, %v765
    %v830 = vadd.f32 %v634, %v766
    %v831 = vadd.f32 %v635, %v767
    %v832 = vadd.f32 %v636, %v768
    %v833 = vadd.f32 %v637, %v769
    %v834 = vadd.f32 %v638, %v770
    %v835 = vadd.f32 %v639, %v771
    %v836 = vadd.f32 %v640, %v772
    %v837 = vadd.f32 %v641, %v773
    %v838 = vadd.f32 %v642, %v774
    %v839 = vadd.f32 %v643, %v775
    %v840 = vadd.f32 %v644, %v776
    %v841 = vadd.f32 %v645, %v777
    %v842 = vadd.f32 %v646, %v778
    %v843 = vadd.f32 %v647, %v779
    %v844 = vadd.f32 %v648, %v780
    %v845 = vadd.f32 %v649, %v781
    %v846 = vadd.f32 %v650, %v782
    %v847 = vadd.f32 %v651, %v783
    %v848 = vadd.f32 %v652, %v784
    %v849 = vadd.f32 %v653, %v785
    %v850 = vadd.f32 %v654, %v786
    %v851 = vadd.f32 %v655, %v787
    %v852 = vadd.f32 %v656, %v788
    %v853 = vadd.f32 %v657, %v789
    %v854 = vadd.f32 %v658, %v790
    %v855 = vadd.f32 %v659, %v791
    %v856 = vadd.f32 %v660, %v792
    %v857 = vadd.f32 %v661, %v793
    %v858 = vadd.f32 %v662, %v794
    %v859 = vadd.f32 %v663, %v795
    %v860 = vadd.f32 %v664, %v796
    %v861 = vadd.f32 %v665, %v797
    %v862 = vadd.f32 %v666, %v798
    %v863 = vadd.f32 %v667, %v799
    %v864 = vadd.f32 %v668, %v800
    %v865 = vadd.f32 %v669, %v801
    %v866 = vld [vmem:[%s211] sm:$0xff]
    %v867 = vld [vmem:[%s211 + $0x8] sm:$0xff]
    %v868 = vld [vmem:[%s211 + $0x18] sm:$0xff]
    %v869 = vld [vmem:[%s211 + $0x20] sm:$0xff]
    %v870 = vld [vmem:[%s211 + $0x30] sm:$0xff]
    %v871 = vld [vmem:[%s211 + $0x38] sm:$0xff]
    %v872 = vld [vmem:[%s211 + $0x48] sm:$0xff]
    %v873 = vld [vmem:[%s211 + $0x50] sm:$0xff]
    %v874 = vld [vmem:[%s211 + $0x60] sm:$0xff]
    %v875 = vld [vmem:[%s211 + $0x68] sm:$0xff]
    %v876 = vld [vmem:[%s211 + $0x78] sm:$0xff]
    %v877 = vld [vmem:[%s211 + $0x80] sm:$0xff]
    %v878 = vld [vmem:[%s211 + $0x90] sm:$0xff]
    %v879 = vld [vmem:[%s211 + $0x98] sm:$0xff]
    %v880 = vld [vmem:[%s211 + $0xa8] sm:$0xff]
    %v881 = vld [vmem:[%s211 + $0xb0] sm:$0xff]
    %v882 = vld [vmem:[%s211 + $0xc0] sm:$0xff]
    %v883 = vld [vmem:[%s211 + $0xc8] sm:$0xff]
    %v884 = vld [vmem:[%s211 + $0xd8] sm:$0xff]
    %v885 = vld [vmem:[%s211 + $0xe0] sm:$0xff]
    %v886 = vld [vmem:[%s211 + $0xf0] sm:$0xff]
    %v887 = vld [vmem:[%s211 + $0xf8] sm:$0xff]
    %v888 = vld [vmem:[%s211 + $0x108] sm:$0xff]
    %v889 = vld [vmem:[%s211 + $0x110] sm:$0xff]
    %v890 = vld [vmem:[%s211 + $0x120] sm:$0xff]
    %v891 = vld [vmem:[%s211 + $0x128] sm:$0xff]
    %v892 = vld [vmem:[%s211 + $0x138] sm:$0xff]
    %v893 = vld [vmem:[%s211 + $0x140] sm:$0xff]
    %v894 = vld [vmem:[%s211 + $0x150] sm:$0xff]
    %v895 = vld [vmem:[%s211 + $0x158] sm:$0xff]
    %v896 = vld [vmem:[%s211 + $0x168] sm:$0xff]
    %v897 = vld [vmem:[%s211 + $0x170] sm:$0xff]
    %v898 = vld [vmem:[%s211 + $0x1b0] sm:$0xff]
    %v899 = vld [vmem:[%s211 + $0x1b8] sm:$0xff]
    %v900 = vld [vmem:[%s211 + $0x1c8] sm:$0xff]
    %v901 = vld [vmem:[%s211 + $0x1d0] sm:$0xff]
    %v902 = vld [vmem:[%s211 + $0x1e0] sm:$0xff]
    %v903 = vld [vmem:[%s211 + $0x1e8] sm:$0xff]
    %v904 = vld [vmem:[%s211 + $0x1f8] sm:$0xff]
    %v905 = vld [vmem:[%s211 + $0x200] sm:$0xff]
    %v906 = vld [vmem:[%s211 + $0x210] sm:$0xff]
    %v907 = vld [vmem:[%s211 + $0x218] sm:$0xff]
    %v908 = vld [vmem:[%s211 + $0x228] sm:$0xff]
    %v909 = vld [vmem:[%s211 + $0x230] sm:$0xff]
    %v910 = vld [vmem:[%s211 + $0x240] sm:$0xff]
    %v911 = vld [vmem:[%s211 + $0x248] sm:$0xff]
    %v912 = vld [vmem:[%s211 + $0x258] sm:$0xff]
    %v913 = vld [vmem:[%s211 + $0x260] sm:$0xff]
    %v914 = vld [vmem:[%s211 + $0x270] sm:$0xff]
    %v915 = vld [vmem:[%s211 + $0x278] sm:$0xff]
    %v916 = vld [vmem:[%s211 + $0x288] sm:$0xff]
    %v917 = vld [vmem:[%s211 + $0x290] sm:$0xff]
    %v918 = vld [vmem:[%s211 + $0x2a0] sm:$0xff]
    %v919 = vld [vmem:[%s211 + $0x2a8] sm:$0xff]
    %v920 = vld [vmem:[%s211 + $0x2b8] sm:$0xff]
    %v921 = vld [vmem:[%s211 + $0x2c0] sm:$0xff]
    %v922 = vld [vmem:[%s211 + $0x2d0] sm:$0xff]
    %v923 = vld [vmem:[%s211 + $0x2d8] sm:$0xff]
    %v924 = vld [vmem:[%s211 + $0x2e8] sm:$0xff]
    %v925 = vld [vmem:[%s211 + $0x2f0] sm:$0xff]
    %v926 = vld [vmem:[%s211 + $0x300] sm:$0xff]
    %v927 = vld [vmem:[%s211 + $0x308] sm:$0xff]
    %v928 = vld [vmem:[%s211 + $0x318] sm:$0xff]
    %v929 = vld [vmem:[%s211 + $0x320] sm:$0xff]
    %v930 = vlaneseq
    %v931 = vshrl.u32 %v930, 7
    %v932 = vsub.s32 3, %v931
    %v933 = vrot.slane %v276, %v932
    %v934 = vmul.f32 %v866, %v933
    %v935 = vmul.f32 %v867, %v933
    %v936 = vmul.f32 %v868, %v933
    %v937 = vmul.f32 %v869, %v933
    %v938 = vmul.f32 %v870, %v933
    %v939 = vmul.f32 %v871, %v933
    %v940 = vmul.f32 %v872, %v933
    %v941 = vmul.f32 %v873, %v933
    %v942 = vmul.f32 %v874, %v933
    %v943 = vmul.f32 %v875, %v933
    %v944 = vmul.f32 %v876, %v933
    %v945 = vmul.f32 %v877, %v933
    %v946 = vmul.f32 %v878, %v933
    %v947 = vmul.f32 %v879, %v933
    %v948 = vmul.f32 %v880, %v933
    %v949 = vmul.f32 %v881, %v933
    %v950 = vmul.f32 %v882, %v933
    %v951 = vmul.f32 %v883, %v933
    %v952 = vmul.f32 %v884, %v933
    %v953 = vmul.f32 %v885, %v933
    %v954 = vmul.f32 %v886, %v933
    %v955 = vmul.f32 %v887, %v933
    %v956 = vmul.f32 %v888, %v933
    %v957 = vmul.f32 %v889, %v933
    %v958 = vmul.f32 %v890, %v933
    %v959 = vmul.f32 %v891, %v933
    %v960 = vmul.f32 %v892, %v933
    %v961 = vmul.f32 %v893, %v933
    %v962 = vmul.f32 %v894, %v933
    %v963 = vmul.f32 %v895, %v933
    %v964 = vmul.f32 %v896, %v933
    %v965 = vmul.f32 %v897, %v933
    %v966 = vmul.f32 %v898, %v933
    %v967 = vmul.f32 %v899, %v933
    %v968 = vmul.f32 %v900, %v933
    %v969 = vmul.f32 %v901, %v933
    %v970 = vmul.f32 %v902, %v933
    %v971 = vmul.f32 %v903, %v933
    %v972 = vmul.f32 %v904, %v933
    %v973 = vmul.f32 %v905, %v933
    %v974 = vmul.f32 %v906, %v933
    %v975 = vmul.f32 %v907, %v933
    %v976 = vmul.f32 %v908, %v933
    %v977 = vmul.f32 %v909, %v933
    %v978 = vmul.f32 %v910, %v933
    %v979 = vmul.f32 %v911, %v933
    %v980 = vmul.f32 %v912, %v933
    %v981 = vmul.f32 %v913, %v933
    %v982 = vmul.f32 %v914, %v933
    %v983 = vmul.f32 %v915, %v933
    %v984 = vmul.f32 %v916, %v933
    %v985 = vmul.f32 %v917, %v933
    %v986 = vmul.f32 %v918, %v933
    %v987 = vmul.f32 %v919, %v933
    %v988 = vmul.f32 %v920, %v933
    %v989 = vmul.f32 %v921, %v933
    %v990 = vmul.f32 %v922, %v933
    %v991 = vmul.f32 %v923, %v933
    %v992 = vmul.f32 %v924, %v933
    %v993 = vmul.f32 %v925, %v933
    %v994 = vmul.f32 %v926, %v933
    %v995 = vmul.f32 %v927, %v933
    %v996 = vmul.f32 %v928, %v933
    %v997 = vmul.f32 %v929, %v933
    %v998 = vadd.f32 %v802, %v934
    %v999 = vadd.f32 %v803, %v935
    %v1000 = vadd.f32 %v804, %v936
    %v1001 = vadd.f32 %v805, %v937
    %v1002 = vadd.f32 %v806, %v938
    %v1003 = vadd.f32 %v807, %v939
    %v1004 = vadd.f32 %v808, %v940
    %v1005 = vadd.f32 %v809, %v941
    %v1006 = vadd.f32 %v810, %v942
    %v1007 = vadd.f32 %v811, %v943
    %v1008 = vadd.f32 %v812, %v944
    %v1009 = vadd.f32 %v813, %v945
    %v1010 = vadd.f32 %v814, %v946
    %v1011 = vadd.f32 %v815, %v947
    %v1012 = vadd.f32 %v816, %v948
    %v1013 = vadd.f32 %v817, %v949
    %v1014 = vadd.f32 %v818, %v950
    %v1015 = vadd.f32 %v819, %v951
    %v1016 = vadd.f32 %v820, %v952
    %v1017 = vadd.f32 %v821, %v953
    %v1018 = vadd.f32 %v822, %v954
    %v1019 = vadd.f32 %v823, %v955
    %v1020 = vadd.f32 %v824, %v956
    %v1021 = vadd.f32 %v825, %v957
    %v1022 = vadd.f32 %v826, %v958
    %v1023 = vadd.f32 %v827, %v959
    %v1024 = vadd.f32 %v828, %v960
    %v1025 = vadd.f32 %v829, %v961
    %v1026 = vadd.f32 %v830, %v962
    %v1027 = vadd.f32 %v831, %v963
    %v1028 = vadd.f32 %v832, %v964
    %v1029 = vadd.f32 %v833, %v965
    %v1030 = vadd.f32 %v834, %v966
    %v1031 = vadd.f32 %v835, %v967
    %v1032 = vadd.f32 %v836, %v968
    %v1033 = vadd.f32 %v837, %v969
    %v1034 = vadd.f32 %v838, %v970
    %v1035 = vadd.f32 %v839, %v971
    %v1036 = vadd.f32 %v840, %v972
    %v1037 = vadd.f32 %v841, %v973
    %v1038 = vadd.f32 %v842, %v974
    %v1039 = vadd.f32 %v843, %v975
    %v1040 = vadd.f32 %v844, %v976
    %v1041 = vadd.f32 %v845, %v977
    %v1042 = vadd.f32 %v846, %v978
    %v1043 = vadd.f32 %v847, %v979
    %v1044 = vadd.f32 %v848, %v980
    %v1045 = vadd.f32 %v849, %v981
    %v1046 = vadd.f32 %v850, %v982
    %v1047 = vadd.f32 %v851, %v983
    %v1048 = vadd.f32 %v852, %v984
    %v1049 = vadd.f32 %v853, %v985
    %v1050 = vadd.f32 %v854, %v986
    %v1051 = vadd.f32 %v855, %v987
    %v1052 = vadd.f32 %v856, %v988
    %v1053 = vadd.f32 %v857, %v989
    %v1054 = vadd.f32 %v858, %v990
    %v1055 = vadd.f32 %v859, %v991
    %v1056 = vadd.f32 %v860, %v992
    %v1057 = vadd.f32 %v861, %v993
    %v1058 = vadd.f32 %v862, %v994
    %v1059 = vadd.f32 %v863, %v995
    %v1060 = vadd.f32 %v864, %v996
    %v1061 = vadd.f32 %v865, %v997
    %v1062 = vld [vmem:[%s211 + $0x1] sm:$0xff]
    %v1063 = vld [vmem:[%s211 + $0x9] sm:$0xff]
    %v1064 = vld [vmem:[%s211 + $0x19] sm:$0xff]
    %v1065 = vld [vmem:[%s211 + $0x21] sm:$0xff]
    %v1066 = vld [vmem:[%s211 + $0x31] sm:$0xff]
    %v1067 = vld [vmem:[%s211 + $0x39] sm:$0xff]
    %v1068 = vld [vmem:[%s211 + $0x49] sm:$0xff]
    %v1069 = vld [vmem:[%s211 + $0x51] sm:$0xff]
    %v1070 = vld [vmem:[%s211 + $0x61] sm:$0xff]
    %v1071 = vld [vmem:[%s211 + $0x69] sm:$0xff]
    %v1072 = vld [vmem:[%s211 + $0x79] sm:$0xff]
    %v1073 = vld [vmem:[%s211 + $0x81] sm:$0xff]
    %v1074 = vld [vmem:[%s211 + $0x91] sm:$0xff]
    %v1075 = vld [vmem:[%s211 + $0x99] sm:$0xff]
    %v1076 = vld [vmem:[%s211 + $0xa9] sm:$0xff]
    %v1077 = vld [vmem:[%s211 + $0xb1] sm:$0xff]
    %v1078 = vld [vmem:[%s211 + $0xc1] sm:$0xff]
    %v1079 = vld [vmem:[%s211 + $0xc9] sm:$0xff]
    %v1080 = vld [vmem:[%s211 + $0xd9] sm:$0xff]
    %v1081 = vld [vmem:[%s211 + $0xe1] sm:$0xff]
    %v1082 = vld [vmem:[%s211 + $0xf1] sm:$0xff]
    %v1083 = vld [vmem:[%s211 + $0xf9] sm:$0xff]
    %v1084 = vld [vmem:[%s211 + $0x109] sm:$0xff]
    %v1085 = vld [vmem:[%s211 + $0x111] sm:$0xff]
    %v1086 = vld [vmem:[%s211 + $0x121] sm:$0xff]
    %v1087 = vld [vmem:[%s211 + $0x129] sm:$0xff]
    %v1088 = vld [vmem:[%s211 + $0x139] sm:$0xff]
    %v1089 = vld [vmem:[%s211 + $0x141] sm:$0xff]
    %v1090 = vld [vmem:[%s211 + $0x151] sm:$0xff]
    %v1091 = vld [vmem:[%s211 + $0x159] sm:$0xff]
    %v1092 = vld [vmem:[%s211 + $0x169] sm:$0xff]
    %v1093 = vld [vmem:[%s211 + $0x171] sm:$0xff]
    %v1094 = vld [vmem:[%s211 + $0x1b1] sm:$0xff]
    %v1095 = vld [vmem:[%s211 + $0x1b9] sm:$0xff]
    %v1096 = vld [vmem:[%s211 + $0x1c9] sm:$0xff]
    %v1097 = vld [vmem:[%s211 + $0x1d1] sm:$0xff]
    %v1098 = vld [vmem:[%s211 + $0x1e1] sm:$0xff]
    %v1099 = vld [vmem:[%s211 + $0x1e9] sm:$0xff]
    %v1100 = vld [vmem:[%s211 + $0x1f9] sm:$0xff]
    %v1101 = vld [vmem:[%s211 + $0x201] sm:$0xff]
    %v1102 = vld [vmem:[%s211 + $0x211] sm:$0xff]
    %v1103 = vld [vmem:[%s211 + $0x219] sm:$0xff]
    %v1104 = vld [vmem:[%s211 + $0x229] sm:$0xff]
    %v1105 = vld [vmem:[%s211 + $0x231] sm:$0xff]
    %v1106 = vld [vmem:[%s211 + $0x241] sm:$0xff]
    %v1107 = vld [vmem:[%s211 + $0x249] sm:$0xff]
    %v1108 = vld [vmem:[%s211 + $0x259] sm:$0xff]
    %v1109 = vld [vmem:[%s211 + $0x261] sm:$0xff]
    %v1110 = vld [vmem:[%s211 + $0x271] sm:$0xff]
    %v1111 = vld [vmem:[%s211 + $0x279] sm:$0xff]
    %v1112 = vld [vmem:[%s211 + $0x289] sm:$0xff]
    %v1113 = vld [vmem:[%s211 + $0x291] sm:$0xff]
    %v1114 = vld [vmem:[%s211 + $0x2a1] sm:$0xff]
    %v1115 = vld [vmem:[%s211 + $0x2a9] sm:$0xff]
    %v1116 = vld [vmem:[%s211 + $0x2b9] sm:$0xff]
    %v1117 = vld [vmem:[%s211 + $0x2c1] sm:$0xff]
    %v1118 = vld [vmem:[%s211 + $0x2d1] sm:$0xff]
    %v1119 = vld [vmem:[%s211 + $0x2d9] sm:$0xff]
    %v1120 = vld [vmem:[%s211 + $0x2e9] sm:$0xff]
    %v1121 = vld [vmem:[%s211 + $0x2f1] sm:$0xff]
    %v1122 = vld [vmem:[%s211 + $0x301] sm:$0xff]
    %v1123 = vld [vmem:[%s211 + $0x309] sm:$0xff]
    %v1124 = vld [vmem:[%s211 + $0x319] sm:$0xff]
    %v1125 = vld [vmem:[%s211 + $0x321] sm:$0xff]
    %v1126 = vlaneseq
    %v1127 = vshrl.u32 %v1126, 7
    %v1128 = vsub.s32 4, %v1127
    %v1129 = vrot.slane %v276, %v1128
    %v1130 = vmul.f32 %v1062, %v1129
    %v1131 = vmul.f32 %v1063, %v1129
    %v1132 = vmul.f32 %v1064, %v1129
    %v1133 = vmul.f32 %v1065, %v1129
    %v1134 = vmul.f32 %v1066, %v1129
    %v1135 = vmul.f32 %v1067, %v1129
    %v1136 = vmul.f32 %v1068, %v1129
    %v1137 = vmul.f32 %v1069, %v1129
    %v1138 = vmul.f32 %v1070, %v1129
    %v1139 = vmul.f32 %v1071, %v1129
    %v1140 = vmul.f32 %v1072, %v1129
    %v1141 = vmul.f32 %v1073, %v1129
    %v1142 = vmul.f32 %v1074, %v1129
    %v1143 = vmul.f32 %v1075, %v1129
    %v1144 = vmul.f32 %v1076, %v1129
    %v1145 = vmul.f32 %v1077, %v1129
    %v1146 = vmul.f32 %v1078, %v1129
    %v1147 = vmul.f32 %v1079, %v1129
    %v1148 = vmul.f32 %v1080, %v1129
    %v1149 = vmul.f32 %v1081, %v1129
    %v1150 = vmul.f32 %v1082, %v1129
    %v1151 = vmul.f32 %v1083, %v1129
    %v1152 = vmul.f32 %v1084, %v1129
    %v1153 = vmul.f32 %v1085, %v1129
    %v1154 = vmul.f32 %v1086, %v1129
    %v1155 = vmul.f32 %v1087, %v1129
    %v1156 = vmul.f32 %v1088, %v1129
    %v1157 = vmul.f32 %v1089, %v1129
    %v1158 = vmul.f32 %v1090, %v1129
    %v1159 = vmul.f32 %v1091, %v1129
    %v1160 = vmul.f32 %v1092, %v1129
    %v1161 = vmul.f32 %v1093, %v1129
    %v1162 = vmul.f32 %v1094, %v1129
    %v1163 = vmul.f32 %v1095, %v1129
    %v1164 = vmul.f32 %v1096, %v1129
    %v1165 = vmul.f32 %v1097, %v1129
    %v1166 = vmul.f32 %v1098, %v1129
    %v1167 = vmul.f32 %v1099, %v1129
    %v1168 = vmul.f32 %v1100, %v1129
    %v1169 = vmul.f32 %v1101, %v1129
    %v1170 = vmul.f32 %v1102, %v1129
    %v1171 = vmul.f32 %v1103, %v1129
    %v1172 = vmul.f32 %v1104, %v1129
    %v1173 = vmul.f32 %v1105, %v1129
    %v1174 = vmul.f32 %v1106, %v1129
    %v1175 = vmul.f32 %v1107, %v1129
    %v1176 = vmul.f32 %v1108, %v1129
    %v1177 = vmul.f32 %v1109, %v1129
    %v1178 = vmul.f32 %v1110, %v1129
    %v1179 = vmul.f32 %v1111, %v1129
    %v1180 = vmul.f32 %v1112, %v1129
    %v1181 = vmul.f32 %v1113, %v1129
    %v1182 = vmul.f32 %v1114, %v1129
    %v1183 = vmul.f32 %v1115, %v1129
    %v1184 = vmul.f32 %v1116, %v1129
    %v1185 = vmul.f32 %v1117, %v1129
    %v1186 = vmul.f32 %v1118, %v1129
    %v1187 = vmul.f32 %v1119, %v1129
    %v1188 = vmul.f32 %v1120, %v1129
    %v1189 = vmul.f32 %v1121, %v1129
    %v1190 = vmul.f32 %v1122, %v1129
    %v1191 = vmul.f32 %v1123, %v1129
    %v1192 = vmul.f32 %v1124, %v1129
    %v1193 = vmul.f32 %v1125, %v1129
    %v1194 = vadd.f32 %v998, %v1130
    %v1195 = vadd.f32 %v999, %v1131
    %v1196 = vadd.f32 %v1000, %v1132
    %v1197 = vadd.f32 %v1001, %v1133
    %v1198 = vadd.f32 %v1002, %v1134
    %v1199 = vadd.f32 %v1003, %v1135
    %v1200 = vadd.f32 %v1004, %v1136
    %v1201 = vadd.f32 %v1005, %v1137
    %v1202 = vadd.f32 %v1006, %v1138
    %v1203 = vadd.f32 %v1007, %v1139
    %v1204 = vadd.f32 %v1008, %v1140
    %v1205 = vadd.f32 %v1009, %v1141
    %v1206 = vadd.f32 %v1010, %v1142
    %v1207 = vadd.f32 %v1011, %v1143
    %v1208 = vadd.f32 %v1012, %v1144
    %v1209 = vadd.f32 %v1013, %v1145
    %v1210 = vadd.f32 %v1014, %v1146
    %v1211 = vadd.f32 %v1015, %v1147
    %v1212 = vadd.f32 %v1016, %v1148
    %v1213 = vadd.f32 %v1017, %v1149
    %v1214 = vadd.f32 %v1018, %v1150
    %v1215 = vadd.f32 %v1019, %v1151
    %v1216 = vadd.f32 %v1020, %v1152
    %v1217 = vadd.f32 %v1021, %v1153
    %v1218 = vadd.f32 %v1022, %v1154
    %v1219 = vadd.f32 %v1023, %v1155
    %v1220 = vadd.f32 %v1024, %v1156
    %v1221 = vadd.f32 %v1025, %v1157
    %v1222 = vadd.f32 %v1026, %v1158
    %v1223 = vadd.f32 %v1027, %v1159
    %v1224 = vadd.f32 %v1028, %v1160
    %v1225 = vadd.f32 %v1029, %v1161
    %v1226 = vadd.f32 %v1030, %v1162
    %v1227 = vadd.f32 %v1031, %v1163
    %v1228 = vadd.f32 %v1032, %v1164
    %v1229 = vadd.f32 %v1033, %v1165
    %v1230 = vadd.f32 %v1034, %v1166
    %v1231 = vadd.f32 %v1035, %v1167
    %v1232 = vadd.f32 %v1036, %v1168
    %v1233 = vadd.f32 %v1037, %v1169
    %v1234 = vadd.f32 %v1038, %v1170
    %v1235 = vadd.f32 %v1039, %v1171
    %v1236 = vadd.f32 %v1040, %v1172
    %v1237 = vadd.f32 %v1041, %v1173
    %v1238 = vadd.f32 %v1042, %v1174
    %v1239 = vadd.f32 %v1043, %v1175
    %v1240 = vadd.f32 %v1044, %v1176
    %v1241 = vadd.f32 %v1045, %v1177
    %v1242 = vadd.f32 %v1046, %v1178
    %v1243 = vadd.f32 %v1047, %v1179
    %v1244 = vadd.f32 %v1048, %v1180
    %v1245 = vadd.f32 %v1049, %v1181
    %v1246 = vadd.f32 %v1050, %v1182
    %v1247 = vadd.f32 %v1051, %v1183
    %v1248 = vadd.f32 %v1052, %v1184
    %v1249 = vadd.f32 %v1053, %v1185
    %v1250 = vadd.f32 %v1054, %v1186
    %v1251 = vadd.f32 %v1055, %v1187
    %v1252 = vadd.f32 %v1056, %v1188
    %v1253 = vadd.f32 %v1057, %v1189
    %v1254 = vadd.f32 %v1058, %v1190
    %v1255 = vadd.f32 %v1059, %v1191
    %v1256 = vadd.f32 %v1060, %v1192
    %v1257 = vadd.f32 %v1061, %v1193
    %v1258 = vld [vmem:[%s211 + $0x2] sm:$0xff]
    %v1259 = vld [vmem:[%s211 + $0xa] sm:$0xff]
    %v1260 = vld [vmem:[%s211 + $0x1a] sm:$0xff]
    %v1261 = vld [vmem:[%s211 + $0x22] sm:$0xff]
    %v1262 = vld [vmem:[%s211 + $0x32] sm:$0xff]
    %v1263 = vld [vmem:[%s211 + $0x3a] sm:$0xff]
    %v1264 = vld [vmem:[%s211 + $0x4a] sm:$0xff]
    %v1265 = vld [vmem:[%s211 + $0x52] sm:$0xff]
    %v1266 = vld [vmem:[%s211 + $0x62] sm:$0xff]
    %v1267 = vld [vmem:[%s211 + $0x6a] sm:$0xff]
    %v1268 = vld [vmem:[%s211 + $0x7a] sm:$0xff]
    %v1269 = vld [vmem:[%s211 + $0x82] sm:$0xff]
    %v1270 = vld [vmem:[%s211 + $0x92] sm:$0xff]
    %v1271 = vld [vmem:[%s211 + $0x9a] sm:$0xff]
    %v1272 = vld [vmem:[%s211 + $0xaa] sm:$0xff]
    %v1273 = vld [vmem:[%s211 + $0xb2] sm:$0xff]
    %v1274 = vld [vmem:[%s211 + $0xc2] sm:$0xff]
    %v1275 = vld [vmem:[%s211 + $0xca] sm:$0xff]
    %v1276 = vld [vmem:[%s211 + $0xda] sm:$0xff]
    %v1277 = vld [vmem:[%s211 + $0xe2] sm:$0xff]
    %v1278 = vld [vmem:[%s211 + $0xf2] sm:$0xff]
    %v1279 = vld [vmem:[%s211 + $0xfa] sm:$0xff]
    %v1280 = vld [vmem:[%s211 + $0x10a] sm:$0xff]
    %v1281 = vld [vmem:[%s211 + $0x112] sm:$0xff]
    %v1282 = vld [vmem:[%s211 + $0x122] sm:$0xff]
    %v1283 = vld [vmem:[%s211 + $0x12a] sm:$0xff]
    %v1284 = vld [vmem:[%s211 + $0x13a] sm:$0xff]
    %v1285 = vld [vmem:[%s211 + $0x142] sm:$0xff]
    %v1286 = vld [vmem:[%s211 + $0x152] sm:$0xff]
    %v1287 = vld [vmem:[%s211 + $0x15a] sm:$0xff]
    %v1288 = vld [vmem:[%s211 + $0x16a] sm:$0xff]
    %v1289 = vld [vmem:[%s211 + $0x172] sm:$0xff]
    %v1290 = vld [vmem:[%s211 + $0x1b2] sm:$0xff]
    %v1291 = vld [vmem:[%s211 + $0x1ba] sm:$0xff]
    %v1292 = vld [vmem:[%s211 + $0x1ca] sm:$0xff]
    %v1293 = vld [vmem:[%s211 + $0x1d2] sm:$0xff]
    %v1294 = vld [vmem:[%s211 + $0x1e2] sm:$0xff]
    %v1295 = vld [vmem:[%s211 + $0x1ea] sm:$0xff]
    %v1296 = vld [vmem:[%s211 + $0x1fa] sm:$0xff]
    %v1297 = vld [vmem:[%s211 + $0x202] sm:$0xff]
    %v1298 = vld [vmem:[%s211 + $0x212] sm:$0xff]
    %v1299 = vld [vmem:[%s211 + $0x21a] sm:$0xff]
    %v1300 = vld [vmem:[%s211 + $0x22a] sm:$0xff]
    %v1301 = vld [vmem:[%s211 + $0x232] sm:$0xff]
    %v1302 = vld [vmem:[%s211 + $0x242] sm:$0xff]
    %v1303 = vld [vmem:[%s211 + $0x24a] sm:$0xff]
    %v1304 = vld [vmem:[%s211 + $0x25a] sm:$0xff]
    %v1305 = vld [vmem:[%s211 + $0x262] sm:$0xff]
    %v1306 = vld [vmem:[%s211 + $0x272] sm:$0xff]
    %v1307 = vld [vmem:[%s211 + $0x27a] sm:$0xff]
    %v1308 = vld [vmem:[%s211 + $0x28a] sm:$0xff]
    %v1309 = vld [vmem:[%s211 + $0x292] sm:$0xff]
    %v1310 = vld [vmem:[%s211 + $0x2a2] sm:$0xff]
    %v1311 = vld [vmem:[%s211 + $0x2aa] sm:$0xff]
    %v1312 = vld [vmem:[%s211 + $0x2ba] sm:$0xff]
    %v1313 = vld [vmem:[%s211 + $0x2c2] sm:$0xff]
    %v1314 = vld [vmem:[%s211 + $0x2d2] sm:$0xff]
    %v1315 = vld [vmem:[%s211 + $0x2da] sm:$0xff]
    %v1316 = vld [vmem:[%s211 + $0x2ea] sm:$0xff]
    %v1317 = vld [vmem:[%s211 + $0x2f2] sm:$0xff]
    %v1318 = vld [vmem:[%s211 + $0x302] sm:$0xff]
    %v1319 = vld [vmem:[%s211 + $0x30a] sm:$0xff]
    %v1320 = vld [vmem:[%s211 + $0x31a] sm:$0xff]
    %v1321 = vld [vmem:[%s211 + $0x322] sm:$0xff]
    %v1322 = vlaneseq
    %v1323 = vshrl.u32 %v1322, 7
    %v1324 = vsub.s32 5, %v1323
    %v1325 = vrot.slane %v276, %v1324
    %v1326 = vmul.f32 %v1258, %v1325
    %v1327 = vmul.f32 %v1259, %v1325
    %v1328 = vmul.f32 %v1260, %v1325
    %v1329 = vmul.f32 %v1261, %v1325
    %v1330 = vmul.f32 %v1262, %v1325
    %v1331 = vmul.f32 %v1263, %v1325
    %v1332 = vmul.f32 %v1264, %v1325
    %v1333 = vmul.f32 %v1265, %v1325
    %v1334 = vmul.f32 %v1266, %v1325
    %v1335 = vmul.f32 %v1267, %v1325
    %v1336 = vmul.f32 %v1268, %v1325
    %v1337 = vmul.f32 %v1269, %v1325
    %v1338 = vmul.f32 %v1270, %v1325
    %v1339 = vmul.f32 %v1271, %v1325
    %v1340 = vmul.f32 %v1272, %v1325
    %v1341 = vmul.f32 %v1273, %v1325
    %v1342 = vmul.f32 %v1274, %v1325
    %v1343 = vmul.f32 %v1275, %v1325
    %v1344 = vmul.f32 %v1276, %v1325
    %v1345 = vmul.f32 %v1277, %v1325
    %v1346 = vmul.f32 %v1278, %v1325
    %v1347 = vmul.f32 %v1279, %v1325
    %v1348 = vmul.f32 %v1280, %v1325
    %v1349 = vmul.f32 %v1281, %v1325
    %v1350 = vmul.f32 %v1282, %v1325
    %v1351 = vmul.f32 %v1283, %v1325
    %v1352 = vmul.f32 %v1284, %v1325
    %v1353 = vmul.f32 %v1285, %v1325
    %v1354 = vmul.f32 %v1286, %v1325
    %v1355 = vmul.f32 %v1287, %v1325
    %v1356 = vmul.f32 %v1288, %v1325
    %v1357 = vmul.f32 %v1289, %v1325
    %v1358 = vmul.f32 %v1290, %v1325
    %v1359 = vmul.f32 %v1291, %v1325
    %v1360 = vmul.f32 %v1292, %v1325
    %v1361 = vmul.f32 %v1293, %v1325
    %v1362 = vmul.f32 %v1294, %v1325
    %v1363 = vmul.f32 %v1295, %v1325
    %v1364 = vmul.f32 %v1296, %v1325
    %v1365 = vmul.f32 %v1297, %v1325
    %v1366 = vmul.f32 %v1298, %v1325
    %v1367 = vmul.f32 %v1299, %v1325
    %v1368 = vmul.f32 %v1300, %v1325
    %v1369 = vmul.f32 %v1301, %v1325
    %v1370 = vmul.f32 %v1302, %v1325
    %v1371 = vmul.f32 %v1303, %v1325
    %v1372 = vmul.f32 %v1304, %v1325
    %v1373 = vmul.f32 %v1305, %v1325
    %v1374 = vmul.f32 %v1306, %v1325
    %v1375 = vmul.f32 %v1307, %v1325
    %v1376 = vmul.f32 %v1308, %v1325
    %v1377 = vmul.f32 %v1309, %v1325
    %v1378 = vmul.f32 %v1310, %v1325
    %v1379 = vmul.f32 %v1311, %v1325
    %v1380 = vmul.f32 %v1312, %v1325
    %v1381 = vmul.f32 %v1313, %v1325
    %v1382 = vmul.f32 %v1314, %v1325
    %v1383 = vmul.f32 %v1315, %v1325
    %v1384 = vmul.f32 %v1316, %v1325
    %v1385 = vmul.f32 %v1317, %v1325
    %v1386 = vmul.f32 %v1318, %v1325
    %v1387 = vmul.f32 %v1319, %v1325
    %v1388 = vmul.f32 %v1320, %v1325
    %v1389 = vmul.f32 %v1321, %v1325
    %v1390 = vadd.f32 %v1194, %v1326
    %v1391 = vadd.f32 %v1195, %v1327
    %v1392 = vadd.f32 %v1196, %v1328
    %v1393 = vadd.f32 %v1197, %v1329
    %v1394 = vadd.f32 %v1198, %v1330
    %v1395 = vadd.f32 %v1199, %v1331
    %v1396 = vadd.f32 %v1200, %v1332
    %v1397 = vadd.f32 %v1201, %v1333
    %v1398 = vadd.f32 %v1202, %v1334
    %v1399 = vadd.f32 %v1203, %v1335
    %v1400 = vadd.f32 %v1204, %v1336
    %v1401 = vadd.f32 %v1205, %v1337
    %v1402 = vadd.f32 %v1206, %v1338
    %v1403 = vadd.f32 %v1207, %v1339
    %v1404 = vadd.f32 %v1208, %v1340
    %v1405 = vadd.f32 %v1209, %v1341
    %v1406 = vadd.f32 %v1210, %v1342
    %v1407 = vadd.f32 %v1211, %v1343
    %v1408 = vadd.f32 %v1212, %v1344
    %v1409 = vadd.f32 %v1213, %v1345
    %v1410 = vadd.f32 %v1214, %v1346
    %v1411 = vadd.f32 %v1215, %v1347
    %v1412 = vadd.f32 %v1216, %v1348
    %v1413 = vadd.f32 %v1217, %v1349
    %v1414 = vadd.f32 %v1218, %v1350
    %v1415 = vadd.f32 %v1219, %v1351
    %v1416 = vadd.f32 %v1220, %v1352
    %v1417 = vadd.f32 %v1221, %v1353
    %v1418 = vadd.f32 %v1222, %v1354
    %v1419 = vadd.f32 %v1223, %v1355
    %v1420 = vadd.f32 %v1224, %v1356
    %v1421 = vadd.f32 %v1225, %v1357
    %v1422 = vadd.f32 %v1226, %v1358
    %v1423 = vadd.f32 %v1227, %v1359
    %v1424 = vadd.f32 %v1228, %v1360
    %v1425 = vadd.f32 %v1229, %v1361
    %v1426 = vadd.f32 %v1230, %v1362
    %v1427 = vadd.f32 %v1231, %v1363
    %v1428 = vadd.f32 %v1232, %v1364
    %v1429 = vadd.f32 %v1233, %v1365
    %v1430 = vadd.f32 %v1234, %v1366
    %v1431 = vadd.f32 %v1235, %v1367
    %v1432 = vadd.f32 %v1236, %v1368
    %v1433 = vadd.f32 %v1237, %v1369
    %v1434 = vadd.f32 %v1238, %v1370
    %v1435 = vadd.f32 %v1239, %v1371
    %v1436 = vadd.f32 %v1240, %v1372
    %v1437 = vadd.f32 %v1241, %v1373
    %v1438 = vadd.f32 %v1242, %v1374
    %v1439 = vadd.f32 %v1243, %v1375
    %v1440 = vadd.f32 %v1244, %v1376
    %v1441 = vadd.f32 %v1245, %v1377
    %v1442 = vadd.f32 %v1246, %v1378
    %v1443 = vadd.f32 %v1247, %v1379
    %v1444 = vadd.f32 %v1248, %v1380
    %v1445 = vadd.f32 %v1249, %v1381
    %v1446 = vadd.f32 %v1250, %v1382
    %v1447 = vadd.f32 %v1251, %v1383
    %v1448 = vadd.f32 %v1252, %v1384
    %v1449 = vadd.f32 %v1253, %v1385
    %v1450 = vadd.f32 %v1254, %v1386
    %v1451 = vadd.f32 %v1255, %v1387
    %v1452 = vadd.f32 %v1256, %v1388
    %v1453 = vadd.f32 %v1257, %v1389
    %s1454 = scalar_lea.vmem [#allocation2], 48
    %v1455 = vld [vmem:[%s1454] sm:$0xff]
    %v1456 = vld [vmem:[%s1454 + $0x8] sm:$0xff]
    %v1457 = vld [vmem:[%s1454 + $0x18] sm:$0xff]
    %v1458 = vld [vmem:[%s1454 + $0x20] sm:$0xff]
    %v1459 = vld [vmem:[%s1454 + $0x30] sm:$0xff]
    %v1460 = vld [vmem:[%s1454 + $0x38] sm:$0xff]
    %v1461 = vld [vmem:[%s1454 + $0x48] sm:$0xff]
    %v1462 = vld [vmem:[%s1454 + $0x50] sm:$0xff]
    %v1463 = vld [vmem:[%s1454 + $0x60] sm:$0xff]
    %v1464 = vld [vmem:[%s1454 + $0x68] sm:$0xff]
    %v1465 = vld [vmem:[%s1454 + $0x78] sm:$0xff]
    %v1466 = vld [vmem:[%s1454 + $0x80] sm:$0xff]
    %v1467 = vld [vmem:[%s1454 + $0x90] sm:$0xff]
    %v1468 = vld [vmem:[%s1454 + $0x98] sm:$0xff]
    %v1469 = vld [vmem:[%s1454 + $0xa8] sm:$0xff]
    %v1470 = vld [vmem:[%s1454 + $0xb0] sm:$0xff]
    %v1471 = vld [vmem:[%s1454 + $0xc0] sm:$0xff]
    %v1472 = vld [vmem:[%s1454 + $0xc8] sm:$0xff]
    %v1473 = vld [vmem:[%s1454 + $0xd8] sm:$0xff]
    %v1474 = vld [vmem:[%s1454 + $0xe0] sm:$0xff]
    %v1475 = vld [vmem:[%s1454 + $0xf0] sm:$0xff]
    %v1476 = vld [vmem:[%s1454 + $0xf8] sm:$0xff]
    %v1477 = vld [vmem:[%s1454 + $0x108] sm:$0xff]
    %v1478 = vld [vmem:[%s1454 + $0x110] sm:$0xff]
    %v1479 = vld [vmem:[%s1454 + $0x120] sm:$0xff]
    %v1480 = vld [vmem:[%s1454 + $0x128] sm:$0xff]
    %v1481 = vld [vmem:[%s1454 + $0x138] sm:$0xff]
    %v1482 = vld [vmem:[%s1454 + $0x140] sm:$0xff]
    %v1483 = vld [vmem:[%s1454 + $0x150] sm:$0xff]
    %v1484 = vld [vmem:[%s1454 + $0x158] sm:$0xff]
    %v1485 = vld [vmem:[%s1454 + $0x168] sm:$0xff]
    %v1486 = vld [vmem:[%s1454 + $0x170] sm:$0xff]
    %v1487 = vld [vmem:[%s1454 + $0x1b0] sm:$0xff]
    %v1488 = vld [vmem:[%s1454 + $0x1b8] sm:$0xff]
    %v1489 = vld [vmem:[%s1454 + $0x1c8] sm:$0xff]
    %v1490 = vld [vmem:[%s1454 + $0x1d0] sm:$0xff]
    %v1491 = vld [vmem:[%s1454 + $0x1e0] sm:$0xff]
    %v1492 = vld [vmem:[%s1454 + $0x1e8] sm:$0xff]
    %v1493 = vld [vmem:[%s1454 + $0x1f8] sm:$0xff]
    %v1494 = vld [vmem:[%s1454 + $0x200] sm:$0xff]
    %v1495 = vld [vmem:[%s1454 + $0x210] sm:$0xff]
    %v1496 = vld [vmem:[%s1454 + $0x218] sm:$0xff]
    %v1497 = vld [vmem:[%s1454 + $0x228] sm:$0xff]
    %v1498 = vld [vmem:[%s1454 + $0x230] sm:$0xff]
    %v1499 = vld [vmem:[%s1454 + $0x240] sm:$0xff]
    %v1500 = vld [vmem:[%s1454 + $0x248] sm:$0xff]
    %v1501 = vld [vmem:[%s1454 + $0x258] sm:$0xff]
    %v1502 = vld [vmem:[%s1454 + $0x260] sm:$0xff]
    %v1503 = vld [vmem:[%s1454 + $0x270] sm:$0xff]
    %v1504 = vld [vmem:[%s1454 + $0x278] sm:$0xff]
    %v1505 = vld [vmem:[%s1454 + $0x288] sm:$0xff]
    %v1506 = vld [vmem:[%s1454 + $0x290] sm:$0xff]
    %v1507 = vld [vmem:[%s1454 + $0x2a0] sm:$0xff]
    %v1508 = vld [vmem:[%s1454 + $0x2a8] sm:$0xff]
    %v1509 = vld [vmem:[%s1454 + $0x2b8] sm:$0xff]
    %v1510 = vld [vmem:[%s1454 + $0x2c0] sm:$0xff]
    %v1511 = vld [vmem:[%s1454 + $0x2d0] sm:$0xff]
    %v1512 = vld [vmem:[%s1454 + $0x2d8] sm:$0xff]
    %v1513 = vld [vmem:[%s1454 + $0x2e8] sm:$0xff]
    %v1514 = vld [vmem:[%s1454 + $0x2f0] sm:$0xff]
    %v1515 = vld [vmem:[%s1454 + $0x300] sm:$0xff]
    %v1516 = vld [vmem:[%s1454 + $0x308] sm:$0xff]
    %v1517 = vld [vmem:[%s1454 + $0x318] sm:$0xff]
    %v1518 = vld [vmem:[%s1454 + $0x320] sm:$0xff]
    %v1519 = vlaneseq
    %v1520 = vshrl.u32 %v1519, 7
    %v1521 = vsub.s32 6, %v1520
    %v1522 = vrot.slane %v276, %v1521
    %v1523 = vmul.f32 %v1455, %v1522
    %v1524 = vmul.f32 %v1456, %v1522
    %v1525 = vmul.f32 %v1457, %v1522
    %v1526 = vmul.f32 %v1458, %v1522
    %v1527 = vmul.f32 %v1459, %v1522
    %v1528 = vmul.f32 %v1460, %v1522
    %v1529 = vmul.f32 %v1461, %v1522
    %v1530 = vmul.f32 %v1462, %v1522
    %v1531 = vmul.f32 %v1463, %v1522
    %v1532 = vmul.f32 %v1464, %v1522
    %v1533 = vmul.f32 %v1465, %v1522
    %v1534 = vmul.f32 %v1466, %v1522
    %v1535 = vmul.f32 %v1467, %v1522
    %v1536 = vmul.f32 %v1468, %v1522
    %v1537 = vmul.f32 %v1469, %v1522
    %v1538 = vmul.f32 %v1470, %v1522
    %v1539 = vmul.f32 %v1471, %v1522
    %v1540 = vmul.f32 %v1472, %v1522
    %v1541 = vmul.f32 %v1473, %v1522
    %v1542 = vmul.f32 %v1474, %v1522
    %v1543 = vmul.f32 %v1475, %v1522
    %v1544 = vmul.f32 %v1476, %v1522
    %v1545 = vmul.f32 %v1477, %v1522
    %v1546 = vmul.f32 %v1478, %v1522
    %v1547 = vmul.f32 %v1479, %v1522
    %v1548 = vmul.f32 %v1480, %v1522
    %v1549 = vmul.f32 %v1481, %v1522
    %v1550 = vmul.f32 %v1482, %v1522
    %v1551 = vmul.f32 %v1483, %v1522
    %v1552 = vmul.f32 %v1484, %v1522
    %v1553 = vmul.f32 %v1485, %v1522
    %v1554 = vmul.f32 %v1486, %v1522
    %v1555 = vmul.f32 %v1487, %v1522
    %v1556 = vmul.f32 %v1488, %v1522
    %v1557 = vmul.f32 %v1489, %v1522
    %v1558 = vmul.f32 %v1490, %v1522
    %v1559 = vmul.f32 %v1491, %v1522
    %v1560 = vmul.f32 %v1492, %v1522
    %v1561 = vmul.f32 %v1493, %v1522
    %v1562 = vmul.f32 %v1494, %v1522
    %v1563 = vmul.f32 %v1495, %v1522
    %v1564 = vmul.f32 %v1496, %v1522
    %v1565 = vmul.f32 %v1497, %v1522
    %v1566 = vmul.f32 %v1498, %v1522
    %v1567 = vmul.f32 %v1499, %v1522
    %v1568 = vmul.f32 %v1500, %v1522
    %v1569 = vmul.f32 %v1501, %v1522
    %v1570 = vmul.f32 %v1502, %v1522
    %v1571 = vmul.f32 %v1503, %v1522
    %v1572 = vmul.f32 %v1504, %v1522
    %v1573 = vmul.f32 %v1505, %v1522
    %v1574 = vmul.f32 %v1506, %v1522
    %v1575 = vmul.f32 %v1507, %v1522
    %v1576 = vmul.f32 %v1508, %v1522
    %v1577 = vmul.f32 %v1509, %v1522
    %v1578 = vmul.f32 %v1510, %v1522
    %v1579 = vmul.f32 %v1511, %v1522
    %v1580 = vmul.f32 %v1512, %v1522
    %v1581 = vmul.f32 %v1513, %v1522
    %v1582 = vmul.f32 %v1514, %v1522
    %v1583 = vmul.f32 %v1515, %v1522
    %v1584 = vmul.f32 %v1516, %v1522
    %v1585 = vmul.f32 %v1517, %v1522
    %v1586 = vmul.f32 %v1518, %v1522
    %v1587 = vadd.f32 %v1390, %v1523
    %v1588 = vadd.f32 %v1391, %v1524
    %v1589 = vadd.f32 %v1392, %v1525
    %v1590 = vadd.f32 %v1393, %v1526
    %v1591 = vadd.f32 %v1394, %v1527
    %v1592 = vadd.f32 %v1395, %v1528
    %v1593 = vadd.f32 %v1396, %v1529
    %v1594 = vadd.f32 %v1397, %v1530
    %v1595 = vadd.f32 %v1398, %v1531
    %v1596 = vadd.f32 %v1399, %v1532
    %v1597 = vadd.f32 %v1400, %v1533
    %v1598 = vadd.f32 %v1401, %v1534
    %v1599 = vadd.f32 %v1402, %v1535
    %v1600 = vadd.f32 %v1403, %v1536
    %v1601 = vadd.f32 %v1404, %v1537
    %v1602 = vadd.f32 %v1405, %v1538
    %v1603 = vadd.f32 %v1406, %v1539
    %v1604 = vadd.f32 %v1407, %v1540
    %v1605 = vadd.f32 %v1408, %v1541
    %v1606 = vadd.f32 %v1409, %v1542
    %v1607 = vadd.f32 %v1410, %v1543
    %v1608 = vadd.f32 %v1411, %v1544
    %v1609 = vadd.f32 %v1412, %v1545
    %v1610 = vadd.f32 %v1413, %v1546
    %v1611 = vadd.f32 %v1414, %v1547
    %v1612 = vadd.f32 %v1415, %v1548
    %v1613 = vadd.f32 %v1416, %v1549
    %v1614 = vadd.f32 %v1417, %v1550
    %v1615 = vadd.f32 %v1418, %v1551
    %v1616 = vadd.f32 %v1419, %v1552
    %v1617 = vadd.f32 %v1420, %v1553
    %v1618 = vadd.f32 %v1421, %v1554
    %v1619 = vadd.f32 %v1422, %v1555
    %v1620 = vadd.f32 %v1423, %v1556
    %v1621 = vadd.f32 %v1424, %v1557
    %v1622 = vadd.f32 %v1425, %v1558
    %v1623 = vadd.f32 %v1426, %v1559
    %v1624 = vadd.f32 %v1427, %v1560
    %v1625 = vadd.f32 %v1428, %v1561
    %v1626 = vadd.f32 %v1429, %v1562
    %v1627 = vadd.f32 %v1430, %v1563
    %v1628 = vadd.f32 %v1431, %v1564
    %v1629 = vadd.f32 %v1432, %v1565
    %v1630 = vadd.f32 %v1433, %v1566
    %v1631 = vadd.f32 %v1434, %v1567
    %v1632 = vadd.f32 %v1435, %v1568
    %v1633 = vadd.f32 %v1436, %v1569
    %v1634 = vadd.f32 %v1437, %v1570
    %v1635 = vadd.f32 %v1438, %v1571
    %v1636 = vadd.f32 %v1439, %v1572
    %v1637 = vadd.f32 %v1440, %v1573
    %v1638 = vadd.f32 %v1441, %v1574
    %v1639 = vadd.f32 %v1442, %v1575
    %v1640 = vadd.f32 %v1443, %v1576
    %v1641 = vadd.f32 %v1444, %v1577
    %v1642 = vadd.f32 %v1445, %v1578
    %v1643 = vadd.f32 %v1446, %v1579
    %v1644 = vadd.f32 %v1447, %v1580
    %v1645 = vadd.f32 %v1448, %v1581
    %v1646 = vadd.f32 %v1449, %v1582
    %v1647 = vadd.f32 %v1450, %v1583
    %v1648 = vadd.f32 %v1451, %v1584
    %v1649 = vadd.f32 %v1452, %v1585
    %v1650 = vadd.f32 %v1453, %v1586
    %v1651 = vld [vmem:[%s1454 + $0x1] sm:$0xff]
    %v1652 = vld [vmem:[%s1454 + $0x9] sm:$0xff]
    %v1653 = vld [vmem:[%s1454 + $0x19] sm:$0xff]
    %v1654 = vld [vmem:[%s1454 + $0x21] sm:$0xff]
    %v1655 = vld [vmem:[%s1454 + $0x31] sm:$0xff]
    %v1656 = vld [vmem:[%s1454 + $0x39] sm:$0xff]
    %v1657 = vld [vmem:[%s1454 + $0x49] sm:$0xff]
    %v1658 = vld [vmem:[%s1454 + $0x51] sm:$0xff]
    %v1659 = vld [vmem:[%s1454 + $0x61] sm:$0xff]
    %v1660 = vld [vmem:[%s1454 + $0x69] sm:$0xff]
    %v1661 = vld [vmem:[%s1454 + $0x79] sm:$0xff]
    %v1662 = vld [vmem:[%s1454 + $0x81] sm:$0xff]
    %v1663 = vld [vmem:[%s1454 + $0x91] sm:$0xff]
    %v1664 = vld [vmem:[%s1454 + $0x99] sm:$0xff]
    %v1665 = vld [vmem:[%s1454 + $0xa9] sm:$0xff]
    %v1666 = vld [vmem:[%s1454 + $0xb1] sm:$0xff]
    %v1667 = vld [vmem:[%s1454 + $0xc1] sm:$0xff]
    %v1668 = vld [vmem:[%s1454 + $0xc9] sm:$0xff]
    %v1669 = vld [vmem:[%s1454 + $0xd9] sm:$0xff]
    %v1670 = vld [vmem:[%s1454 + $0xe1] sm:$0xff]
    %v1671 = vld [vmem:[%s1454 + $0xf1] sm:$0xff]
    %v1672 = vld [vmem:[%s1454 + $0xf9] sm:$0xff]
    %v1673 = vld [vmem:[%s1454 + $0x109] sm:$0xff]
    %v1674 = vld [vmem:[%s1454 + $0x111] sm:$0xff]
    %v1675 = vld [vmem:[%s1454 + $0x121] sm:$0xff]
    %v1676 = vld [vmem:[%s1454 + $0x129] sm:$0xff]
    %v1677 = vld [vmem:[%s1454 + $0x139] sm:$0xff]
    %v1678 = vld [vmem:[%s1454 + $0x141] sm:$0xff]
    %v1679 = vld [vmem:[%s1454 + $0x151] sm:$0xff]
    %v1680 = vld [vmem:[%s1454 + $0x159] sm:$0xff]
    %v1681 = vld [vmem:[%s1454 + $0x169] sm:$0xff]
    %v1682 = vld [vmem:[%s1454 + $0x171] sm:$0xff]
    %v1683 = vld [vmem:[%s1454 + $0x1b1] sm:$0xff]
    %v1684 = vld [vmem:[%s1454 + $0x1b9] sm:$0xff]
    %v1685 = vld [vmem:[%s1454 + $0x1c9] sm:$0xff]
    %v1686 = vld [vmem:[%s1454 + $0x1d1] sm:$0xff]
    %v1687 = vld [vmem:[%s1454 + $0x1e1] sm:$0xff]
    %v1688 = vld [vmem:[%s1454 + $0x1e9] sm:$0xff]
    %v1689 = vld [vmem:[%s1454 + $0x1f9] sm:$0xff]
    %v1690 = vld [vmem:[%s1454 + $0x201] sm:$0xff]
    %v1691 = vld [vmem:[%s1454 + $0x211] sm:$0xff]
    %v1692 = vld [vmem:[%s1454 + $0x219] sm:$0xff]
    %v1693 = vld [vmem:[%s1454 + $0x229] sm:$0xff]
    %v1694 = vld [vmem:[%s1454 + $0x231] sm:$0xff]
    %v1695 = vld [vmem:[%s1454 + $0x241] sm:$0xff]
    %v1696 = vld [vmem:[%s1454 + $0x249] sm:$0xff]
    %v1697 = vld [vmem:[%s1454 + $0x259] sm:$0xff]
    %v1698 = vld [vmem:[%s1454 + $0x261] sm:$0xff]
    %v1699 = vld [vmem:[%s1454 + $0x271] sm:$0xff]
    %v1700 = vld [vmem:[%s1454 + $0x279] sm:$0xff]
    %v1701 = vld [vmem:[%s1454 + $0x289] sm:$0xff]
    %v1702 = vld [vmem:[%s1454 + $0x291] sm:$0xff]
    %v1703 = vld [vmem:[%s1454 + $0x2a1] sm:$0xff]
    %v1704 = vld [vmem:[%s1454 + $0x2a9] sm:$0xff]
    %v1705 = vld [vmem:[%s1454 + $0x2b9] sm:$0xff]
    %v1706 = vld [vmem:[%s1454 + $0x2c1] sm:$0xff]
    %v1707 = vld [vmem:[%s1454 + $0x2d1] sm:$0xff]
    %v1708 = vld [vmem:[%s1454 + $0x2d9] sm:$0xff]
    %v1709 = vld [vmem:[%s1454 + $0x2e9] sm:$0xff]
    %v1710 = vld [vmem:[%s1454 + $0x2f1] sm:$0xff]
    %v1711 = vld [vmem:[%s1454 + $0x301] sm:$0xff]
    %v1712 = vld [vmem:[%s1454 + $0x309] sm:$0xff]
    %v1713 = vld [vmem:[%s1454 + $0x319] sm:$0xff]
    %v1714 = vld [vmem:[%s1454 + $0x321] sm:$0xff]
    %v1715 = vlaneseq
    %v1716 = vshrl.u32 %v1715, 7
    %v1717 = vsub.s32 7, %v1716
    %v1718 = vrot.slane %v276, %v1717
    %v1719 = vmul.f32 %v1651, %v1718
    %v1720 = vmul.f32 %v1652, %v1718
    %v1721 = vmul.f32 %v1653, %v1718
    %v1722 = vmul.f32 %v1654, %v1718
    %v1723 = vmul.f32 %v1655, %v1718
    %v1724 = vmul.f32 %v1656, %v1718
    %v1725 = vmul.f32 %v1657, %v1718
    %v1726 = vmul.f32 %v1658, %v1718
    %v1727 = vmul.f32 %v1659, %v1718
    %v1728 = vmul.f32 %v1660, %v1718
    %v1729 = vmul.f32 %v1661, %v1718
    %v1730 = vmul.f32 %v1662, %v1718
    %v1731 = vmul.f32 %v1663, %v1718
    %v1732 = vmul.f32 %v1664, %v1718
    %v1733 = vmul.f32 %v1665, %v1718
    %v1734 = vmul.f32 %v1666, %v1718
    %v1735 = vmul.f32 %v1667, %v1718
    %v1736 = vmul.f32 %v1668, %v1718
    %v1737 = vmul.f32 %v1669, %v1718
    %v1738 = vmul.f32 %v1670, %v1718
    %v1739 = vmul.f32 %v1671, %v1718
    %v1740 = vmul.f32 %v1672, %v1718
    %v1741 = vmul.f32 %v1673, %v1718
    %v1742 = vmul.f32 %v1674, %v1718
    %v1743 = vmul.f32 %v1675, %v1718
    %v1744 = vmul.f32 %v1676, %v1718
    %v1745 = vmul.f32 %v1677, %v1718
    %v1746 = vmul.f32 %v1678, %v1718
    %v1747 = vmul.f32 %v1679, %v1718
    %v1748 = vmul.f32 %v1680, %v1718
    %v1749 = vmul.f32 %v1681, %v1718
    %v1750 = vmul.f32 %v1682, %v1718
    %v1751 = vmul.f32 %v1683, %v1718
    %v1752 = vmul.f32 %v1684, %v1718
    %v1753 = vmul.f32 %v1685, %v1718
    %v1754 = vmul.f32 %v1686, %v1718
    %v1755 = vmul.f32 %v1687, %v1718
    %v1756 = vmul.f32 %v1688, %v1718
    %v1757 = vmul.f32 %v1689, %v1718
    %v1758 = vmul.f32 %v1690, %v1718
    %v1759 = vmul.f32 %v1691, %v1718
    %v1760 = vmul.f32 %v1692, %v1718
    %v1761 = vmul.f32 %v1693, %v1718
    %v1762 = vmul.f32 %v1694, %v1718
    %v1763 = vmul.f32 %v1695, %v1718
    %v1764 = vmul.f32 %v1696, %v1718
    %v1765 = vmul.f32 %v1697, %v1718
    %v1766 = vmul.f32 %v1698, %v1718
    %v1767 = vmul.f32 %v1699, %v1718
    %v1768 = vmul.f32 %v1700, %v1718
    %v1769 = vmul.f32 %v1701, %v1718
    %v1770 = vmul.f32 %v1702, %v1718
    %v1771 = vmul.f32 %v1703, %v1718
    %v1772 = vmul.f32 %v1704, %v1718
    %v1773 = vmul.f32 %v1705, %v1718
    %v1774 = vmul.f32 %v1706, %v1718
    %v1775 = vmul.f32 %v1707, %v1718
    %v1776 = vmul.f32 %v1708, %v1718
    %v1777 = vmul.f32 %v1709, %v1718
    %v1778 = vmul.f32 %v1710, %v1718
    %v1779 = vmul.f32 %v1711, %v1718
    %v1780 = vmul.f32 %v1712, %v1718
    %v1781 = vmul.f32 %v1713, %v1718
    %v1782 = vmul.f32 %v1714, %v1718
    %v1783 = vadd.f32 %v1587, %v1719
    %v1784 = vadd.f32 %v1588, %v1720
    %v1785 = vadd.f32 %v1589, %v1721
    %v1786 = vadd.f32 %v1590, %v1722
    %v1787 = vadd.f32 %v1591, %v1723
    %v1788 = vadd.f32 %v1592, %v1724
    %v1789 = vadd.f32 %v1593, %v1725
    %v1790 = vadd.f32 %v1594, %v1726
    %v1791 = vadd.f32 %v1595, %v1727
    %v1792 = vadd.f32 %v1596, %v1728
    %v1793 = vadd.f32 %v1597, %v1729
    %v1794 = vadd.f32 %v1598, %v1730
    %v1795 = vadd.f32 %v1599, %v1731
    %v1796 = vadd.f32 %v1600, %v1732
    %v1797 = vadd.f32 %v1601, %v1733
    %v1798 = vadd.f32 %v1602, %v1734
    %v1799 = vadd.f32 %v1603, %v1735
    %v1800 = vadd.f32 %v1604, %v1736
    %v1801 = vadd.f32 %v1605, %v1737
    %v1802 = vadd.f32 %v1606, %v1738
    %v1803 = vadd.f32 %v1607, %v1739
    %v1804 = vadd.f32 %v1608, %v1740
    %v1805 = vadd.f32 %v1609, %v1741
    %v1806 = vadd.f32 %v1610, %v1742
    %v1807 = vadd.f32 %v1611, %v1743
    %v1808 = vadd.f32 %v1612, %v1744
    %v1809 = vadd.f32 %v1613, %v1745
    %v1810 = vadd.f32 %v1614, %v1746
    %v1811 = vadd.f32 %v1615, %v1747
    %v1812 = vadd.f32 %v1616, %v1748
    %v1813 = vadd.f32 %v1617, %v1749
    %v1814 = vadd.f32 %v1618, %v1750
    %v1815 = vadd.f32 %v1619, %v1751
    %v1816 = vadd.f32 %v1620, %v1752
    %v1817 = vadd.f32 %v1621, %v1753
    %v1818 = vadd.f32 %v1622, %v1754
    %v1819 = vadd.f32 %v1623, %v1755
    %v1820 = vadd.f32 %v1624, %v1756
    %v1821 = vadd.f32 %v1625, %v1757
    %v1822 = vadd.f32 %v1626, %v1758
    %v1823 = vadd.f32 %v1627, %v1759
    %v1824 = vadd.f32 %v1628, %v1760
    %v1825 = vadd.f32 %v1629, %v1761
    %v1826 = vadd.f32 %v1630, %v1762
    %v1827 = vadd.f32 %v1631, %v1763
    %v1828 = vadd.f32 %v1632, %v1764
    %v1829 = vadd.f32 %v1633, %v1765
    %v1830 = vadd.f32 %v1634, %v1766
    %v1831 = vadd.f32 %v1635, %v1767
    %v1832 = vadd.f32 %v1636, %v1768
    %v1833 = vadd.f32 %v1637, %v1769
    %v1834 = vadd.f32 %v1638, %v1770
    %v1835 = vadd.f32 %v1639, %v1771
    %v1836 = vadd.f32 %v1640, %v1772
    %v1837 = vadd.f32 %v1641, %v1773
    %v1838 = vadd.f32 %v1642, %v1774
    %v1839 = vadd.f32 %v1643, %v1775
    %v1840 = vadd.f32 %v1644, %v1776
    %v1841 = vadd.f32 %v1645, %v1777
    %v1842 = vadd.f32 %v1646, %v1778
    %v1843 = vadd.f32 %v1647, %v1779
    %v1844 = vadd.f32 %v1648, %v1780
    %v1845 = vadd.f32 %v1649, %v1781
    %v1846 = vadd.f32 %v1650, %v1782
    %v1847 = vld [vmem:[%s1454 + $0x2] sm:$0xff]
    %v1848 = vld [vmem:[%s1454 + $0xa] sm:$0xff]
    %v1849 = vld [vmem:[%s1454 + $0x1a] sm:$0xff]
    %v1850 = vld [vmem:[%s1454 + $0x22] sm:$0xff]
    %v1851 = vld [vmem:[%s1454 + $0x32] sm:$0xff]
    %v1852 = vld [vmem:[%s1454 + $0x3a] sm:$0xff]
    %v1853 = vld [vmem:[%s1454 + $0x4a] sm:$0xff]
    %v1854 = vld [vmem:[%s1454 + $0x52] sm:$0xff]
    %v1855 = vld [vmem:[%s1454 + $0x62] sm:$0xff]
    %v1856 = vld [vmem:[%s1454 + $0x6a] sm:$0xff]
    %v1857 = vld [vmem:[%s1454 + $0x7a] sm:$0xff]
    %v1858 = vld [vmem:[%s1454 + $0x82] sm:$0xff]
    %v1859 = vld [vmem:[%s1454 + $0x92] sm:$0xff]
    %v1860 = vld [vmem:[%s1454 + $0x9a] sm:$0xff]
    %v1861 = vld [vmem:[%s1454 + $0xaa] sm:$0xff]
    %v1862 = vld [vmem:[%s1454 + $0xb2] sm:$0xff]
    %v1863 = vld [vmem:[%s1454 + $0xc2] sm:$0xff]
    %v1864 = vld [vmem:[%s1454 + $0xca] sm:$0xff]
    %v1865 = vld [vmem:[%s1454 + $0xda] sm:$0xff]
    %v1866 = vld [vmem:[%s1454 + $0xe2] sm:$0xff]
    %v1867 = vld [vmem:[%s1454 + $0xf2] sm:$0xff]
    %v1868 = vld [vmem:[%s1454 + $0xfa] sm:$0xff]
    %v1869 = vld [vmem:[%s1454 + $0x10a] sm:$0xff]
    %v1870 = vld [vmem:[%s1454 + $0x112] sm:$0xff]
    %v1871 = vld [vmem:[%s1454 + $0x122] sm:$0xff]
    %v1872 = vld [vmem:[%s1454 + $0x12a] sm:$0xff]
    %v1873 = vld [vmem:[%s1454 + $0x13a] sm:$0xff]
    %v1874 = vld [vmem:[%s1454 + $0x142] sm:$0xff]
    %v1875 = vld [vmem:[%s1454 + $0x152] sm:$0xff]
    %v1876 = vld [vmem:[%s1454 + $0x15a] sm:$0xff]
    %v1877 = vld [vmem:[%s1454 + $0x16a] sm:$0xff]
    %v1878 = vld [vmem:[%s1454 + $0x172] sm:$0xff]
    %v1879 = vld [vmem:[%s1454 + $0x1b2] sm:$0xff]
    %v1880 = vld [vmem:[%s1454 + $0x1ba] sm:$0xff]
    %v1881 = vld [vmem:[%s1454 + $0x1ca] sm:$0xff]
    %v1882 = vld [vmem:[%s1454 + $0x1d2] sm:$0xff]
    %v1883 = vld [vmem:[%s1454 + $0x1e2] sm:$0xff]
    %v1884 = vld [vmem:[%s1454 + $0x1ea] sm:$0xff]
    %v1885 = vld [vmem:[%s1454 + $0x1fa] sm:$0xff]
    %v1886 = vld [vmem:[%s1454 + $0x202] sm:$0xff]
    %v1887 = vld [vmem:[%s1454 + $0x212] sm:$0xff]
    %v1888 = vld [vmem:[%s1454 + $0x21a] sm:$0xff]
    %v1889 = vld [vmem:[%s1454 + $0x22a] sm:$0xff]
    %v1890 = vld [vmem:[%s1454 + $0x232] sm:$0xff]
    %v1891 = vld [vmem:[%s1454 + $0x242] sm:$0xff]
    %v1892 = vld [vmem:[%s1454 + $0x24a] sm:$0xff]
    %v1893 = vld [vmem:[%s1454 + $0x25a] sm:$0xff]
    %v1894 = vld [vmem:[%s1454 + $0x262] sm:$0xff]
    %v1895 = vld [vmem:[%s1454 + $0x272] sm:$0xff]
    %v1896 = vld [vmem:[%s1454 + $0x27a] sm:$0xff]
    %v1897 = vld [vmem:[%s1454 + $0x28a] sm:$0xff]
    %v1898 = vld [vmem:[%s1454 + $0x292] sm:$0xff]
    %v1899 = vld [vmem:[%s1454 + $0x2a2] sm:$0xff]
    %v1900 = vld [vmem:[%s1454 + $0x2aa] sm:$0xff]
    %v1901 = vld [vmem:[%s1454 + $0x2ba] sm:$0xff]
    %v1902 = vld [vmem:[%s1454 + $0x2c2] sm:$0xff]
    %v1903 = vld [vmem:[%s1454 + $0x2d2] sm:$0xff]
    %v1904 = vld [vmem:[%s1454 + $0x2da] sm:$0xff]
    %v1905 = vld [vmem:[%s1454 + $0x2ea] sm:$0xff]
    %v1906 = vld [vmem:[%s1454 + $0x2f2] sm:$0xff]
    %v1907 = vld [vmem:[%s1454 + $0x302] sm:$0xff]
    %v1908 = vld [vmem:[%s1454 + $0x30a] sm:$0xff]
    %v1909 = vld [vmem:[%s1454 + $0x31a] sm:$0xff]
    %v1910 = vld [vmem:[%s1454 + $0x322] sm:$0xff]
    %v1911 = vlaneseq
    %v1912 = vshrl.u32 %v1911, 7
    %v1913 = vsub.s32 0, %v1912
    %v1914 = vrot.slane %v277, %v1913
    %v1915 = vmul.f32 %v1847, %v1914
    %v1916 = vmul.f32 %v1848, %v1914
    %v1917 = vmul.f32 %v1849, %v1914
    %v1918 = vmul.f32 %v1850, %v1914
    %v1919 = vmul.f32 %v1851, %v1914
    %v1920 = vmul.f32 %v1852, %v1914
    %v1921 = vmul.f32 %v1853, %v1914
    %v1922 = vmul.f32 %v1854, %v1914
    %v1923 = vmul.f32 %v1855, %v1914
    %v1924 = vmul.f32 %v1856, %v1914
    %v1925 = vmul.f32 %v1857, %v1914
    %v1926 = vmul.f32 %v1858, %v1914
    %v1927 = vmul.f32 %v1859, %v1914
    %v1928 = vmul.f32 %v1860, %v1914
    %v1929 = vmul.f32 %v1861, %v1914
    %v1930 = vmul.f32 %v1862, %v1914
    %v1931 = vmul.f32 %v1863, %v1914
    %v1932 = vmul.f32 %v1864, %v1914
    %v1933 = vmul.f32 %v1865, %v1914
    %v1934 = vmul.f32 %v1866, %v1914
    %v1935 = vmul.f32 %v1867, %v1914
    %v1936 = vmul.f32 %v1868, %v1914
    %v1937 = vmul.f32 %v1869, %v1914
    %v1938 = vmul.f32 %v1870, %v1914
    %v1939 = vmul.f32 %v1871, %v1914
    %v1940 = vmul.f32 %v1872, %v1914
    %v1941 = vmul.f32 %v1873, %v1914
    %v1942 = vmul.f32 %v1874, %v1914
    %v1943 = vmul.f32 %v1875, %v1914
    %v1944 = vmul.f32 %v1876, %v1914
    %v1945 = vmul.f32 %v1877, %v1914
    %v1946 = vmul.f32 %v1878, %v1914
    %v1947 = vmul.f32 %v1879, %v1914
    %v1948 = vmul.f32 %v1880, %v1914
    %v1949 = vmul.f32 %v1881, %v1914
    %v1950 = vmul.f32 %v1882, %v1914
    %v1951 = vmul.f32 %v1883, %v1914
    %v1952 = vmul.f32 %v1884, %v1914
    %v1953 = vmul.f32 %v1885, %v1914
    %v1954 = vmul.f32 %v1886, %v1914
    %v1955 = vmul.f32 %v1887, %v1914
    %v1956 = vmul.f32 %v1888, %v1914
    %v1957 = vmul.f32 %v1889, %v1914
    %v1958 = vmul.f32 %v1890, %v1914
    %v1959 = vmul.f32 %v1891, %v1914
    %v1960 = vmul.f32 %v1892, %v1914
    %v1961 = vmul.f32 %v1893, %v1914
    %v1962 = vmul.f32 %v1894, %v1914
    %v1963 = vmul.f32 %v1895, %v1914
    %v1964 = vmul.f32 %v1896, %v1914
    %v1965 = vmul.f32 %v1897, %v1914
    %v1966 = vmul.f32 %v1898, %v1914
    %v1967 = vmul.f32 %v1899, %v1914
    %v1968 = vmul.f32 %v1900, %v1914
    %v1969 = vmul.f32 %v1901, %v1914
    %v1970 = vmul.f32 %v1902, %v1914
    %v1971 = vmul.f32 %v1903, %v1914
    %v1972 = vmul.f32 %v1904, %v1914
    %v1973 = vmul.f32 %v1905, %v1914
    %v1974 = vmul.f32 %v1906, %v1914
    %v1975 = vmul.f32 %v1907, %v1914
    %v1976 = vmul.f32 %v1908, %v1914
    %v1977 = vmul.f32 %v1909, %v1914
    %v1978 = vmul.f32 %v1910, %v1914
    %v1979 = vadd.f32 %v1783, %v1915
    %v1980 = vadd.f32 %v1784, %v1916
    %v1981 = vadd.f32 %v1785, %v1917
    %v1982 = vadd.f32 %v1786, %v1918
    %v1983 = vadd.f32 %v1787, %v1919
    %v1984 = vadd.f32 %v1788, %v1920
    %v1985 = vadd.f32 %v1789, %v1921
    %v1986 = vadd.f32 %v1790, %v1922
    %v1987 = vadd.f32 %v1791, %v1923
    %v1988 = vadd.f32 %v1792, %v1924
    %v1989 = vadd.f32 %v1793, %v1925
    %v1990 = vadd.f32 %v1794, %v1926
    %v1991 = vadd.f32 %v1795, %v1927
    %v1992 = vadd.f32 %v1796, %v1928
    %v1993 = vadd.f32 %v1797, %v1929
    %v1994 = vadd.f32 %v1798, %v1930
    %v1995 = vadd.f32 %v1799, %v1931
    %v1996 = vadd.f32 %v1800, %v1932
    %v1997 = vadd.f32 %v1801, %v1933
    %v1998 = vadd.f32 %v1802, %v1934
    %v1999 = vadd.f32 %v1803, %v1935
    %v2000 = vadd.f32 %v1804, %v1936
    %v2001 = vadd.f32 %v1805, %v1937
    %v2002 = vadd.f32 %v1806, %v1938
    %v2003 = vadd.f32 %v1807, %v1939
    %v2004 = vadd.f32 %v1808, %v1940
    %v2005 = vadd.f32 %v1809, %v1941
    %v2006 = vadd.f32 %v1810, %v1942
    %v2007 = vadd.f32 %v1811, %v1943
    %v2008 = vadd.f32 %v1812, %v1944
    %v2009 = vadd.f32 %v1813, %v1945
    %v2010 = vadd.f32 %v1814, %v1946
    %v2011 = vadd.f32 %v1815, %v1947
    %v2012 = vadd.f32 %v1816, %v1948
    %v2013 = vadd.f32 %v1817, %v1949
    %v2014 = vadd.f32 %v1818, %v1950
    %v2015 = vadd.f32 %v1819, %v1951
    %v2016 = vadd.f32 %v1820, %v1952
    %v2017 = vadd.f32 %v1821, %v1953
    %v2018 = vadd.f32 %v1822, %v1954
    %v2019 = vadd.f32 %v1823, %v1955
    %v2020 = vadd.f32 %v1824, %v1956
    %v2021 = vadd.f32 %v1825, %v1957
    %v2022 = vadd.f32 %v1826, %v1958
    %v2023 = vadd.f32 %v1827, %v1959
    %v2024 = vadd.f32 %v1828, %v1960
    %v2025 = vadd.f32 %v1829, %v1961
    %v2026 = vadd.f32 %v1830, %v1962
    %v2027 = vadd.f32 %v1831, %v1963
    %v2028 = vadd.f32 %v1832, %v1964
    %v2029 = vadd.f32 %v1833, %v1965
    %v2030 = vadd.f32 %v1834, %v1966
    %v2031 = vadd.f32 %v1835, %v1967
    %v2032 = vadd.f32 %v1836, %v1968
    %v2033 = vadd.f32 %v1837, %v1969
    %v2034 = vadd.f32 %v1838, %v1970
    %v2035 = vadd.f32 %v1839, %v1971
    %v2036 = vadd.f32 %v1840, %v1972
    %v2037 = vadd.f32 %v1841, %v1973
    %v2038 = vadd.f32 %v1842, %v1974
    %v2039 = vadd.f32 %v1843, %v1975
    %v2040 = vadd.f32 %v1844, %v1976
    %v2041 = vadd.f32 %v1845, %v1977
    %v2042 = vadd.f32 %v1846, %v1978
    %v2043 = vld [vmem:[#allocation8] sm:$0xff]
    %v2044 = vld [vmem:[#allocation8 + $0x8] sm:$0xff]
    %v2045 = vld [vmem:[#allocation8 + $0x10] sm:$0xff]
    %v2046 = vld [vmem:[#allocation8 + $0x18] sm:$0xff]
    %v2047 = vld [vmem:[#allocation8 + $0x20] sm:$0xff]
    %v2048 = vld [vmem:[#allocation8 + $0x28] sm:$0xff]
    %v2049 = vld [vmem:[#allocation8 + $0x30] sm:$0xff]
    %v2050 = vld [vmem:[#allocation8 + $0x38] sm:$0xff]
    %v2051 = vld [vmem:[%s3] sm:$0x1]
    %v2053 = vlaneseq
    %v2054 = vshrl.u32 %v2053, 7
    %v2055 = vsub.s32 0, %v2054
    %v2056 = vrot.slane %v2051, %v2055
    %v2059 = vsel %vm59, %v1979, 0
    %v2062 = vsel %vm59, %v1980, 0
    %v2065 = vsel %vm59, %v1981, 0
    %v2068 = vsel %vm59, %v1982, 0
    %v2071 = vsel %vm59, %v1983, 0
    %v2074 = vsel %vm59, %v1984, 0
    %v2077 = vsel %vm59, %v1985, 0
    %v2080 = vsel %vm59, %v1986, 0
    %v2083 = vsel %vm59, %v1987, 0
    %v2086 = vsel %vm59, %v1988, 0
    %v2089 = vsel %vm59, %v1989, 0
    %v2092 = vsel %vm59, %v1990, 0
    %v2095 = vsel %vm59, %v1991, 0
    %v2098 = vsel %vm59, %v1992, 0
    %v2101 = vsel %vm59, %v1993, 0
    %v2104 = vsel %vm59, %v1994, 0
    %v2107 = vsel %vm59, %v1995, 0
    %v2110 = vsel %vm59, %v1996, 0
    %v2113 = vsel %vm59, %v1997, 0
    %v2116 = vsel %vm59, %v1998, 0
    %v2119 = vsel %vm59, %v1999, 0
    %v2122 = vsel %vm59, %v2000, 0
    %v2125 = vsel %vm59, %v2001, 0
    %v2128 = vsel %vm59, %v2002, 0
    %v2131 = vsel %vm59, %v2003, 0
    %v2134 = vsel %vm59, %v2004, 0
    %v2137 = vsel %vm59, %v2005, 0
    %v2140 = vsel %vm59, %v2006, 0
    %v2143 = vsel %vm59, %v2007, 0
    %v2146 = vsel %vm59, %v2008, 0
    %v2149 = vsel %vm59, %v2009, 0
    %v2152 = vsel %vm59, %v2010, 0
    %v2155 = vsel %vm59, %v2011, 0
    %v2158 = vsel %vm59, %v2012, 0
    %v2161 = vsel %vm59, %v2013, 0
    %v2164 = vsel %vm59, %v2014, 0
    %v2167 = vsel %vm59, %v2015, 0
    %v2170 = vsel %vm59, %v2016, 0
    %v2173 = vsel %vm59, %v2017, 0
    %v2176 = vsel %vm59, %v2018, 0
    %v2179 = vsel %vm59, %v2019, 0
    %v2182 = vsel %vm59, %v2020, 0
    %v2185 = vsel %vm59, %v2021, 0
    %v2188 = vsel %vm59, %v2022, 0
    %v2191 = vsel %vm59, %v2023, 0
    %v2194 = vsel %vm59, %v2024, 0
    %v2197 = vsel %vm59, %v2025, 0
    %v2200 = vsel %vm59, %v2026, 0
    %v2203 = vsel %vm59, %v2027, 0
    %v2206 = vsel %vm59, %v2028, 0
    %v2209 = vsel %vm59, %v2029, 0
    %v2212 = vsel %vm59, %v2030, 0
    %v2215 = vsel %vm59, %v2031, 0
    %v2218 = vsel %vm59, %v2032, 0
    %v2221 = vsel %vm59, %v2033, 0
    %v2224 = vsel %vm59, %v2034, 0
    %v2227 = vsel %vm59, %v2035, 0
    %v2230 = vsel %vm59, %v2036, 0
    %v2233 = vsel %vm59, %v2037, 0
    %v2236 = vsel %vm59, %v2038, 0
    %v2239 = vsel %vm59, %v2039, 0
    %v2242 = vsel %vm59, %v2040, 0
    %v2245 = vsel %vm59, %v2041, 0
    %v2248 = vsel %vm59, %v2042, 0
    %2250 = vmatprep.subr.mxu0 0.0
    %2251 = vmatpush1.msra.mxu0 0.0
    %2252 = vmatprep.subr.mxu0 0.0
    %2253 = vmatpush1.msra.mxu0 0.0
    %2254 = vmatprep.subr.mxu0 0.0
    %2255 = vmatpush1.msra.mxu0 0.0
    %2256 = vmatprep.subr.mxu0 0.0
    %2257 = vmatpush1.msra.mxu0 0.0
    %2258 = vmatprep.subr.mxu0 0.0
    %2259 = vmatpush1.msra.mxu0 0.0
    %2260 = vmatprep.subr.mxu0 0.0
    %2261 = vmatpush1.msra.mxu0 0.0
    %2262 = vmatprep.subr.mxu0 0.0
    %2263 = vmatpush1.msra.mxu0 0.0
    %2264 = vmatprep.subr.mxu0 0.0
    %2265 = vmatpush1.msra.mxu0 0.0
    %2266 = vmatprep.subr.mxu0 0.0
    %2267 = vmatpush1.msra.mxu0 %v2050
    %2268 = vmatprep.subr.mxu0 0.0
    %2269 = vmatpush1.msra.mxu0 %v2049
    %2270 = vmatprep.subr.mxu0 0.0
    %2271 = vmatpush1.msra.mxu0 %v2048
    %2272 = vmatprep.subr.mxu0 0.0
    %2273 = vmatpush1.msra.mxu0 %v2047
    %2274 = vmatprep.subr.mxu0 0.0
    %2275 = vmatpush1.msra.mxu0 %v2046
    %2276 = vmatprep.subr.mxu0 0.0
    %2277 = vmatpush1.msra.mxu0 %v2045
    %2278 = vmatprep.subr.mxu0 0.0
    %2279 = vmatpush1.msra.mxu0 %v2044
    %2280 = vmatprep.subr.mxu0 0.0
    %2281 = vmatpush1.msra.mxu0 %v2043
    %2282 = vmatprep.subr.mxu0 0.0
    %2283 = vmatpush2.msra.mxu0 0.0
    %2284 = vmatprep.subr.mxu0 0.0
    %2285 = vmatpush2.msra.mxu0 0.0
    %2286 = vmatprep.subr.mxu0 0.0
    %2287 = vmatpush2.msra.mxu0 0.0
    %2288 = vmatprep.subr.mxu0 0.0
    %2289 = vmatpush2.msra.mxu0 0.0
    %2290 = vmatprep.subr.mxu0 0.0
    %2291 = vmatpush2.msra.mxu0 0.0
    %2292 = vmatprep.subr.mxu0 0.0
    %2293 = vmatpush2.msra.mxu0 0.0
    %2294 = vmatprep.subr.mxu0 0.0
    %2295 = vmatpush2.msra.mxu0 0.0
    %2296 = vmatprep.subr.mxu0 0.0
    %2297 = vmatpush2.msra.mxu0 0.0
    %2298 = vmatprep.subr.mxu0 0.0
    %2299 = vmatpush2.msra.mxu0 0.0
    %2300 = vmatprep.subr.mxu0 0.0
    %2301 = vmatpush2.msra.mxu0 0.0
    %2302 = vmatprep.subr.mxu0 0.0
    %2303 = vmatpush2.msra.mxu0 0.0
    %2304 = vmatprep.subr.mxu0 0.0
    %2305 = vmatpush2.msra.mxu0 0.0
    %2306 = vmatprep.subr.mxu0 0.0
    %2307 = vmatpush2.msra.mxu0 0.0
    %2308 = vmatprep.subr.mxu0 0.0
    %2309 = vmatpush2.msra.mxu0 0.0
    %2310 = vmatprep.subr.mxu0 0.0
    %2311 = vmatpush2.msra.mxu0 0.0
    %2312 = vmatprep.subr.mxu0 0.0
    %2313 = vmatpush2.msra.mxu0 0.0
    %2314 = vmatprep.mubr.f32.mxu0 0.0
    %2315 = vmatmul.mubr.f32.gmra.mxu0 %v2059
    %v2316 = vpop.f32.mrf.mxu0
    %v2317 = vadd.f32 %v2056, %v2316
    %v2318 = vpop.f32.mrf.mxu0
    %2319 = vmatprep.mubr.f32.mxu0 0.0
    %2320 = vmatmul.mubr.f32.gmra.mxu0 %v2062
    %v2321 = vpop.f32.mrf.mxu0
    %v2322 = vadd.f32 %v2056, %v2321
    %v2323 = vpop.f32.mrf.mxu0
    %2324 = vmatprep.mubr.f32.mxu0 0.0
    %2325 = vmatmul.mubr.f32.gmra.mxu0 %v2065
    %v2326 = vpop.f32.mrf.mxu0
    %v2327 = vadd.f32 %v2056, %v2326
    %v2328 = vpop.f32.mrf.mxu0
    %2329 = vmatprep.mubr.f32.mxu0 0.0
    %2330 = vmatmul.mubr.f32.gmra.mxu0 %v2068
    %v2331 = vpop.f32.mrf.mxu0
    %v2332 = vadd.f32 %v2056, %v2331
    %v2333 = vpop.f32.mrf.mxu0
    %2334 = vmatprep.mubr.f32.mxu0 0.0
    %2335 = vmatmul.mubr.f32.gmra.mxu0 %v2071
    %v2336 = vpop.f32.mrf.mxu0
    %v2337 = vadd.f32 %v2056, %v2336
    %v2338 = vpop.f32.mrf.mxu0
    %2339 = vmatprep.mubr.f32.mxu0 0.0
    %2340 = vmatmul.mubr.f32.gmra.mxu0 %v2074
    %v2341 = vpop.f32.mrf.mxu0
    %v2342 = vadd.f32 %v2056, %v2341
    %v2343 = vpop.f32.mrf.mxu0
    %2344 = vmatprep.mubr.f32.mxu0 0.0
    %2345 = vmatmul.mubr.f32.gmra.mxu0 %v2077
    %v2346 = vpop.f32.mrf.mxu0
    %v2347 = vadd.f32 %v2056, %v2346
    %v2348 = vpop.f32.mrf.mxu0
    %2349 = vmatprep.mubr.f32.mxu0 0.0
    %2350 = vmatmul.mubr.f32.gmra.mxu0 %v2080
    %v2351 = vpop.f32.mrf.mxu0
    %v2352 = vadd.f32 %v2056, %v2351
    %v2353 = vpop.f32.mrf.mxu0
    %2354 = vmatprep.mubr.f32.mxu0 0.0
    %2355 = vmatmul.mubr.f32.gmra.mxu0 %v2083
    %v2356 = vpop.f32.mrf.mxu0
    %v2357 = vadd.f32 %v2056, %v2356
    %v2358 = vpop.f32.mrf.mxu0
    %2359 = vmatprep.mubr.f32.mxu0 0.0
    %2360 = vmatmul.mubr.f32.gmra.mxu0 %v2086
    %v2361 = vpop.f32.mrf.mxu0
    %v2362 = vadd.f32 %v2056, %v2361
    %v2363 = vpop.f32.mrf.mxu0
    %2364 = vmatprep.mubr.f32.mxu0 0.0
    %2365 = vmatmul.mubr.f32.gmra.mxu0 %v2089
    %v2366 = vpop.f32.mrf.mxu0
    %v2367 = vadd.f32 %v2056, %v2366
    %v2368 = vpop.f32.mrf.mxu0
    %2369 = vmatprep.mubr.f32.mxu0 0.0
    %2370 = vmatmul.mubr.f32.gmra.mxu0 %v2092
    %v2371 = vpop.f32.mrf.mxu0
    %v2372 = vadd.f32 %v2056, %v2371
    %v2373 = vpop.f32.mrf.mxu0
    %2374 = vmatprep.mubr.f32.mxu0 0.0
    %2375 = vmatmul.mubr.f32.gmra.mxu0 %v2095
    %v2376 = vpop.f32.mrf.mxu0
    %v2377 = vadd.f32 %v2056, %v2376
    %v2378 = vpop.f32.mrf.mxu0
    %2379 = vmatprep.mubr.f32.mxu0 0.0
    %2380 = vmatmul.mubr.f32.gmra.mxu0 %v2098
    %v2381 = vpop.f32.mrf.mxu0
    %v2382 = vadd.f32 %v2056, %v2381
    %v2383 = vpop.f32.mrf.mxu0
    %2384 = vmatprep.mubr.f32.mxu0 0.0
    %2385 = vmatmul.mubr.f32.gmra.mxu0 %v2101
    %v2386 = vpop.f32.mrf.mxu0
    %v2387 = vadd.f32 %v2056, %v2386
    %v2388 = vpop.f32.mrf.mxu0
    %2389 = vmatprep.mubr.f32.mxu0 0.0
    %2390 = vmatmul.mubr.f32.gmra.mxu0 %v2104
    %v2391 = vpop.f32.mrf.mxu0
    %v2392 = vadd.f32 %v2056, %v2391
    %v2393 = vpop.f32.mrf.mxu0
    %2394 = vmatprep.mubr.f32.mxu0 0.0
    %2395 = vmatmul.mubr.f32.gmra.mxu0 %v2107
    %v2396 = vpop.f32.mrf.mxu0
    %v2397 = vadd.f32 %v2056, %v2396
    %v2398 = vpop.f32.mrf.mxu0
    %2399 = vmatprep.mubr.f32.mxu0 0.0
    %2400 = vmatmul.mubr.f32.gmra.mxu0 %v2110
    %v2401 = vpop.f32.mrf.mxu0
    %v2402 = vadd.f32 %v2056, %v2401
    %v2403 = vpop.f32.mrf.mxu0
    %2404 = vmatprep.mubr.f32.mxu0 0.0
    %2405 = vmatmul.mubr.f32.gmra.mxu0 %v2113
    %v2406 = vpop.f32.mrf.mxu0
    %v2407 = vadd.f32 %v2056, %v2406
    %v2408 = vpop.f32.mrf.mxu0
    %2409 = vmatprep.mubr.f32.mxu0 0.0
    %2410 = vmatmul.mubr.f32.gmra.mxu0 %v2116
    %v2411 = vpop.f32.mrf.mxu0
    %v2412 = vadd.f32 %v2056, %v2411
    %v2413 = vpop.f32.mrf.mxu0
    %2414 = vmatprep.mubr.f32.mxu0 0.0
    %2415 = vmatmul.mubr.f32.gmra.mxu0 %v2119
    %v2416 = vpop.f32.mrf.mxu0
    %v2417 = vadd.f32 %v2056, %v2416
    %v2418 = vpop.f32.mrf.mxu0
    %2419 = vmatprep.mubr.f32.mxu0 0.0
    %2420 = vmatmul.mubr.f32.gmra.mxu0 %v2122
    %v2421 = vpop.f32.mrf.mxu0
    %v2422 = vadd.f32 %v2056, %v2421
    %v2423 = vpop.f32.mrf.mxu0
    %2424 = vmatprep.mubr.f32.mxu0 0.0
    %2425 = vmatmul.mubr.f32.gmra.mxu0 %v2125
    %v2426 = vpop.f32.mrf.mxu0
    %v2427 = vadd.f32 %v2056, %v2426
    %v2428 = vpop.f32.mrf.mxu0
    %2429 = vmatprep.mubr.f32.mxu0 0.0
    %2430 = vmatmul.mubr.f32.gmra.mxu0 %v2128
    %v2431 = vpop.f32.mrf.mxu0
    %v2432 = vadd.f32 %v2056, %v2431
    %v2433 = vpop.f32.mrf.mxu0
    %2434 = vmatprep.mubr.f32.mxu0 0.0
    %2435 = vmatmul.mubr.f32.gmra.mxu0 %v2131
    %v2436 = vpop.f32.mrf.mxu0
    %v2437 = vadd.f32 %v2056, %v2436
    %v2438 = vpop.f32.mrf.mxu0
    %2439 = vmatprep.mubr.f32.mxu0 0.0
    %2440 = vmatmul.mubr.f32.gmra.mxu0 %v2134
    %v2441 = vpop.f32.mrf.mxu0
    %v2442 = vadd.f32 %v2056, %v2441
    %v2443 = vpop.f32.mrf.mxu0
    %2444 = vmatprep.mubr.f32.mxu0 0.0
    %2445 = vmatmul.mubr.f32.gmra.mxu0 %v2137
    %v2446 = vpop.f32.mrf.mxu0
    %v2447 = vadd.f32 %v2056, %v2446
    %v2448 = vpop.f32.mrf.mxu0
    %2449 = vmatprep.mubr.f32.mxu0 0.0
    %2450 = vmatmul.mubr.f32.gmra.mxu0 %v2140
    %v2451 = vpop.f32.mrf.mxu0
    %v2452 = vadd.f32 %v2056, %v2451
    %v2453 = vpop.f32.mrf.mxu0
    %2454 = vmatprep.mubr.f32.mxu0 0.0
    %2455 = vmatmul.mubr.f32.gmra.mxu0 %v2143
    %v2456 = vpop.f32.mrf.mxu0
    %v2457 = vadd.f32 %v2056, %v2456
    %v2458 = vpop.f32.mrf.mxu0
    %2459 = vmatprep.mubr.f32.mxu0 0.0
    %2460 = vmatmul.mubr.f32.gmra.mxu0 %v2146
    %v2461 = vpop.f32.mrf.mxu0
    %v2462 = vadd.f32 %v2056, %v2461
    %v2463 = vpop.f32.mrf.mxu0
    %2464 = vmatprep.mubr.f32.mxu0 0.0
    %2465 = vmatmul.mubr.f32.gmra.mxu0 %v2149
    %v2466 = vpop.f32.mrf.mxu0
    %v2467 = vadd.f32 %v2056, %v2466
    %v2468 = vpop.f32.mrf.mxu0
    %2469 = vmatprep.mubr.f32.mxu0 0.0
    %2470 = vmatmul.mubr.f32.gmra.mxu0 %v2152
    %v2471 = vpop.f32.mrf.mxu0
    %v2472 = vadd.f32 %v2056, %v2471
    %v2473 = vpop.f32.mrf.mxu0
    %2474 = vmatprep.mubr.f32.mxu0 0.0
    %2475 = vmatmul.mubr.f32.gmra.mxu0 %v2155
    %v2476 = vpop.f32.mrf.mxu0
    %v2477 = vadd.f32 %v2056, %v2476
    %v2478 = vpop.f32.mrf.mxu0
    %2479 = vmatprep.mubr.f32.mxu0 0.0
    %2480 = vmatmul.mubr.f32.gmra.mxu0 %v2158
    %v2481 = vpop.f32.mrf.mxu0
    %v2482 = vadd.f32 %v2056, %v2481
    %v2483 = vpop.f32.mrf.mxu0
    %2484 = vmatprep.mubr.f32.mxu0 0.0
    %2485 = vmatmul.mubr.f32.gmra.mxu0 %v2161
    %v2486 = vpop.f32.mrf.mxu0
    %v2487 = vadd.f32 %v2056, %v2486
    %v2488 = vpop.f32.mrf.mxu0
    %2489 = vmatprep.mubr.f32.mxu0 0.0
    %2490 = vmatmul.mubr.f32.gmra.mxu0 %v2164
    %v2491 = vpop.f32.mrf.mxu0
    %v2492 = vadd.f32 %v2056, %v2491
    %v2493 = vpop.f32.mrf.mxu0
    %2494 = vmatprep.mubr.f32.mxu0 0.0
    %2495 = vmatmul.mubr.f32.gmra.mxu0 %v2167
    %v2496 = vpop.f32.mrf.mxu0
    %v2497 = vadd.f32 %v2056, %v2496
    %v2498 = vpop.f32.mrf.mxu0
    %2499 = vmatprep.mubr.f32.mxu0 0.0
    %2500 = vmatmul.mubr.f32.gmra.mxu0 %v2170
    %v2501 = vpop.f32.mrf.mxu0
    %v2502 = vadd.f32 %v2056, %v2501
    %v2503 = vpop.f32.mrf.mxu0
    %2504 = vmatprep.mubr.f32.mxu0 0.0
    %2505 = vmatmul.mubr.f32.gmra.mxu0 %v2173
    %v2506 = vpop.f32.mrf.mxu0
    %v2507 = vadd.f32 %v2056, %v2506
    %v2508 = vpop.f32.mrf.mxu0
    %2509 = vmatprep.mubr.f32.mxu0 0.0
    %2510 = vmatmul.mubr.f32.gmra.mxu0 %v2176
    %v2511 = vpop.f32.mrf.mxu0
    %v2512 = vadd.f32 %v2056, %v2511
    %v2513 = vpop.f32.mrf.mxu0
    %2514 = vmatprep.mubr.f32.mxu0 0.0
    %2515 = vmatmul.mubr.f32.gmra.mxu0 %v2179
    %v2516 = vpop.f32.mrf.mxu0
    %v2517 = vadd.f32 %v2056, %v2516
    %v2518 = vpop.f32.mrf.mxu0
    %2519 = vmatprep.mubr.f32.mxu0 0.0
    %2520 = vmatmul.mubr.f32.gmra.mxu0 %v2182
    %v2521 = vpop.f32.mrf.mxu0
    %v2522 = vadd.f32 %v2056, %v2521
    %v2523 = vpop.f32.mrf.mxu0
    %2524 = vmatprep.mubr.f32.mxu0 0.0
    %2525 = vmatmul.mubr.f32.gmra.mxu0 %v2185
    %v2526 = vpop.f32.mrf.mxu0
    %v2527 = vadd.f32 %v2056, %v2526
    %v2528 = vpop.f32.mrf.mxu0
    %2529 = vmatprep.mubr.f32.mxu0 0.0
    %2530 = vmatmul.mubr.f32.gmra.mxu0 %v2188
    %v2531 = vpop.f32.mrf.mxu0
    %v2532 = vadd.f32 %v2056, %v2531
    %v2533 = vpop.f32.mrf.mxu0
    %2534 = vmatprep.mubr.f32.mxu0 0.0
    %2535 = vmatmul.mubr.f32.gmra.mxu0 %v2191
    %v2536 = vpop.f32.mrf.mxu0
    %v2537 = vadd.f32 %v2056, %v2536
    %v2538 = vpop.f32.mrf.mxu0
    %2539 = vmatprep.mubr.f32.mxu0 0.0
    %2540 = vmatmul.mubr.f32.gmra.mxu0 %v2194
    %v2541 = vpop.f32.mrf.mxu0
    %v2542 = vadd.f32 %v2056, %v2541
    %v2543 = vpop.f32.mrf.mxu0
    %2544 = vmatprep.mubr.f32.mxu0 0.0
    %2545 = vmatmul.mubr.f32.gmra.mxu0 %v2197
    %v2546 = vpop.f32.mrf.mxu0
    %v2547 = vadd.f32 %v2056, %v2546
    %v2548 = vpop.f32.mrf.mxu0
    %2549 = vmatprep.mubr.f32.mxu0 0.0
    %2550 = vmatmul.mubr.f32.gmra.mxu0 %v2200
    %v2551 = vpop.f32.mrf.mxu0
    %v2552 = vadd.f32 %v2056, %v2551
    %v2553 = vpop.f32.mrf.mxu0
    %2554 = vmatprep.mubr.f32.mxu0 0.0
    %2555 = vmatmul.mubr.f32.gmra.mxu0 %v2203
    %v2556 = vpop.f32.mrf.mxu0
    %v2557 = vadd.f32 %v2056, %v2556
    %v2558 = vpop.f32.mrf.mxu0
    %2559 = vmatprep.mubr.f32.mxu0 0.0
    %2560 = vmatmul.mubr.f32.gmra.mxu0 %v2206
    %v2561 = vpop.f32.mrf.mxu0
    %v2562 = vadd.f32 %v2056, %v2561
    %v2563 = vpop.f32.mrf.mxu0
    %2564 = vmatprep.mubr.f32.mxu0 0.0
    %2565 = vmatmul.mubr.f32.gmra.mxu0 %v2209
    %v2566 = vpop.f32.mrf.mxu0
    %v2567 = vadd.f32 %v2056, %v2566
    %v2568 = vpop.f32.mrf.mxu0
    %2569 = vmatprep.mubr.f32.mxu0 0.0
    %2570 = vmatmul.mubr.f32.gmra.mxu0 %v2212
    %v2571 = vpop.f32.mrf.mxu0
    %v2572 = vadd.f32 %v2056, %v2571
    %v2573 = vpop.f32.mrf.mxu0
    %2574 = vmatprep.mubr.f32.mxu0 0.0
    %2575 = vmatmul.mubr.f32.gmra.mxu0 %v2215
    %v2576 = vpop.f32.mrf.mxu0
    %v2577 = vadd.f32 %v2056, %v2576
    %v2578 = vpop.f32.mrf.mxu0
    %2579 = vmatprep.mubr.f32.mxu0 0.0
    %2580 = vmatmul.mubr.f32.gmra.mxu0 %v2218
    %v2581 = vpop.f32.mrf.mxu0
    %v2582 = vadd.f32 %v2056, %v2581
    %v2583 = vpop.f32.mrf.mxu0
    %2584 = vmatprep.mubr.f32.mxu0 0.0
    %2585 = vmatmul.mubr.f32.gmra.mxu0 %v2221
    %v2586 = vpop.f32.mrf.mxu0
    %v2587 = vadd.f32 %v2056, %v2586
    %v2588 = vpop.f32.mrf.mxu0
    %2589 = vmatprep.mubr.f32.mxu0 0.0
    %2590 = vmatmul.mubr.f32.gmra.mxu0 %v2224
    %v2591 = vpop.f32.mrf.mxu0
    %v2592 = vadd.f32 %v2056, %v2591
    %v2593 = vpop.f32.mrf.mxu0
    %2594 = vmatprep.mubr.f32.mxu0 0.0
    %2595 = vmatmul.mubr.f32.gmra.mxu0 %v2227
    %v2596 = vpop.f32.mrf.mxu0
    %v2597 = vadd.f32 %v2056, %v2596
    %v2598 = vpop.f32.mrf.mxu0
    %2599 = vmatprep.mubr.f32.mxu0 0.0
    %2600 = vmatmul.mubr.f32.gmra.mxu0 %v2230
    %v2601 = vpop.f32.mrf.mxu0
    %v2602 = vadd.f32 %v2056, %v2601
    %v2603 = vpop.f32.mrf.mxu0
    %2604 = vmatprep.mubr.f32.mxu0 0.0
    %2605 = vmatmul.mubr.f32.gmra.mxu0 %v2233
    %v2606 = vpop.f32.mrf.mxu0
    %v2607 = vadd.f32 %v2056, %v2606
    %v2608 = vpop.f32.mrf.mxu0
    %2609 = vmatprep.mubr.f32.mxu0 0.0
    %2610 = vmatmul.mubr.f32.gmra.mxu0 %v2236
    %v2611 = vpop.f32.mrf.mxu0
    %v2612 = vadd.f32 %v2056, %v2611
    %v2613 = vpop.f32.mrf.mxu0
    %2614 = vmatprep.mubr.f32.mxu0 0.0
    %2615 = vmatmul.mubr.f32.gmra.mxu0 %v2239
    %v2616 = vpop.f32.mrf.mxu0
    %v2617 = vadd.f32 %v2056, %v2616
    %v2618 = vpop.f32.mrf.mxu0
    %2619 = vmatprep.mubr.f32.mxu0 0.0
    %2620 = vmatmul.mubr.f32.gmra.mxu0 %v2242
    %v2621 = vpop.f32.mrf.mxu0
    %v2622 = vadd.f32 %v2056, %v2621
    %v2623 = vpop.f32.mrf.mxu0
    %2624 = vmatprep.mubr.f32.mxu0 0.0
    %2625 = vmatmul.mubr.f32.gmra.mxu0 %v2245
    %v2626 = vpop.f32.mrf.mxu0
    %v2627 = vadd.f32 %v2056, %v2626
    %v2628 = vpop.f32.mrf.mxu0
    %2629 = vmatprep.mubr.f32.mxu0 0.0
    %2630 = vmatmul.mubr.f32.gmra.mxu0 %v2248
    %v2631 = vpop.f32.mrf.mxu0
    %v2632 = vadd.f32 %v2056, %v2631
    %v2633 = vpop.f32.mrf.mxu0
    %2634 = vdwg.mxu0
    %2635 = vst.msk [vmem:[#allocation9] sm:$0xff] %vm59, %v2317
    %2636 = vst.msk [vmem:[#allocation9 + $0x8] sm:$0xff] %vm59, %v2322
    %2637 = vst.msk [vmem:[#allocation9 + $0x10] sm:$0xff] %vm59, %v2327
    %2638 = vst.msk [vmem:[#allocation9 + $0x18] sm:$0xff] %vm59, %v2332
    %2639 = vst.msk [vmem:[#allocation9 + $0x20] sm:$0xff] %vm59, %v2337
    %2640 = vst.msk [vmem:[#allocation9 + $0x28] sm:$0xff] %vm59, %v2342
    %2641 = vst.msk [vmem:[#allocation9 + $0x30] sm:$0xff] %vm59, %v2347
    %2642 = vst.msk [vmem:[#allocation9 + $0x38] sm:$0xff] %vm59, %v2352
    %2643 = vst.msk [vmem:[#allocation9 + $0x40] sm:$0xff] %vm59, %v2357
    %2644 = vst.msk [vmem:[#allocation9 + $0x48] sm:$0xff] %vm59, %v2362
    %2645 = vst.msk [vmem:[#allocation9 + $0x50] sm:$0xff] %vm59, %v2367
    %2646 = vst.msk [vmem:[#allocation9 + $0x58] sm:$0xff] %vm59, %v2372
    %2647 = vst.msk [vmem:[#allocation9 + $0x60] sm:$0xff] %vm59, %v2377
    %2648 = vst.msk [vmem:[#allocation9 + $0x68] sm:$0xff] %vm59, %v2382
    %2649 = vst.msk [vmem:[#allocation9 + $0x70] sm:$0xff] %vm59, %v2387
    %2650 = vst.msk [vmem:[#allocation9 + $0x78] sm:$0xff] %vm59, %v2392
    %2651 = vst.msk [vmem:[#allocation9 + $0x80] sm:$0xff] %vm59, %v2397
    %2652 = vst.msk [vmem:[#allocation9 + $0x88] sm:$0xff] %vm59, %v2402
    %2653 = vst.msk [vmem:[#allocation9 + $0x90] sm:$0xff] %vm59, %v2407
    %2654 = vst.msk [vmem:[#allocation9 + $0x98] sm:$0xff] %vm59, %v2412
    %2655 = vst.msk [vmem:[#allocation9 + $0xa0] sm:$0xff] %vm59, %v2417
    %2656 = vst.msk [vmem:[#allocation9 + $0xa8] sm:$0xff] %vm59, %v2422
    %2657 = vst.msk [vmem:[#allocation9 + $0xb0] sm:$0xff] %vm59, %v2427
    %2658 = vst.msk [vmem:[#allocation9 + $0xb8] sm:$0xff] %vm59, %v2432
    %2659 = vst.msk [vmem:[#allocation9 + $0xc0] sm:$0xff] %vm59, %v2437
    %2660 = vst.msk [vmem:[#allocation9 + $0xc8] sm:$0xff] %vm59, %v2442
    %2661 = vst.msk [vmem:[#allocation9 + $0xd0] sm:$0xff] %vm59, %v2447
    %2662 = vst.msk [vmem:[#allocation9 + $0xd8] sm:$0xff] %vm59, %v2452
    %2663 = vst.msk [vmem:[#allocation9 + $0xe0] sm:$0xff] %vm59, %v2457
    %2664 = vst.msk [vmem:[#allocation9 + $0xe8] sm:$0xff] %vm59, %v2462
    %2665 = vst.msk [vmem:[#allocation9 + $0xf0] sm:$0xff] %vm59, %v2467
    %2666 = vst.msk [vmem:[#allocation9 + $0xf8] sm:$0xff] %vm59, %v2472
    %2667 = vst.msk [vmem:[#allocation9 + $0x100] sm:$0xff] %vm59, %v2477
    %2668 = vst.msk [vmem:[#allocation9 + $0x108] sm:$0xff] %vm59, %v2482
    %2669 = vst.msk [vmem:[#allocation9 + $0x110] sm:$0xff] %vm59, %v2487
    %2670 = vst.msk [vmem:[#allocation9 + $0x118] sm:$0xff] %vm59, %v2492
    %2671 = vst.msk [vmem:[#allocation9 + $0x120] sm:$0xff] %vm59, %v2497
    %2672 = vst.msk [vmem:[#allocation9 + $0x128] sm:$0xff] %vm59, %v2502
    %2673 = vst.msk [vmem:[#allocation9 + $0x130] sm:$0xff] %vm59, %v2507
    %2674 = vst.msk [vmem:[#allocation9 + $0x138] sm:$0xff] %vm59, %v2512
    %2675 = vst.msk [vmem:[#allocation9 + $0x140] sm:$0xff] %vm59, %v2517
    %2676 = vst.msk [vmem:[#allocation9 + $0x148] sm:$0xff] %vm59, %v2522
    %2677 = vst.msk [vmem:[#allocation9 + $0x150] sm:$0xff] %vm59, %v2527
    %2678 = vst.msk [vmem:[#allocation9 + $0x158] sm:$0xff] %vm59, %v2532
    %2679 = vst.msk [vmem:[#allocation9 + $0x160] sm:$0xff] %vm59, %v2537
    %2680 = vst.msk [vmem:[#allocation9 + $0x168] sm:$0xff] %vm59, %v2542
    %2681 = vst.msk [vmem:[#allocation9 + $0x170] sm:$0xff] %vm59, %v2547
    %2682 = vst.msk [vmem:[#allocation9 + $0x178] sm:$0xff] %vm59, %v2552
    %2683 = vst.msk [vmem:[#allocation9 + $0x180] sm:$0xff] %vm59, %v2557
    %2684 = vst.msk [vmem:[#allocation9 + $0x188] sm:$0xff] %vm59, %v2562
    %2685 = vst.msk [vmem:[#allocation9 + $0x190] sm:$0xff] %vm59, %v2567
    %2686 = vst.msk [vmem:[#allocation9 + $0x198] sm:$0xff] %vm59, %v2572
    %2687 = vst.msk [vmem:[#allocation9 + $0x1a0] sm:$0xff] %vm59, %v2577
    %2688 = vst.msk [vmem:[#allocation9 + $0x1a8] sm:$0xff] %vm59, %v2582
    %2689 = vst.msk [vmem:[#allocation9 + $0x1b0] sm:$0xff] %vm59, %v2587
    %2690 = vst.msk [vmem:[#allocation9 + $0x1b8] sm:$0xff] %vm59, %v2592
    %2691 = vst.msk [vmem:[#allocation9 + $0x1c0] sm:$0xff] %vm59, %v2597
    %2692 = vst.msk [vmem:[#allocation9 + $0x1c8] sm:$0xff] %vm59, %v2602
    %2693 = vst.msk [vmem:[#allocation9 + $0x1d0] sm:$0xff] %vm59, %v2607
    %2694 = vst.msk [vmem:[#allocation9 + $0x1d8] sm:$0xff] %vm59, %v2612
    %2695 = vst.msk [vmem:[#allocation9 + $0x1e0] sm:$0xff] %vm59, %v2617
    %2696 = vst.msk [vmem:[#allocation9 + $0x1e8] sm:$0xff] %vm59, %v2622
    %2697 = vst.msk [vmem:[#allocation9 + $0x1f0] sm:$0xff] %vm59, %v2627
    %2698 = vst.msk [vmem:[#allocation9 + $0x1f8] sm:$0xff] %vm59, %v2632
    // Predicated region
    $region30: #{tpu_custom_call.1} parent=1 // pred_check
      _
    $region31: #{tpu_custom_call.1} parent=1 // pred_check_branch
      %2700 = sbr.rel (0) target = $region33
    $region32: #{tpu_custom_call.1} parent=1 // pred_region
      %s2702 = ssub.s32 8192, 8192
      %2703 = vsyncadd [#allocation5], %s2702
      %s2704 = sshll.u32 [#allocation9], 4
      %s2705 = int_to_ptr.vmem [resolvable:$true] %s2704
      %2710 = dma.vmem_to_hbm [thread:$0]  %s2705, 8192, %s4, [#allocation5], 128, 128, 8
    $region33: #{tpu_custom_call.1} parent=1 // pred_fallthru
      _
    // Predicated region
    $region34: #{tpu_custom_call.1} parent=1 // pred_check
      _
    $region35: #{tpu_custom_call.1} parent=1 // pred_check_branch
      %2712 = sbr.rel (0) target = $region37
    $region36: #{tpu_custom_call.1} parent=1 // pred_region
      %2713 = dma.done [#allocation5], 8192
    $region37: #{tpu_custom_call.1} parent=1 // pred_fallthru
      _
    %2714 = vsyncpa [#allocation4], 1
    %2715 = vsyncpa [#allocation7], 1
    %2716 = vsyncpa [#allocation5], 1

</llo_original>
